<compile_context>
chip_gen: v7x
topology: tpu7x:2x2x1
jax: 0.10.0
libtpu: 0.0.40
codegen_flags: <defaults>
</compile_context>

<pallas_src>
import jax
import jax.numpy as jnp
from jax.experimental import pallas as pl
from jax.experimental.pallas import tpu as pltpu

_VMEM_LIMIT_BYTES = 32 * 1024 * 1024   # fits v5e / v6e / v7x scoped-VMEM budgets

# Backbone dimensions (network_mnist_svhn assumed).
C0, C1, C2 = 3, 32, 64     # input / conv1 / conv2 channels
HW = 32                    # input spatial size (SVHN)
P1 = HW // 2               # 16 : conv1 pooled spatial
P2 = HW // 4               # 8  : conv2 pooled spatial
FC_HIDDEN = 128
N_CLASSES = 10
K1P = 128                  # conv1 folded contraction 4*9*C0=108, padded to 128
K2 = 2 * 3 * C1            # 192 : conv2 folded contraction (pw, kw, c)
N2 = 2 * C2                # 128 : conv2 folded output width (pw, oc)


# ---------------------------------------------------------------------------
# Fused conv1 + pool + conv2 + pool kernel
# ---------------------------------------------------------------------------
def _conv_stack_kernel(x_ref, w1_ref, b1_ref, w2_ref, b2_ref, o_ref):
    """Per grid step: BB images through both conv stages.

    x_ref : (BB, 256, 128) bf16  conv1 folded im2col; rows ordered
            (row-parity eh, i, col-parity ew, j) over the pooled 16x16 grid,
            lanes p*27 + (kh*3+kw)*3 + c (p = conv1 pooling parity).
    w1_ref: (128, 128) bf16      block-diagonal (over p) conv1 weight.
    b1_ref: (1, 32)   f32
    w2_ref: (3, 192, 128) bf16   per-kh conv2 weight, block-diagonal over the
            output column parity pw (rows pw*96+kw*32+c, cols pw*64+oc).
    b2_ref: (1, 64)   f32
    o_ref : (BB, 64, 64) bf16    pooled conv2 output, rows i*8+j, lanes oc.
    """
    BB = x_ref.shape[0]
    M1 = P1 * P1

    # conv1: one dense MXU matmul; 2x2 max-pool = max over the 4 parity
    # lane-groups of the result (bias/ReLU commute with the max).
    y1 = jnp.dot(x_ref[...].reshape(BB * M1, K1P), w1_ref[...],
                 preferred_element_type=jnp.float32)              # (BB*256,128)
    o1 = jnp.maximum(jnp.maximum(y1[:, 0 * C1:1 * C1], y1[:, 1 * C1:2 * C1]),
                     jnp.maximum(y1[:, 2 * C1:3 * C1], y1[:, 3 * C1:4 * C1]))
    o1 = jnp.maximum(o1 + b1_ref[...], 0.0)                       # (BB*256, 32)

    # Split into the 4 (row-parity, col-parity) planes of the 16x16 map.
    o1 = o1.reshape(BB, 2, P2, 2, P2, C1)                         # b,eh,i,ew,j,c
    p = [[o1[:, eh, :, ew, :, :] for ew in range(2)] for eh in range(2)]

    # Build F[e][b, m, j, pw*96+kw*32+c] = X2pad[b, 2m+e, 2j+pw+kw, c] where
    # X2pad is the zero-padded (18,18) conv2 input.  Row padding is a major-dim
    # concat; the two +-1 column shifts are the only sub-tile slices left.
    zr = jnp.zeros((BB, 1, P2, C1), jnp.float32)
    zc = jnp.zeros((BB, P2 + 1, 1, C1), jnp.float32)

    def fold(r_even, r_odd):
        # lane groups in (pw, kw) order; column offset u = pw + kw:
        #   u=0 -> X2 odd col j-1, u=1 -> even col j, u=2 -> odd col j,
        #   u=3 -> even col j+1 (zeros at the borders).
        u0 = jnp.concatenate([zc, r_odd[:, :, :P2 - 1, :]], axis=2)
        u3 = jnp.concatenate([r_even[:, :, 1:, :], zc], axis=2)
        return jnp.concatenate([u0, r_even, r_odd, r_even, r_odd, u3], axis=3)

    f = [
        # e=0: X2pad rows 0,2,..,16  -> zero row then X2 odd rows
        fold(jnp.concatenate([zr, p[1][0]], axis=1),
             jnp.concatenate([zr, p[1][1]], axis=1)),
        # e=1: X2pad rows 1,3,..,17  -> X2 even rows then zero row
        fold(jnp.concatenate([p[0][0], zr], axis=1),
             jnp.concatenate([p[0][1], zr], axis=1)),
    ]

    # conv2: 3 matmuls (K=192, N=128) per output row parity.  The LHS for
    # (ph, kh) is a contiguous major-dim slice of F[(ph+kh)%2].
    def conv2_row_parity(ph):
        acc = jnp.zeros((BB * P2 * P2, N2), jnp.float32)
        for kh in range(3):
            e, off = (ph + kh) % 2, (ph + kh) // 2
            lhs = f[e][:, off:off + P2, :, :].reshape(BB * P2 * P2, K2)
            acc = acc + jnp.dot(lhs.astype(jnp.bfloat16), w2_ref[kh],
                                preferred_element_type=jnp.float32)
        return acc

    y2 = jnp.maximum(conv2_row_parity(0), conv2_row_parity(1))   # pool over ph
    y2 = jnp.maximum(y2[:, :C2], y2[:, C2:])                      # pool over pw
    y2 = jnp.maximum(y2 + b2_ref[...], 0.0)                       # bias + ReLU
    o_ref[...] = y2.reshape(BB, P2 * P2, C2).astype(o_ref.dtype)


def conv_stage(cols, w1_blk, b1, w2_blk, b2):
    """cols: (N, 256, 128) bf16 -> (N, 64, 64) bf16 pooled conv2 features."""
    n = cols.shape[0]
    # Batch block: amortize per-step overhead, but keep >= 2 grid steps so both
    # v7x TensorCores are used.
    bb = 1
    for cand in (8, 4, 2):
        if n % cand == 0 and n // cand >= 2:
            bb = cand
            break
    return pl.pallas_call(
        _conv_stack_kernel,
        out_shape=jax.ShapeDtypeStruct((n, P2 * P2, C2), jnp.bfloat16),
        grid=(n // bb,),
        in_specs=[
            pl.BlockSpec((bb, P1 * P1, K1P), lambda b: (b, 0, 0)),
            pl.BlockSpec((K1P, 4 * C1), lambda b: (0, 0)),
            pl.BlockSpec((1, C1), lambda b: (0, 0)),
            pl.BlockSpec((3, K2, N2), lambda b: (0, 0, 0)),
            pl.BlockSpec((1, C2), lambda b: (0, 0)),
        ],
        out_specs=pl.BlockSpec((bb, P2 * P2, C2), lambda b: (b, 0, 0)),
        compiler_params=pltpu.CompilerParams(
            dimension_semantics=("parallel",),
            vmem_limit_bytes=_VMEM_LIMIT_BYTES),
    )(cols, w1_blk, b1, w2_blk, b2)


# ---------------------------------------------------------------------------
# Fused fc1 (+ReLU) + fc2 head
# ---------------------------------------------------------------------------
def _mlp_kernel(x_ref, w1_ref, b1_ref, w2_ref, b2_ref, o_ref):
    h = jnp.dot(x_ref[...], w1_ref[...], preferred_element_type=jnp.float32)
    h = jnp.maximum(h + b1_ref[...], 0.0)
    y = jnp.dot(h.astype(jnp.bfloat16), w2_ref[...],
                preferred_element_type=jnp.float32)
    o_ref[...] = y + b2_ref[...]


def mlp_head(x, w1, b1, w2p, b2p):
    """logits(padded to 128 lanes) = relu(x @ w1 + b1) @ w2p + b2p."""
    m, k = x.shape
    h1 = w1.shape[1]
    np_ = w2p.shape[1]
    tm = m if m <= 256 else 256
    return pl.pallas_call(
        _mlp_kernel,
        out_shape=jax.ShapeDtypeStruct((m, np_), jnp.float32),
        grid=(pl.cdiv(m, tm),),
        in_specs=[pl.BlockSpec((tm, k), lambda i: (i, 0)),
                  pl.BlockSpec((k, h1), lambda i: (0, 0)),
                  pl.BlockSpec((1, h1), lambda i: (0, 0)),
                  pl.BlockSpec((h1, np_), lambda i: (0, 0)),
                  pl.BlockSpec((1, np_), lambda i: (0, 0))],
        out_specs=pl.BlockSpec((tm, np_), lambda i: (i, 0)),
        compiler_params=pltpu.CompilerParams(
            dimension_semantics=("parallel",),
            vmem_limit_bytes=_VMEM_LIMIT_BYTES),
    )(x, w1, b1, w2p, b2p)


# ---------------------------------------------------------------------------
# One-time weight packing (hoisted out of the per-forward path)
# ---------------------------------------------------------------------------
def prepare_params(params):
    c1f = jnp.transpose(params["conv1_w"], (2, 3, 1, 0)).reshape(9 * C0, C1)
    w1_blk = jnp.zeros((K1P, 4 * C1), jnp.float32)
    for par in range(4):                       # block-diag over conv1 pool parity
        w1_blk = w1_blk.at[par * 9 * C0:(par + 1) * 9 * C0,
                           par * C1:(par + 1) * C1].set(c1f)

    c2t = jnp.transpose(params["conv2_w"], (2, 3, 1, 0))      # (3, 3, C1, C2)
    w2_blk = jnp.zeros((3, K2, N2), jnp.float32)
    for kh in range(3):
        blk = c2t[kh].reshape(3 * C1, C2)
        for pw in range(2):                    # block-diag over output col parity
            w2_blk = w2_blk.at[kh, pw * 3 * C1:(pw + 1) * 3 * C1,
                               pw * C2:(pw + 1) * C2].set(blk)

    np_ = 128 * pl.cdiv(N_CLASSES, 128)
    fc2w = jnp.zeros((FC_HIDDEN, np_), jnp.float32).at[:, :N_CLASSES].set(
        params["fc2_w"])
    fc2b = jnp.zeros((1, np_), jnp.float32).at[0, :N_CLASSES].set(
        params["fc2_b"])
    return {
        "w1_blk": w1_blk.astype(jnp.bfloat16),
        "b1": params["conv1_b"].reshape(1, C1).astype(jnp.float32),
        "w2_blk": w2_blk.astype(jnp.bfloat16),
        "b2": params["conv2_b"].reshape(1, C2).astype(jnp.float32),
        "fc1_w": params["fc1_w"].astype(jnp.bfloat16),
        "fc1_b": params["fc1_b"].reshape(1, FC_HIDDEN).astype(jnp.float32),
        "fc2_w": fc2w.astype(jnp.bfloat16),
        "fc2_b": fc2b,
    }


def _build_conv1_cols(x):
    """Per-forward input prep (pure layout work on the tiny 3-channel input,
    fused by XLA): zero-pad, gather the 36 (pool-parity, tap) planes, fold them
    onto the 128-lane axis, and order rows (eh, i, ew, j) over the pooled grid
    (the order the fused kernel needs for conv2's parity-plane extraction)."""
    n, h, w, c = x.shape
    assert (h, w, c) == (HW, HW, C0)
    xp = jnp.pad(x, ((0, 0), (1, 1), (1, 1), (0, 0)))
    chunks = []
    for ph in range(2):
        for pw in range(2):
            for kh in range(3):
                for kw in range(3):
                    chunks.append(xp[:, ph + kh:ph + kh + 2 * P1 - 1:2,
                                     pw + kw:pw + kw + 2 * P1 - 1:2, :])
    cols = jnp.stack(chunks, axis=3).reshape(n, P1, P1, 36 * C0)
    cols = jnp.pad(cols, ((0, 0), (0, 0), (0, 0), (0, K1P - 36 * C0)))
    cols = cols.reshape(n, P2, 2, P2, 2, K1P).transpose(0, 2, 1, 4, 3, 5)
    return cols.reshape(n, P1 * P1, K1P).astype(jnp.bfloat16)


# ---------------------------------------------------------------------------
# Parameters (deterministic, synthetic) and forward pass
# ---------------------------------------------------------------------------
def init_params(key):
    ks = jax.random.split(key, 8)

    def randn(k, shape, fan_in):
        return jax.random.normal(k, shape, jnp.float32) / jnp.sqrt(float(fan_in))

    flat = C2 * P2 * P2
    return {
        "conv1_w": randn(ks[0], (C1, C0, 3, 3), C0 * 9),
        "conv1_b": randn(ks[1], (C1,), C0 * 9),
        "conv2_w": randn(ks[2], (C2, C1, 3, 3), C1 * 9),
        "conv2_b": randn(ks[3], (C2,), C1 * 9),
        # TODO(synk): fc1_w is defined in NHWC-flatten (h, w, c) order; porting
        # real pretrained (NCHW-flattened) weights needs a row permutation.
        "fc1_w": randn(ks[4], (flat, FC_HIDDEN), flat),
        "fc1_b": randn(ks[5], (FC_HIDDEN,), flat),
        "fc2_w": randn(ks[6], (FC_HIDDEN, N_CLASSES), FC_HIDDEN),
        "fc2_b": randn(ks[7], (N_CLASSES,), FC_HIDDEN),
    }


def network_forward(prep, x_nchw):
    x = jnp.transpose(x_nchw, (0, 2, 3, 1))                       # NHWC
    cols = _build_conv1_cols(x)                                   # (N, 256, 128)
    feat = conv_stage(cols, prep["w1_blk"], prep["b1"],
                      prep["w2_blk"], prep["b2"])                 # (N, 64, 64)
    feat = feat.reshape(feat.shape[0], -1)                        # NHWC flatten
    logits = mlp_head(feat, prep["fc1_w"], prep["fc1_b"],
                      prep["fc2_w"], prep["fc2_b"])
    return logits[:, :N_CLASSES]


def reference_forward(params, x_nchw):
    """Pure-JAX (XLA) float32 reference of the same forward."""
    x = jnp.transpose(x_nchw, (0, 2, 3, 1)).astype(jnp.float32)
    for wn, bn in (("conv1_w", "conv1_b"), ("conv2_w", "conv2_b")):
        w = jnp.transpose(params[wn], (2, 3, 1, 0))               # HWIO
        y = jax.lax.conv_general_dilated(
            x, w, window_strides=(1, 1), padding="SAME",
            dimension_numbers=("NHWC", "HWIO", "NHWC"))
        y = jax.nn.relu(y + params[bn])
        x = jax.lax.reduce_window(y, -jnp.inf, jax.lax.max,
                                  (1, 2, 2, 1), (1, 2, 2, 1), "VALID")
    x = x.reshape(x.shape[0], -1)
    h = jax.nn.relu(x @ params["fc1_w"] + params["fc1_b"])
    return h @ params["fc2_w"] + params["fc2_b"]


if __name__ == "__main__":
    key = jax.random.PRNGKey(0)
    k_params, k_x = jax.random.split(key)

    # SVHN-like input: batch=2, RGB, 32x32, NCHW like the PyTorch module.
    x = jax.random.normal(k_x, (2, 3, 32, 32), jnp.float32)
    params = init_params(k_params)
    prep = prepare_params(params)

    logits = jax.block_until_ready(jax.jit(network_forward)(prep, x))
    assert logits.shape == (2, N_CLASSES), logits.shape
    assert bool(jnp.all(jnp.isfinite(logits)))

    ref = reference_forward(params, x)
    max_err = float(jnp.max(jnp.abs(logits - ref)))
    assert max_err < 0.1, f"mismatch vs pure-JAX reference: {max_err}"

    print("KERNEL_OK")
</pallas_src>

<mosaic_0001>
module attributes {stable_mosaic.version = 11 : i64} {
  func.func @_conv_stack_kernel(%arg0: i32, %arg1: memref<1x256x128xbf16, #tpu.memory_space<vmem>>, %arg2: memref<128x128xbf16, #tpu.memory_space<vmem>>, %arg3: memref<1x32xf32, #tpu.memory_space<vmem>>, %arg4: memref<3x192x128xbf16, #tpu.memory_space<vmem>>, %arg5: memref<1x64xf32, #tpu.memory_space<vmem>>, %arg6: memref<1x64x64xbf16, #tpu.memory_space<vmem>>) attributes {dimension_semantics = [#tpu.dimension_semantics<parallel>], iteration_bounds = array<i64: 2>, scalar_prefetch = 0 : i64, scratch_operands = 0 : i64, tpu.core_type = #tpu.core_type<tc>, window_params = [{transform_indices = @transform_0, window_bounds = array<i64: 1, 256, 128>}, {pipeline_mode = #tpu.pipeline_mode<synchronous>, transform_indices = @transform_1, window_bounds = array<i64: 128, 128>}, {pipeline_mode = #tpu.pipeline_mode<synchronous>, transform_indices = @transform_2, window_bounds = array<i64: 1, 32>}, {pipeline_mode = #tpu.pipeline_mode<synchronous>, transform_indices = @transform_3, window_bounds = array<i64: 3, 192, 128>}, {pipeline_mode = #tpu.pipeline_mode<synchronous>, transform_indices = @transform_4, window_bounds = array<i64: 1, 64>}, {transform_indices = @transform_5, window_bounds = array<i64: 1, 64, 64>}]} {
    %c0 = arith.constant 0 : index
    %c0_0 = arith.constant 0 : index
    %c0_1 = arith.constant 0 : index
    %0 = vector.load %arg1[%c0, %c0_0, %c0_1] : memref<1x256x128xbf16, #tpu.memory_space<vmem>>, vector<1x256x128xbf16>
    %1 = vector.shape_cast %0 : vector<1x256x128xbf16> to vector<256x128xbf16>
    %c0_2 = arith.constant 0 : index
    %c0_3 = arith.constant 0 : index
    %2 = vector.load %arg2[%c0_2, %c0_3] : memref<128x128xbf16, #tpu.memory_space<vmem>>, vector<128x128xbf16>
    %cst = arith.constant dense<0.000000e+00> : vector<256x128xf32>
    %3 = tpu.matmul %1, %2, %cst {dimension_numbers = #tpu.dot_dimension_numbers<[1], [0], [0], [1], [0, 0, 1, 1], [], []>} : vector<256x128xbf16>, vector<128x128xbf16>, vector<256x128xf32> -> vector<256x128xf32>
    %4 = vector.extract_strided_slice %3 {offsets = [0, 0], sizes = [256, 32], strides = [1, 1]} : vector<256x128xf32> to vector<256x32xf32>
    %5 = vector.extract_strided_slice %3 {offsets = [0, 32], sizes = [256, 32], strides = [1, 1]} : vector<256x128xf32> to vector<256x32xf32>
    %6 = arith.maximumf %4, %5 : vector<256x32xf32>
    %7 = vector.extract_strided_slice %3 {offsets = [0, 64], sizes = [256, 32], strides = [1, 1]} : vector<256x128xf32> to vector<256x32xf32>
    %8 = vector.extract_strided_slice %3 {offsets = [0, 96], sizes = [256, 32], strides = [1, 1]} : vector<256x128xf32> to vector<256x32xf32>
    %9 = arith.maximumf %7, %8 : vector<256x32xf32>
    %10 = arith.maximumf %6, %9 : vector<256x32xf32>
    %c0_4 = arith.constant 0 : index
    %c0_5 = arith.constant 0 : index
    %11 = vector.load %arg3[%c0_4, %c0_5] : memref<1x32xf32, #tpu.memory_space<vmem>>, vector<1x32xf32>
    %12 = vector.broadcast %11 : vector<1x32xf32> to vector<256x32xf32>
    %13 = arith.addf %10, %12 : vector<256x32xf32>
    %cst_6 = arith.constant 0.000000e+00 : f32
    %14 = vector.broadcast %cst_6 : f32 to vector<256x32xf32>
    %15 = arith.maximumf %13, %14 : vector<256x32xf32>
    %16 = vector.shape_cast %15 : vector<256x32xf32> to vector<1x2x8x2x8x32xf32>
    %17 = vector.extract_strided_slice %16 {offsets = [0, 0, 0, 0, 0, 0], sizes = [1, 1, 8, 1, 8, 32], strides = [1, 1, 1, 1, 1, 1]} : vector<1x2x8x2x8x32xf32> to vector<1x1x8x1x8x32xf32>
    %18 = vector.shape_cast %17 : vector<1x1x8x1x8x32xf32> to vector<1x8x8x32xf32>
    %19 = vector.extract_strided_slice %16 {offsets = [0, 0, 0, 1, 0, 0], sizes = [1, 1, 8, 1, 8, 32], strides = [1, 1, 1, 1, 1, 1]} : vector<1x2x8x2x8x32xf32> to vector<1x1x8x1x8x32xf32>
    %20 = vector.shape_cast %19 : vector<1x1x8x1x8x32xf32> to vector<1x8x8x32xf32>
    %21 = vector.extract_strided_slice %16 {offsets = [0, 1, 0, 0, 0, 0], sizes = [1, 1, 8, 1, 8, 32], strides = [1, 1, 1, 1, 1, 1]} : vector<1x2x8x2x8x32xf32> to vector<1x1x8x1x8x32xf32>
    %22 = vector.shape_cast %21 : vector<1x1x8x1x8x32xf32> to vector<1x8x8x32xf32>
    %23 = vector.extract_strided_slice %16 {offsets = [0, 1, 0, 1, 0, 0], sizes = [1, 1, 8, 1, 8, 32], strides = [1, 1, 1, 1, 1, 1]} : vector<1x2x8x2x8x32xf32> to vector<1x1x8x1x8x32xf32>
    %24 = vector.shape_cast %23 : vector<1x1x8x1x8x32xf32> to vector<1x8x8x32xf32>
    %cst_7 = arith.constant 0.000000e+00 : f32
    %25 = vector.broadcast %cst_7 : f32 to vector<1x1x8x32xf32>
    %cst_8 = arith.constant 0.000000e+00 : f32
    %26 = vector.broadcast %cst_8 : f32 to vector<1x9x1x32xf32>
    %27 = tpu.concatenate %25, %22 in 1 : vector<1x1x8x32xf32>, vector<1x8x8x32xf32> -> vector<1x9x8x32xf32>
    %28 = tpu.concatenate %25, %24 in 1 : vector<1x1x8x32xf32>, vector<1x8x8x32xf32> -> vector<1x9x8x32xf32>
    %29 = vector.extract_strided_slice %28 {offsets = [0, 0, 0, 0], sizes = [1, 9, 7, 32], strides = [1, 1, 1, 1]} : vector<1x9x8x32xf32> to vector<1x9x7x32xf32>
    %30 = tpu.concatenate %26, %29 in 2 : vector<1x9x1x32xf32>, vector<1x9x7x32xf32> -> vector<1x9x8x32xf32>
    %31 = vector.extract_strided_slice %27 {offsets = [0, 0, 1, 0], sizes = [1, 9, 7, 32], strides = [1, 1, 1, 1]} : vector<1x9x8x32xf32> to vector<1x9x7x32xf32>
    %32 = tpu.concatenate %31, %26 in 2 : vector<1x9x7x32xf32>, vector<1x9x1x32xf32> -> vector<1x9x8x32xf32>
    %33 = tpu.concatenate %30, %27, %28, %27, %28, %32 in 3 : vector<1x9x8x32xf32>, vector<1x9x8x32xf32>, vector<1x9x8x32xf32>, vector<1x9x8x32xf32>, vector<1x9x8x32xf32>, vector<1x9x8x32xf32> -> vector<1x9x8x192xf32>
    %34 = tpu.concatenate %18, %25 in 1 : vector<1x8x8x32xf32>, vector<1x1x8x32xf32> -> vector<1x9x8x32xf32>
    %35 = tpu.concatenate %20, %25 in 1 : vector<1x8x8x32xf32>, vector<1x1x8x32xf32> -> vector<1x9x8x32xf32>
    %36 = vector.extract_strided_slice %35 {offsets = [0, 0, 0, 0], sizes = [1, 9, 7, 32], strides = [1, 1, 1, 1]} : vector<1x9x8x32xf32> to vector<1x9x7x32xf32>
    %37 = tpu.concatenate %26, %36 in 2 : vector<1x9x1x32xf32>, vector<1x9x7x32xf32> -> vector<1x9x8x32xf32>
    %38 = vector.extract_strided_slice %34 {offsets = [0, 0, 1, 0], sizes = [1, 9, 7, 32], strides = [1, 1, 1, 1]} : vector<1x9x8x32xf32> to vector<1x9x7x32xf32>
    %39 = tpu.concatenate %38, %26 in 2 : vector<1x9x7x32xf32>, vector<1x9x1x32xf32> -> vector<1x9x8x32xf32>
    %40 = tpu.concatenate %37, %34, %35, %34, %35, %39 in 3 : vector<1x9x8x32xf32>, vector<1x9x8x32xf32>, vector<1x9x8x32xf32>, vector<1x9x8x32xf32>, vector<1x9x8x32xf32>, vector<1x9x8x32xf32> -> vector<1x9x8x192xf32>
    %cst_9 = arith.constant 0.000000e+00 : f32
    %41 = vector.broadcast %cst_9 : f32 to vector<64x128xf32>
    %42 = vector.extract_strided_slice %33 {offsets = [0, 0, 0, 0], sizes = [1, 8, 8, 192], strides = [1, 1, 1, 1]} : vector<1x9x8x192xf32> to vector<1x8x8x192xf32>
    %43 = vector.shape_cast %42 : vector<1x8x8x192xf32> to vector<64x192xf32>
    %44 = arith.truncf %43 : vector<64x192xf32> to vector<64x192xbf16>
    %c0_10 = arith.constant 0 : index
    %c0_11 = arith.constant 0 : index
    %c0_12 = arith.constant 0 : index
    %45 = vector.load %arg4[%c0_10, %c0_11, %c0_12] : memref<3x192x128xbf16, #tpu.memory_space<vmem>>, vector<1x192x128xbf16>
    %46 = vector.shape_cast %45 : vector<1x192x128xbf16> to vector<192x128xbf16>
    %cst_13 = arith.constant dense<0.000000e+00> : vector<64x128xf32>
    %47 = tpu.matmul %44, %46, %cst_13 {dimension_numbers = #tpu.dot_dimension_numbers<[1], [0], [0], [1], [0, 0, 1, 1], [], []>} : vector<64x192xbf16>, vector<192x128xbf16>, vector<64x128xf32> -> vector<64x128xf32>
    %48 = arith.addf %41, %47 : vector<64x128xf32>
    %49 = vector.extract_strided_slice %40 {offsets = [0, 0, 0, 0], sizes = [1, 8, 8, 192], strides = [1, 1, 1, 1]} : vector<1x9x8x192xf32> to vector<1x8x8x192xf32>
    %50 = vector.shape_cast %49 : vector<1x8x8x192xf32> to vector<64x192xf32>
    %51 = arith.truncf %50 : vector<64x192xf32> to vector<64x192xbf16>
    %c1 = arith.constant 1 : index
    %c0_14 = arith.constant 0 : index
    %c0_15 = arith.constant 0 : index
    %52 = vector.load %arg4[%c1, %c0_14, %c0_15] : memref<3x192x128xbf16, #tpu.memory_space<vmem>>, vector<1x192x128xbf16>
    %53 = vector.shape_cast %52 : vector<1x192x128xbf16> to vector<192x128xbf16>
    %cst_16 = arith.constant dense<0.000000e+00> : vector<64x128xf32>
    %54 = tpu.matmul %51, %53, %cst_16 {dimension_numbers = #tpu.dot_dimension_numbers<[1], [0], [0], [1], [0, 0, 1, 1], [], []>} : vector<64x192xbf16>, vector<192x128xbf16>, vector<64x128xf32> -> vector<64x128xf32>
    %55 = arith.addf %48, %54 : vector<64x128xf32>
    %56 = vector.extract_strided_slice %33 {offsets = [0, 1, 0, 0], sizes = [1, 8, 8, 192], strides = [1, 1, 1, 1]} : vector<1x9x8x192xf32> to vector<1x8x8x192xf32>
    %57 = vector.shape_cast %56 : vector<1x8x8x192xf32> to vector<64x192xf32>
    %58 = arith.truncf %57 : vector<64x192xf32> to vector<64x192xbf16>
    %c2 = arith.constant 2 : index
    %c0_17 = arith.constant 0 : index
    %c0_18 = arith.constant 0 : index
    %59 = vector.load %arg4[%c2, %c0_17, %c0_18] : memref<3x192x128xbf16, #tpu.memory_space<vmem>>, vector<1x192x128xbf16>
    %60 = vector.shape_cast %59 : vector<1x192x128xbf16> to vector<192x128xbf16>
    %cst_19 = arith.constant dense<0.000000e+00> : vector<64x128xf32>
    %61 = tpu.matmul %58, %60, %cst_19 {dimension_numbers = #tpu.dot_dimension_numbers<[1], [0], [0], [1], [0, 0, 1, 1], [], []>} : vector<64x192xbf16>, vector<192x128xbf16>, vector<64x128xf32> -> vector<64x128xf32>
    %62 = arith.addf %55, %61 : vector<64x128xf32>
    %cst_20 = arith.constant 0.000000e+00 : f32
    %63 = vector.broadcast %cst_20 : f32 to vector<64x128xf32>
    %64 = vector.extract_strided_slice %40 {offsets = [0, 0, 0, 0], sizes = [1, 8, 8, 192], strides = [1, 1, 1, 1]} : vector<1x9x8x192xf32> to vector<1x8x8x192xf32>
    %65 = vector.shape_cast %64 : vector<1x8x8x192xf32> to vector<64x192xf32>
    %66 = arith.truncf %65 : vector<64x192xf32> to vector<64x192xbf16>
    %c0_21 = arith.constant 0 : index
    %c0_22 = arith.constant 0 : index
    %c0_23 = arith.constant 0 : index
    %67 = vector.load %arg4[%c0_21, %c0_22, %c0_23] : memref<3x192x128xbf16, #tpu.memory_space<vmem>>, vector<1x192x128xbf16>
    %68 = vector.shape_cast %67 : vector<1x192x128xbf16> to vector<192x128xbf16>
    %cst_24 = arith.constant dense<0.000000e+00> : vector<64x128xf32>
    %69 = tpu.matmul %66, %68, %cst_24 {dimension_numbers = #tpu.dot_dimension_numbers<[1], [0], [0], [1], [0, 0, 1, 1], [], []>} : vector<64x192xbf16>, vector<192x128xbf16>, vector<64x128xf32> -> vector<64x128xf32>
    %70 = arith.addf %63, %69 : vector<64x128xf32>
    %71 = vector.extract_strided_slice %33 {offsets = [0, 1, 0, 0], sizes = [1, 8, 8, 192], strides = [1, 1, 1, 1]} : vector<1x9x8x192xf32> to vector<1x8x8x192xf32>
    %72 = vector.shape_cast %71 : vector<1x8x8x192xf32> to vector<64x192xf32>
    %73 = arith.truncf %72 : vector<64x192xf32> to vector<64x192xbf16>
    %c1_25 = arith.constant 1 : index
    %c0_26 = arith.constant 0 : index
    %c0_27 = arith.constant 0 : index
    %74 = vector.load %arg4[%c1_25, %c0_26, %c0_27] : memref<3x192x128xbf16, #tpu.memory_space<vmem>>, vector<1x192x128xbf16>
    %75 = vector.shape_cast %74 : vector<1x192x128xbf16> to vector<192x128xbf16>
    %cst_28 = arith.constant dense<0.000000e+00> : vector<64x128xf32>
    %76 = tpu.matmul %73, %75, %cst_28 {dimension_numbers = #tpu.dot_dimension_numbers<[1], [0], [0], [1], [0, 0, 1, 1], [], []>} : vector<64x192xbf16>, vector<192x128xbf16>, vector<64x128xf32> -> vector<64x128xf32>
    %77 = arith.addf %70, %76 : vector<64x128xf32>
    %78 = vector.extract_strided_slice %40 {offsets = [0, 1, 0, 0], sizes = [1, 8, 8, 192], strides = [1, 1, 1, 1]} : vector<1x9x8x192xf32> to vector<1x8x8x192xf32>
    %79 = vector.shape_cast %78 : vector<1x8x8x192xf32> to vector<64x192xf32>
    %80 = arith.truncf %79 : vector<64x192xf32> to vector<64x192xbf16>
    %c2_29 = arith.constant 2 : index
    %c0_30 = arith.constant 0 : index
    %c0_31 = arith.constant 0 : index
    %81 = vector.load %arg4[%c2_29, %c0_30, %c0_31] : memref<3x192x128xbf16, #tpu.memory_space<vmem>>, vector<1x192x128xbf16>
    %82 = vector.shape_cast %81 : vector<1x192x128xbf16> to vector<192x128xbf16>
    %cst_32 = arith.constant dense<0.000000e+00> : vector<64x128xf32>
    %83 = tpu.matmul %80, %82, %cst_32 {dimension_numbers = #tpu.dot_dimension_numbers<[1], [0], [0], [1], [0, 0, 1, 1], [], []>} : vector<64x192xbf16>, vector<192x128xbf16>, vector<64x128xf32> -> vector<64x128xf32>
    %84 = arith.addf %77, %83 : vector<64x128xf32>
    %85 = arith.maximumf %62, %84 : vector<64x128xf32>
    %86 = vector.extract_strided_slice %85 {offsets = [0, 0], sizes = [64, 64], strides = [1, 1]} : vector<64x128xf32> to vector<64x64xf32>
    %87 = vector.extract_strided_slice %85 {offsets = [0, 64], sizes = [64, 64], strides = [1, 1]} : vector<64x128xf32> to vector<64x64xf32>
    %88 = arith.maximumf %86, %87 : vector<64x64xf32>
    %c0_33 = arith.constant 0 : index
    %c0_34 = arith.constant 0 : index
    %89 = vector.load %arg5[%c0_33, %c0_34] : memref<1x64xf32, #tpu.memory_space<vmem>>, vector<1x64xf32>
    %90 = vector.broadcast %89 : vector<1x64xf32> to vector<64x64xf32>
    %91 = arith.addf %88, %90 : vector<64x64xf32>
    %cst_35 = arith.constant 0.000000e+00 : f32
    %92 = vector.broadcast %cst_35 : f32 to vector<64x64xf32>
    %93 = arith.maximumf %91, %92 : vector<64x64xf32>
    %94 = vector.shape_cast %93 : vector<64x64xf32> to vector<1x64x64xf32>
    %95 = arith.truncf %94 : vector<1x64x64xf32> to vector<1x64x64xbf16>
    %c0_36 = arith.constant 0 : index
    %c0_37 = arith.constant 0 : index
    %c0_38 = arith.constant 0 : index
    %96 = vector.load %arg6[%c0_36, %c0_37, %c0_38] : memref<1x64x64xbf16, #tpu.memory_space<vmem>>, vector<1x64x64xbf16>
    tpu.vector_store %arg6[%c0_36, %c0_37, %c0_38], %95 {strides = array<i32>} : memref<1x64x64xbf16, #tpu.memory_space<vmem>>, vector<1x64x64xbf16>,
    return
  }
  func.func @transform_0(%arg0: i32) -> (i32, i32, i32) {
    %c0_i32 = arith.constant 0 : i32
    %c0_i32_0 = arith.constant 0 : i32
    %c0_i32_1 = arith.constant 0 : i32
    return %arg0, %c0_i32, %c0_i32_0 : i32, i32, i32
  }
  func.func @transform_1(%arg0: i32) -> (i32, i32) {
    %c0_i32 = arith.constant 0 : i32
    %c0_i32_0 = arith.constant 0 : i32
    %c0_i32_1 = arith.constant 0 : i32
    return %c0_i32, %c0_i32_0 : i32, i32
  }
  func.func @transform_2(%arg0: i32) -> (i32, i32) {
    %c0_i32 = arith.constant 0 : i32
    %c0_i32_0 = arith.constant 0 : i32
    %c0_i32_1 = arith.constant 0 : i32
    return %c0_i32, %c0_i32_0 : i32, i32
  }
  func.func @transform_3(%arg0: i32) -> (i32, i32, i32) {
    %c0_i32 = arith.constant 0 : i32
    %c0_i32_0 = arith.constant 0 : i32
    %c0_i32_1 = arith.constant 0 : i32
    %c0_i32_2 = arith.constant 0 : i32
    return %c0_i32, %c0_i32_0, %c0_i32_1 : i32, i32, i32
  }
  func.func @transform_4(%arg0: i32) -> (i32, i32) {
    %c0_i32 = arith.constant 0 : i32
    %c0_i32_0 = arith.constant 0 : i32
    %c0_i32_1 = arith.constant 0 : i32
    return %c0_i32, %c0_i32_0 : i32, i32
  }
  func.func @transform_5(%arg0: i32) -> (i32, i32, i32) {
    %c0_i32 = arith.constant 0 : i32
    %c0_i32_0 = arith.constant 0 : i32
    %c0_i32_1 = arith.constant 0 : i32
    return %arg0, %c0_i32, %c0_i32_0 : i32, i32, i32
  }
}

module attributes {stable_mosaic.version = 11 : i64} {
  func.func @_mlp_kernel(%arg0: i32, %arg1: memref<2x4096xbf16, #tpu.memory_space<vmem>>, %arg2: memref<4096x128xbf16, #tpu.memory_space<vmem>>, %arg3: memref<1x128xf32, #tpu.memory_space<vmem>>, %arg4: memref<128x128xbf16, #tpu.memory_space<vmem>>, %arg5: memref<1x128xf32, #tpu.memory_space<vmem>>, %arg6: memref<2x128xf32, #tpu.memory_space<vmem>>) attributes {dimension_semantics = [#tpu.dimension_semantics<parallel>], iteration_bounds = array<i64: 1>, scalar_prefetch = 0 : i64, scratch_operands = 0 : i64, tpu.core_type = #tpu.core_type<tc>, window_params = [{transform_indices = @transform_0, window_bounds = array<i64: 2, 4096>}, {pipeline_mode = #tpu.pipeline_mode<synchronous>, transform_indices = @transform_1, window_bounds = array<i64: 4096, 128>}, {pipeline_mode = #tpu.pipeline_mode<synchronous>, transform_indices = @transform_2, window_bounds = array<i64: 1, 128>}, {pipeline_mode = #tpu.pipeline_mode<synchronous>, transform_indices = @transform_3, window_bounds = array<i64: 128, 128>}, {pipeline_mode = #tpu.pipeline_mode<synchronous>, transform_indices = @transform_4, window_bounds = array<i64: 1, 128>}, {transform_indices = @transform_5, window_bounds = array<i64: 2, 128>}]} {
    %c0 = arith.constant 0 : index
    %c0_0 = arith.constant 0 : index
    %0 = vector.load %arg1[%c0, %c0_0] : memref<2x4096xbf16, #tpu.memory_space<vmem>>, vector<2x4096xbf16>
    %c0_1 = arith.constant 0 : index
    %c0_2 = arith.constant 0 : index
    %1 = vector.load %arg2[%c0_1, %c0_2] : memref<4096x128xbf16, #tpu.memory_space<vmem>>, vector<4096x128xbf16>
    %cst = arith.constant dense<0.000000e+00> : vector<2x128xf32>
    %2 = tpu.matmul %0, %1, %cst {dimension_numbers = #tpu.dot_dimension_numbers<[1], [0], [0], [1], [0, 0, 1, 1], [], []>} : vector<2x4096xbf16>, vector<4096x128xbf16>, vector<2x128xf32> -> vector<2x128xf32>
    %c0_3 = arith.constant 0 : index
    %c0_4 = arith.constant 0 : index
    %3 = vector.load %arg3[%c0_3, %c0_4] : memref<1x128xf32, #tpu.memory_space<vmem>>, vector<1x128xf32>
    %4 = vector.broadcast %3 : vector<1x128xf32> to vector<2x128xf32>
    %5 = arith.addf %2, %4 : vector<2x128xf32>
    %cst_5 = arith.constant 0.000000e+00 : f32
    %6 = vector.broadcast %cst_5 : f32 to vector<2x128xf32>
    %7 = arith.maximumf %5, %6 : vector<2x128xf32>
    %8 = arith.truncf %7 : vector<2x128xf32> to vector<2x128xbf16>
    %c0_6 = arith.constant 0 : index
    %c0_7 = arith.constant 0 : index
    %9 = vector.load %arg4[%c0_6, %c0_7] : memref<128x128xbf16, #tpu.memory_space<vmem>>, vector<128x128xbf16>
    %cst_8 = arith.constant dense<0.000000e+00> : vector<2x128xf32>
    %10 = tpu.matmul %8, %9, %cst_8 {dimension_numbers = #tpu.dot_dimension_numbers<[1], [0], [0], [1], [0, 0, 1, 1], [], []>} : vector<2x128xbf16>, vector<128x128xbf16>, vector<2x128xf32> -> vector<2x128xf32>
    %c0_9 = arith.constant 0 : index
    %c0_10 = arith.constant 0 : index
    %11 = vector.load %arg5[%c0_9, %c0_10] : memref<1x128xf32, #tpu.memory_space<vmem>>, vector<1x128xf32>
    %12 = vector.broadcast %11 : vector<1x128xf32> to vector<2x128xf32>
    %13 = arith.addf %10, %12 : vector<2x128xf32>
    %c0_11 = arith.constant 0 : index
    %c0_12 = arith.constant 0 : index
    %14 = vector.load %arg6[%c0_11, %c0_12] : memref<2x128xf32, #tpu.memory_space<vmem>>, vector<2x128xf32>
    tpu.vector_store %arg6[%c0_11, %c0_12], %13 {strides = array<i32>} : memref<2x128xf32, #tpu.memory_space<vmem>>, vector<2x128xf32>,
    return
  }
  func.func @transform_0(%arg0: i32) -> (i32, i32) {
    %c0_i32 = arith.constant 0 : i32
    %c0_i32_0 = arith.constant 0 : i32
    return %arg0, %c0_i32 : i32, i32
  }
  func.func @transform_1(%arg0: i32) -> (i32, i32) {
    %c0_i32 = arith.constant 0 : i32
    %c0_i32_0 = arith.constant 0 : i32
    %c0_i32_1 = arith.constant 0 : i32
    return %c0_i32, %c0_i32_0 : i32, i32
  }
  func.func @transform_2(%arg0: i32) -> (i32, i32) {
    %c0_i32 = arith.constant 0 : i32
    %c0_i32_0 = arith.constant 0 : i32
    %c0_i32_1 = arith.constant 0 : i32
    return %c0_i32, %c0_i32_0 : i32, i32
  }
  func.func @transform_3(%arg0: i32) -> (i32, i32) {
    %c0_i32 = arith.constant 0 : i32
    %c0_i32_0 = arith.constant 0 : i32
    %c0_i32_1 = arith.constant 0 : i32
    return %c0_i32, %c0_i32_0 : i32, i32
  }
  func.func @transform_4(%arg0: i32) -> (i32, i32) {
    %c0_i32 = arith.constant 0 : i32
    %c0_i32_0 = arith.constant 0 : i32
    %c0_i32_1 = arith.constant 0 : i32
    return %c0_i32, %c0_i32_0 : i32, i32
  }
  func.func @transform_5(%arg0: i32) -> (i32, i32) {
    %c0_i32 = arith.constant 0 : i32
    %c0_i32_0 = arith.constant 0 : i32
    return %arg0, %c0_i32 : i32, i32
  }
}

</mosaic_0001>

<llo_original>
// kernel: network_forward.2
$region0: #{network_forward.2}
  #allocation0 [shape = 'u32[]', space=smem, size = 0x4, offset = 0x4, fixed_abs, tag = 'smem constant byte address 0x4 - core index']
  #allocation1 [shape = 'u32[144,128]{1,0:T(1,128)}', space=vmem, size = 0x12000, scoped, tag = 'internal scratch']
  %s0 = inlined_call_operand.vmem [shape: bf16[2,256,128], index: 0, kind: input, shape index: {}]
  %s1 = inlined_call_operand.vmem [shape: bf16[128,128], index: 1, kind: input, shape index: {}]
  %s2 = inlined_call_operand.vmem [shape: f32[1,32], index: 2, kind: input, shape index: {}]
  %s3 = inlined_call_operand.vmem [shape: bf16[3,192,128], index: 3, kind: input, shape index: {}]
  %s4 = inlined_call_operand.vmem [shape: f32[1,64], index: 4, kind: input, shape index: {}]
  %s5 = inlined_call_operand.vmem [shape: bf16[2,64,64], index: 5, kind: output, shape index: {}]
  %s6 = sld [smem:[#allocation0]]
  $region53: #{network_forward.2} parent=0
    _
  %s8 = ssub.s32 1, %s6
  %s9 = scalar_select 0, %s8, %s6
  loop: start=0, step=1, limit=4
  $region2: #{network_forward.2} parent=0 // loop_pre_header
    _
  $region3: #{network_forward.2} parent=0 // loop_header
    %s11 = sphi 0, %s15
    %p12 = scmp.ge.s32.totalorder %s11, 4
    %s21 = sphi 0, %s23
    %s24 = sphi 0, %s21
    %s25 = sphi 0, %s24
    %s41 = sphi 0, %s25
    %s45 = sphi 0, %s45
    %s47 = sphi 0, %s45
    %s48 = sphi 0, %s47
    %s62 = sphi 0, %s48
    %s66 = sphi 0, %s66
    %s68 = sphi 0, %s66
    %s69 = sphi 0, %s68
    %s83 = sphi 0, %s69
    %s87 = sphi 0, %s87
    %s89 = sphi 0, %s87
    %s90 = sphi 0, %s89
    %s104 = sphi 0, %s90
    %s108 = sphi 0, %s108
    %s110 = sphi 0, %s108
    %s111 = sphi 0, %s110
    %s125 = sphi 0, %s111
    %s131 = sphi 0, %s133
    %s134 = sphi 0, %s131
    %s135 = sphi 0, %s134
    %s151 = sphi 0, %s135
  $region4: #{network_forward.2} parent=0 // loop_header_branch
    %14 = sbr.rel (%p12) target = $region8
  $region5: #{network_forward.2} parent=0 // loop_body
    %s16 = ssub.s32 %s11, 1
    %s17 = ssub.s32 %s11, 2
    %s18 = sadd.s32 %s11, 1
    %s19 = ssub.s32 %s11, %s18
    %p20 = scmp.eq.s32.totalorder %s19, 0
    %s22 = sadd.s32 %s21, 1
    %s23 = scalar_select %p20, %s21, %s22
    %p26 = pneg %p20
    %p27 = scmp.eq.s32.totalorder %s11, 1
    %p28 = por %p26, %p27
    %p29 = scmp.ne.s32.totalorder %s21, %s24
    %p30 = scmp.eq.s32.totalorder %s11, 0
    %p31 = por %p29, %p30
    %p32 = scmp.ne.s32.totalorder %s21, %s24
    %p33 = scmp.eq.s32.totalorder %s16, 1
    %p34 = por %p32, %p33
    %p35 = scmp.ne.s32.totalorder %s24, %s25
    %p36 = scmp.eq.s32.totalorder %s16, 0
    %p37 = por %p35, %p36
    %p38 = scmp.ne.s32.totalorder %s24, %s25
    %p39 = scmp.eq.s32.totalorder %s17, 1
    %p40 = por %p38, %p39
    %p42 = scmp.ne.s32.totalorder %s25, %s41
    %p43 = scmp.eq.s32.totalorder %s17, 0
    %p44 = por %p42, %p43
    %s46 = sadd.s32 %s45, 1
    %p49 = scmp.eq.s32.totalorder %s11, 1
    %p50 = scmp.ne.s32.totalorder %s45, %s47
    %p51 = scmp.eq.s32.totalorder %s11, 0
    %p52 = por %p50, %p51
    %p53 = scmp.ne.s32.totalorder %s45, %s47
    %p54 = scmp.eq.s32.totalorder %s16, 1
    %p55 = por %p53, %p54
    %p56 = scmp.ne.s32.totalorder %s47, %s48
    %p57 = scmp.eq.s32.totalorder %s16, 0
    %p58 = por %p56, %p57
    %p59 = scmp.ne.s32.totalorder %s47, %s48
    %p60 = scmp.eq.s32.totalorder %s17, 1
    %p61 = por %p59, %p60
    %p63 = scmp.ne.s32.totalorder %s48, %s62
    %p64 = scmp.eq.s32.totalorder %s17, 0
    %p65 = por %p63, %p64
    %s67 = sadd.s32 %s66, 1
    %p70 = scmp.eq.s32.totalorder %s11, 1
    %p71 = scmp.ne.s32.totalorder %s66, %s68
    %p72 = scmp.eq.s32.totalorder %s11, 0
    %p73 = por %p71, %p72
    %p74 = scmp.ne.s32.totalorder %s66, %s68
    %p75 = scmp.eq.s32.totalorder %s16, 1
    %p76 = por %p74, %p75
    %p77 = scmp.ne.s32.totalorder %s68, %s69
    %p78 = scmp.eq.s32.totalorder %s16, 0
    %p79 = por %p77, %p78
    %p80 = scmp.ne.s32.totalorder %s68, %s69
    %p81 = scmp.eq.s32.totalorder %s17, 1
    %p82 = por %p80, %p81
    %p84 = scmp.ne.s32.totalorder %s69, %s83
    %p85 = scmp.eq.s32.totalorder %s17, 0
    %p86 = por %p84, %p85
    %s88 = sadd.s32 %s87, 1
    %p91 = scmp.eq.s32.totalorder %s11, 1
    %p92 = scmp.ne.s32.totalorder %s87, %s89
    %p93 = scmp.eq.s32.totalorder %s11, 0
    %p94 = por %p92, %p93
    %p95 = scmp.ne.s32.totalorder %s87, %s89
    %p96 = scmp.eq.s32.totalorder %s16, 1
    %p97 = por %p95, %p96
    %p98 = scmp.ne.s32.totalorder %s89, %s90
    %p99 = scmp.eq.s32.totalorder %s16, 0
    %p100 = por %p98, %p99
    %p101 = scmp.ne.s32.totalorder %s89, %s90
    %p102 = scmp.eq.s32.totalorder %s17, 1
    %p103 = por %p101, %p102
    %p105 = scmp.ne.s32.totalorder %s90, %s104
    %p106 = scmp.eq.s32.totalorder %s17, 0
    %p107 = por %p105, %p106
    %s109 = sadd.s32 %s108, 1
    %p112 = scmp.eq.s32.totalorder %s11, 1
    %p113 = scmp.ne.s32.totalorder %s108, %s110
    %p114 = scmp.eq.s32.totalorder %s11, 0
    %p115 = por %p113, %p114
    %p116 = scmp.ne.s32.totalorder %s108, %s110
    %p117 = scmp.eq.s32.totalorder %s16, 1
    %p118 = por %p116, %p117
    %p119 = scmp.ne.s32.totalorder %s110, %s111
    %p120 = scmp.eq.s32.totalorder %s16, 0
    %p121 = por %p119, %p120
    %p122 = scmp.ne.s32.totalorder %s110, %s111
    %p123 = scmp.eq.s32.totalorder %s17, 1
    %p124 = por %p122, %p123
    %p126 = scmp.ne.s32.totalorder %s111, %s125
    %p127 = scmp.eq.s32.totalorder %s17, 0
    %p128 = por %p126, %p127
    %s129 = ssub.s32 %s11, %s18
    %p130 = scmp.eq.s32.totalorder %s129, 0
    %s132 = sadd.s32 %s131, 1
    %s133 = scalar_select %p130, %s131, %s132
    %p136 = pneg %p130
    %p137 = scmp.eq.s32.totalorder %s11, 1
    %p138 = por %p136, %p137
    %p139 = scmp.ne.s32.totalorder %s131, %s134
    %p140 = scmp.eq.s32.totalorder %s11, 0
    %p141 = por %p139, %p140
    %p142 = scmp.ne.s32.totalorder %s131, %s134
    %p143 = scmp.eq.s32.totalorder %s16, 1
    %p144 = por %p142, %p143
    %p145 = scmp.ne.s32.totalorder %s134, %s135
    %p146 = scmp.eq.s32.totalorder %s16, 0
    %p147 = por %p145, %p146
    %p148 = scmp.ne.s32.totalorder %s134, %s135
    %p149 = scmp.eq.s32.totalorder %s17, 1
    %p150 = por %p148, %p149
    %p152 = scmp.ne.s32.totalorder %s135, %s151
    %p153 = scmp.eq.s32.totalorder %s17, 0
    %p154 = por %p152, %p153
    %p155 = scmp.le.s32.totalorder 1, %s11
    %p156 = scmp.lt.s32.totalorder %s11, 3
    %p157 = pnand %p155, %p156
    %p158 = pneg %p157
    // Predicated region
    $region9: #{network_forward.2} parent=5 // pred_check
      _
    $region10: #{network_forward.2} parent=5 // pred_check_branch
      %160 = sbr.rel (%p157) target = $region12
    $region11: #{network_forward.2} parent=5 // pred_region
      %s161 = ssub.s32 %s11, 1
      // Predicated region
      $region13: #{network_forward.2} parent=11 // pred_check
        %p162 = pneg %p58
      $region14: #{network_forward.2} parent=11 // pred_check_branch
        %164 = sbr.rel (%p162) target = $region16
      $region15: #{network_forward.2} parent=11 // pred_region
        _
      $region16: #{network_forward.2} parent=11 // pred_fallthru
        _
      // Predicated region
      $region17: #{network_forward.2} parent=11 // pred_check
        %p165 = pneg %p79
      $region18: #{network_forward.2} parent=11 // pred_check_branch
        %167 = sbr.rel (%p165) target = $region20
      $region19: #{network_forward.2} parent=11 // pred_region
        _
      $region20: #{network_forward.2} parent=11 // pred_fallthru
        _
      // Predicated region
      $region21: #{network_forward.2} parent=11 // pred_check
        %p168 = pneg %p100
      $region22: #{network_forward.2} parent=11 // pred_check_branch
        %170 = sbr.rel (%p168) target = $region24
      $region23: #{network_forward.2} parent=11 // pred_region
        _
      $region24: #{network_forward.2} parent=11 // pred_fallthru
        _
      // Predicated region
      $region25: #{network_forward.2} parent=11 // pred_check
        %p171 = pneg %p121
      $region26: #{network_forward.2} parent=11 // pred_check_branch
        %173 = sbr.rel (%p171) target = $region28
      $region27: #{network_forward.2} parent=11 // pred_region
        _
      $region28: #{network_forward.2} parent=11 // pred_fallthru
        _
    $region12: #{network_forward.2} parent=5 // pred_fallthru
      _
    %p174 = scmp.lt.s32.totalorder %s11, 2
    // Predicated region
    $region29: #{network_forward.2} parent=5 // pred_check
      %p175 = pneg %p174
    $region30: #{network_forward.2} parent=5 // pred_check_branch
      %177 = sbr.rel (%p175) target = $region32
    $region31: #{network_forward.2} parent=5 // pred_region
      // Predicated region
      $region33: #{network_forward.2} parent=31 // pred_check
        %p178 = pneg %p31
      $region34: #{network_forward.2} parent=31 // pred_check_branch
        %180 = sbr.rel (%p178) target = $region36
      $region35: #{network_forward.2} parent=31 // pred_region
        %p181 = scmp.lt.s32.totalorder %s11, 1
        %s182 = scalar_select %p181, %s11, 1
        %s183 = smul.addr %s182, 32
        %s184 = smul.addr %s183, 4
        %s185 = scalar_lea.vmem %s0, %s184
      $region36: #{network_forward.2} parent=31 // pred_fallthru
        _
    $region32: #{network_forward.2} parent=5 // pred_fallthru
      _
    %p186 = scmp.le.s32.totalorder 1, %s11
    %p187 = scmp.lt.s32.totalorder %s11, 3
    %p188 = pnand %p186, %p187
    %p189 = pneg %p188
    // Predicated region
    $region37: #{network_forward.2} parent=5 // pred_check
      _
    $region38: #{network_forward.2} parent=5 // pred_check_branch
      %191 = sbr.rel (%p188) target = $region40
    $region39: #{network_forward.2} parent=5 // pred_region
      %s192 = ssub.s32 %s11, 1
      %p193 = scmp.lt.s32.totalorder %s16, 1
      %s194 = scalar_select %p193, %s16, 1
      %s195 = smul.addr %s194, 32
      %s196 = smul.addr %s195, 4
      %s197 = scalar_lea.vmem %s0, %s196
      %p198 = pneg %p37
      %p199 = pneg %p34
      %p200 = pneg %p58
      %p201 = pneg %p55
      %p202 = pneg %p79
      %p203 = pneg %p76
      %p204 = pneg %p100
      %p205 = pneg %p97
      %p206 = pneg %p121
      %p207 = pneg %p118
      %p208 = pneg %p147
      %p209 = pneg %p144
      %p210 = scmp.lt.s32.totalorder %s16, 1
      %s211 = scalar_select %p210, %s16, 1
      %s212 = smul.addr %s211, 8
      %s213 = smul.addr %s212, 4
      %s214 = scalar_lea.vmem %s5, %s213
      %p215 = scmp.lt.s32.totalorder %s16, 1
      %s216 = scalar_select %p215, %s16, 1
      %s217 = smul.addr %s216, 32
      %s218 = smul.addr %s217, 4
      %s219 = scalar_lea.vmem %s0, %s218
      %p220 = scmp.lt.s32.totalorder %s16, 1
      %s221 = scalar_select %p220, %s16, 1
      %s222 = smul.addr %s221, 8
      %s223 = smul.addr %s222, 4
      %s224 = scalar_lea.vmem %s5, %s223
      %v226 = vld [vmem:[%s219] sm:$0xf]
      %v227 = vld [vmem:[%s219 + $0x4] sm:$0xf]
      %v228 = vld [vmem:[%s219 + $0x8] sm:$0xf]
      %v229 = vld [vmem:[%s219 + $0xc] sm:$0xf]
      %v230 = vld [vmem:[%s219 + $0x10] sm:$0xf]
      %v231 = vld [vmem:[%s219 + $0x14] sm:$0xf]
      %v232 = vld [vmem:[%s219 + $0x18] sm:$0xf]
      %v233 = vld [vmem:[%s219 + $0x1c] sm:$0xf]
      %v234 = vld [vmem:[%s219 + $0x20] sm:$0xf]
      %v235 = vld [vmem:[%s219 + $0x24] sm:$0xf]
      %v236 = vld [vmem:[%s219 + $0x28] sm:$0xf]
      %v237 = vld [vmem:[%s219 + $0x2c] sm:$0xf]
      %v238 = vld [vmem:[%s219 + $0x30] sm:$0xf]
      %v239 = vld [vmem:[%s219 + $0x34] sm:$0xf]
      %v240 = vld [vmem:[%s219 + $0x38] sm:$0xf]
      %v241 = vld [vmem:[%s219 + $0x3c] sm:$0xf]
      %v242 = vld [vmem:[%s219 + $0x40] sm:$0xf]
      %v243 = vld [vmem:[%s219 + $0x44] sm:$0xf]
      %v244 = vld [vmem:[%s219 + $0x48] sm:$0xf]
      %v245 = vld [vmem:[%s219 + $0x4c] sm:$0xf]
      %v246 = vld [vmem:[%s219 + $0x50] sm:$0xf]
      %v247 = vld [vmem:[%s219 + $0x54] sm:$0xf]
      %v248 = vld [vmem:[%s219 + $0x58] sm:$0xf]
      %v249 = vld [vmem:[%s219 + $0x5c] sm:$0xf]
      %v250 = vld [vmem:[%s219 + $0x60] sm:$0xf]
      %v251 = vld [vmem:[%s219 + $0x64] sm:$0xf]
      %v252 = vld [vmem:[%s219 + $0x68] sm:$0xf]
      %v253 = vld [vmem:[%s219 + $0x6c] sm:$0xf]
      %v254 = vld [vmem:[%s219 + $0x70] sm:$0xf]
      %v255 = vld [vmem:[%s219 + $0x74] sm:$0xf]
      %v256 = vld [vmem:[%s219 + $0x78] sm:$0xf]
      %v257 = vld [vmem:[%s219 + $0x7c] sm:$0xf]
      %v258 = vld [vmem:[%s1] sm:$0xf]
      %v259 = vld [vmem:[%s1 + $0x4] sm:$0xf]
      %v260 = vld [vmem:[%s1 + $0x8] sm:$0xf]
      %v261 = vld [vmem:[%s1 + $0xc] sm:$0xf]
      %v262 = vld [vmem:[%s1 + $0x10] sm:$0xf]
      %v263 = vld [vmem:[%s1 + $0x14] sm:$0xf]
      %v264 = vld [vmem:[%s1 + $0x18] sm:$0xf]
      %v265 = vld [vmem:[%s1 + $0x1c] sm:$0xf]
      %v266 = vld [vmem:[%s1 + $0x20] sm:$0xf]
      %v267 = vld [vmem:[%s1 + $0x24] sm:$0xf]
      %v268 = vld [vmem:[%s1 + $0x28] sm:$0xf]
      %v269 = vld [vmem:[%s1 + $0x2c] sm:$0xf]
      %v270 = vld [vmem:[%s1 + $0x30] sm:$0xf]
      %v271 = vld [vmem:[%s1 + $0x34] sm:$0xf]
      %v272 = vld [vmem:[%s1 + $0x38] sm:$0xf]
      %v273 = vld [vmem:[%s1 + $0x3c] sm:$0xf]
      %v306 = vunpack.c.l.b16 %v226
      %v307 = vunpack.c.l.b16 %v227
      %v308 = vunpack.c.l.b16 %v228
      %v309 = vunpack.c.l.b16 %v229
      %v310 = vunpack.c.l.b16 %v230
      %v311 = vunpack.c.l.b16 %v231
      %v312 = vunpack.c.l.b16 %v232
      %v313 = vunpack.c.l.b16 %v233
      %v314 = vunpack.c.l.b16 %v234
      %v315 = vunpack.c.l.b16 %v235
      %v316 = vunpack.c.l.b16 %v236
      %v317 = vunpack.c.l.b16 %v237
      %v318 = vunpack.c.l.b16 %v238
      %v319 = vunpack.c.l.b16 %v239
      %v320 = vunpack.c.l.b16 %v240
      %v321 = vunpack.c.l.b16 %v241
      %v322 = vunpack.c.l.b16 %v242
      %v323 = vunpack.c.l.b16 %v243
      %v324 = vunpack.c.l.b16 %v244
      %v325 = vunpack.c.l.b16 %v245
      %v326 = vunpack.c.l.b16 %v246
      %v327 = vunpack.c.l.b16 %v247
      %v328 = vunpack.c.l.b16 %v248
      %v329 = vunpack.c.l.b16 %v249
      %v330 = vunpack.c.l.b16 %v250
      %v331 = vunpack.c.l.b16 %v251
      %v332 = vunpack.c.l.b16 %v252
      %v333 = vunpack.c.l.b16 %v253
      %v334 = vunpack.c.l.b16 %v254
      %v335 = vunpack.c.l.b16 %v255
      %v336 = vunpack.c.l.b16 %v256
      %v337 = vunpack.c.l.b16 %v257
      %v338 = vpack.c.b16 %v307, %v306
      %v339 = vpack.c.b16 %v309, %v308
      %v340 = vpack.c.b16 %v311, %v310
      %v341 = vpack.c.b16 %v313, %v312
      %v342 = vpack.c.b16 %v315, %v314
      %v343 = vpack.c.b16 %v317, %v316
      %v344 = vpack.c.b16 %v319, %v318
      %v345 = vpack.c.b16 %v321, %v320
      %v346 = vpack.c.b16 %v323, %v322
      %v347 = vpack.c.b16 %v325, %v324
      %v348 = vpack.c.b16 %v327, %v326
      %v349 = vpack.c.b16 %v329, %v328
      %v350 = vpack.c.b16 %v331, %v330
      %v351 = vpack.c.b16 %v333, %v332
      %v352 = vpack.c.b16 %v335, %v334
      %v353 = vpack.c.b16 %v337, %v336
      %v386 = vunpack.c.l.b16 %v258
      %v387 = vunpack.c.l.b16 %v259
      %v388 = vunpack.c.l.b16 %v260
      %v389 = vunpack.c.l.b16 %v261
      %v390 = vunpack.c.l.b16 %v262
      %v391 = vunpack.c.l.b16 %v263
      %v392 = vunpack.c.l.b16 %v264
      %v393 = vunpack.c.l.b16 %v265
      %v394 = vunpack.c.l.b16 %v266
      %v395 = vunpack.c.l.b16 %v267
      %v396 = vunpack.c.l.b16 %v268
      %v397 = vunpack.c.l.b16 %v269
      %v398 = vunpack.c.l.b16 %v270
      %v399 = vunpack.c.l.b16 %v271
      %v400 = vunpack.c.l.b16 %v272
      %v401 = vunpack.c.l.b16 %v273
      %v402 = vpack.c.b16 %v387, %v386
      %v403 = vpack.c.b16 %v389, %v388
      %v404 = vpack.c.b16 %v391, %v390
      %v405 = vpack.c.b16 %v393, %v392
      %v406 = vpack.c.b16 %v395, %v394
      %v407 = vpack.c.b16 %v397, %v396
      %v408 = vpack.c.b16 %v399, %v398
      %v409 = vpack.c.b16 %v401, %v400
      %418 = vmatprep.subr.bf16.mxu0 0
      %419 = vmatpush1.bf16.msra.mxu0 %v402
      %420 = vmatprep.subr.bf16.mxu0 0
      %421 = vmatpush1.bf16.msra.mxu0 %v403
      %422 = vmatprep.subr.bf16.mxu0 0
      %423 = vmatpush1.bf16.msra.mxu0 %v404
      %424 = vmatprep.subr.bf16.mxu0 0
      %425 = vmatpush1.bf16.msra.mxu0 %v405
      %426 = vmatprep.subr.bf16.mxu0 0
      %427 = vmatpush1.bf16.msra.mxu0 %v406
      %428 = vmatprep.subr.bf16.mxu0 0
      %429 = vmatpush1.bf16.msra.mxu0 %v407
      %430 = vmatprep.subr.bf16.mxu0 0
      %431 = vmatpush1.bf16.msra.mxu0 %v408
      %432 = vmatprep.subr.bf16.mxu0 0
      %433 = vmatpush1.bf16.msra.mxu0 %v409
      %434 = vmatprep.subr.bf16.mxu0 0
      %435 = vmatpush1.bf16.msra.mxu0 0
      %436 = vmatprep.subr.bf16.mxu0 0
      %437 = vmatpush1.bf16.msra.mxu0 0
      %438 = vmatprep.subr.bf16.mxu0 0
      %439 = vmatpush1.bf16.msra.mxu0 0
      %440 = vmatprep.subr.bf16.mxu0 0
      %441 = vmatpush1.bf16.msra.mxu0 0
      %442 = vmatprep.subr.bf16.mxu0 0
      %443 = vmatpush1.bf16.msra.mxu0 0
      %444 = vmatprep.subr.bf16.mxu0 0
      %445 = vmatpush1.bf16.msra.mxu0 0
      %446 = vmatprep.subr.bf16.mxu0 0
      %447 = vmatpush1.bf16.msra.mxu0 0
      %448 = vmatprep.subr.bf16.mxu0 0
      %449 = vmatpush1.bf16.msra.mxu0 0
      %450 = vmatprep.mubr.bf16.mxu0 0
      %451 = vmatmul.mubr.bf16.gmra.mrb[0].mxu0 %v338
      %v452 = vpop.f32.mrb[0].mxu0
      %v453 = vadd.f32 0.0, %v452
      %v454 = vpop.f32.mrb[0].mxu0
      %v455 = vpop.f32.mrb[0].mxu0
      %v456 = vadd.f32 0.0, %v455
      %v457 = vpop.f32.mrb[0].mxu0
      %458 = vmatprep.mubr.bf16.mxu0 0
      %459 = vmatmul.mubr.bf16.gmra.mrb[0].mxu0 %v339
      %v460 = vpop.f32.mrb[0].mxu0
      %v461 = vadd.f32 0.0, %v460
      %v462 = vpop.f32.mrb[0].mxu0
      %v463 = vpop.f32.mrb[0].mxu0
      %v464 = vadd.f32 0.0, %v463
      %v465 = vpop.f32.mrb[0].mxu0
      %466 = vmatprep.mubr.bf16.mxu0 0
      %467 = vmatmul.mubr.bf16.gmra.mrb[0].mxu0 %v340
      %v468 = vpop.f32.mrb[0].mxu0
      %v469 = vadd.f32 0.0, %v468
      %v470 = vpop.f32.mrb[0].mxu0
      %v471 = vpop.f32.mrb[0].mxu0
      %v472 = vadd.f32 0.0, %v471
      %v473 = vpop.f32.mrb[0].mxu0
      %474 = vmatprep.mubr.bf16.mxu0 0
      %475 = vmatmul.mubr.bf16.gmra.mrb[0].mxu0 %v341
      %v476 = vpop.f32.mrb[0].mxu0
      %v477 = vadd.f32 0.0, %v476
      %v478 = vpop.f32.mrb[0].mxu0
      %v479 = vpop.f32.mrb[0].mxu0
      %v480 = vadd.f32 0.0, %v479
      %v481 = vpop.f32.mrb[0].mxu0
      %482 = vmatprep.mubr.bf16.mxu0 0
      %483 = vmatmul.mubr.bf16.gmra.mrb[0].mxu0 %v342
      %v484 = vpop.f32.mrb[0].mxu0
      %v485 = vadd.f32 0.0, %v484
      %v486 = vpop.f32.mrb[0].mxu0
      %v487 = vpop.f32.mrb[0].mxu0
      %v488 = vadd.f32 0.0, %v487
      %v489 = vpop.f32.mrb[0].mxu0
      %490 = vmatprep.mubr.bf16.mxu0 0
      %491 = vmatmul.mubr.bf16.gmra.mrb[0].mxu0 %v343
      %v492 = vpop.f32.mrb[0].mxu0
      %v493 = vadd.f32 0.0, %v492
      %v494 = vpop.f32.mrb[0].mxu0
      %v495 = vpop.f32.mrb[0].mxu0
      %v496 = vadd.f32 0.0, %v495
      %v497 = vpop.f32.mrb[0].mxu0
      %498 = vmatprep.mubr.bf16.mxu0 0
      %499 = vmatmul.mubr.bf16.gmra.mrb[0].mxu0 %v344
      %v500 = vpop.f32.mrb[0].mxu0
      %v501 = vadd.f32 0.0, %v500
      %v502 = vpop.f32.mrb[0].mxu0
      %v503 = vpop.f32.mrb[0].mxu0
      %v504 = vadd.f32 0.0, %v503
      %v505 = vpop.f32.mrb[0].mxu0
      %506 = vmatprep.mubr.bf16.mxu0 0
      %507 = vmatmul.mubr.bf16.gmra.mrb[0].mxu0 %v345
      %v508 = vpop.f32.mrb[0].mxu0
      %v509 = vadd.f32 0.0, %v508
      %v510 = vpop.f32.mrb[0].mxu0
      %v511 = vpop.f32.mrb[0].mxu0
      %v512 = vadd.f32 0.0, %v511
      %v513 = vpop.f32.mrb[0].mxu0
      %514 = vmatprep.mubr.bf16.mxu0 0
      %515 = vmatmul.mubr.bf16.gmra.mrb[0].mxu0 %v346
      %v516 = vpop.f32.mrb[0].mxu0
      %v517 = vadd.f32 0.0, %v516
      %v518 = vpop.f32.mrb[0].mxu0
      %v519 = vpop.f32.mrb[0].mxu0
      %v520 = vadd.f32 0.0, %v519
      %v521 = vpop.f32.mrb[0].mxu0
      %522 = vmatprep.mubr.bf16.mxu0 0
      %523 = vmatmul.mubr.bf16.gmra.mrb[0].mxu0 %v347
      %v524 = vpop.f32.mrb[0].mxu0
      %v525 = vadd.f32 0.0, %v524
      %v526 = vpop.f32.mrb[0].mxu0
      %v527 = vpop.f32.mrb[0].mxu0
      %v528 = vadd.f32 0.0, %v527
      %v529 = vpop.f32.mrb[0].mxu0
      %530 = vmatprep.mubr.bf16.mxu0 0
      %531 = vmatmul.mubr.bf16.gmra.mrb[0].mxu0 %v348
      %v532 = vpop.f32.mrb[0].mxu0
      %v533 = vadd.f32 0.0, %v532
      %v534 = vpop.f32.mrb[0].mxu0
      %v535 = vpop.f32.mrb[0].mxu0
      %v536 = vadd.f32 0.0, %v535
      %v537 = vpop.f32.mrb[0].mxu0
      %538 = vmatprep.mubr.bf16.mxu0 0
      %539 = vmatmul.mubr.bf16.gmra.mrb[0].mxu0 %v349
      %v540 = vpop.f32.mrb[0].mxu0
      %v541 = vadd.f32 0.0, %v540
      %v542 = vpop.f32.mrb[0].mxu0
      %v543 = vpop.f32.mrb[0].mxu0
      %v544 = vadd.f32 0.0, %v543
      %v545 = vpop.f32.mrb[0].mxu0
      %546 = vmatprep.mubr.bf16.mxu0 0
      %547 = vmatmul.mubr.bf16.gmra.mrb[0].mxu0 %v350
      %v548 = vpop.f32.mrb[0].mxu0
      %v549 = vadd.f32 0.0, %v548
      %v550 = vpop.f32.mrb[0].mxu0
      %v551 = vpop.f32.mrb[0].mxu0
      %v552 = vadd.f32 0.0, %v551
      %v553 = vpop.f32.mrb[0].mxu0
      %554 = vmatprep.mubr.bf16.mxu0 0
      %555 = vmatmul.mubr.bf16.gmra.mrb[0].mxu0 %v351
      %v556 = vpop.f32.mrb[0].mxu0
      %v557 = vadd.f32 0.0, %v556
      %v558 = vpop.f32.mrb[0].mxu0
      %v559 = vpop.f32.mrb[0].mxu0
      %v560 = vadd.f32 0.0, %v559
      %v561 = vpop.f32.mrb[0].mxu0
      %562 = vmatprep.mubr.bf16.mxu0 0
      %563 = vmatmul.mubr.bf16.gmra.mrb[0].mxu0 %v352
      %v564 = vpop.f32.mrb[0].mxu0
      %v565 = vadd.f32 0.0, %v564
      %v566 = vpop.f32.mrb[0].mxu0
      %v567 = vpop.f32.mrb[0].mxu0
      %v568 = vadd.f32 0.0, %v567
      %v569 = vpop.f32.mrb[0].mxu0
      %570 = vmatprep.mubr.bf16.mxu0 0
      %571 = vmatmul.mubr.bf16.gmra.mrb[0].mxu0 %v353
      %v572 = vpop.f32.mrb[0].mxu0
      %v573 = vadd.f32 0.0, %v572
      %v574 = vpop.f32.mrb[0].mxu0
      %v575 = vpop.f32.mrb[0].mxu0
      %v576 = vadd.f32 0.0, %v575
      %v577 = vpop.f32.mrb[0].mxu0
      %578 = vdwg.mxu0
      %611 = vrot.lane.b32.xlu0 %v453, 96
      %v612 = vpop.permute.xlu0 %611
      %613 = vrot.lane.b32.xlu0 %v456, 96
      %v614 = vpop.permute.xlu0 %613
      %615 = vrot.lane.b32.xlu0 %v461, 96
      %v616 = vpop.permute.xlu0 %615
      %617 = vrot.lane.b32.xlu0 %v464, 96
      %v618 = vpop.permute.xlu0 %617
      %619 = vrot.lane.b32.xlu0 %v469, 96
      %v620 = vpop.permute.xlu0 %619
      %621 = vrot.lane.b32.xlu0 %v472, 96
      %v622 = vpop.permute.xlu0 %621
      %623 = vrot.lane.b32.xlu0 %v477, 96
      %v624 = vpop.permute.xlu0 %623
      %625 = vrot.lane.b32.xlu0 %v480, 96
      %v626 = vpop.permute.xlu0 %625
      %627 = vrot.lane.b32.xlu0 %v485, 96
      %v628 = vpop.permute.xlu0 %627
      %629 = vrot.lane.b32.xlu0 %v488, 96
      %v630 = vpop.permute.xlu0 %629
      %631 = vrot.lane.b32.xlu0 %v493, 96
      %v632 = vpop.permute.xlu0 %631
      %633 = vrot.lane.b32.xlu0 %v496, 96
      %v634 = vpop.permute.xlu0 %633
      %635 = vrot.lane.b32.xlu0 %v501, 96
      %v636 = vpop.permute.xlu0 %635
      %637 = vrot.lane.b32.xlu0 %v504, 96
      %v638 = vpop.permute.xlu0 %637
      %639 = vrot.lane.b32.xlu0 %v509, 96
      %v640 = vpop.permute.xlu0 %639
      %641 = vrot.lane.b32.xlu0 %v512, 96
      %v642 = vpop.permute.xlu0 %641
      %643 = vrot.lane.b32.xlu0 %v517, 96
      %v644 = vpop.permute.xlu0 %643
      %645 = vrot.lane.b32.xlu0 %v520, 96
      %v646 = vpop.permute.xlu0 %645
      %647 = vrot.lane.b32.xlu0 %v525, 96
      %v648 = vpop.permute.xlu0 %647
      %649 = vrot.lane.b32.xlu0 %v528, 96
      %v650 = vpop.permute.xlu0 %649
      %651 = vrot.lane.b32.xlu0 %v533, 96
      %v652 = vpop.permute.xlu0 %651
      %653 = vrot.lane.b32.xlu0 %v536, 96
      %v654 = vpop.permute.xlu0 %653
      %655 = vrot.lane.b32.xlu0 %v541, 96
      %v656 = vpop.permute.xlu0 %655
      %657 = vrot.lane.b32.xlu0 %v544, 96
      %v658 = vpop.permute.xlu0 %657
      %659 = vrot.lane.b32.xlu0 %v549, 96
      %v660 = vpop.permute.xlu0 %659
      %661 = vrot.lane.b32.xlu0 %v552, 96
      %v662 = vpop.permute.xlu0 %661
      %663 = vrot.lane.b32.xlu0 %v557, 96
      %v664 = vpop.permute.xlu0 %663
      %665 = vrot.lane.b32.xlu0 %v560, 96
      %v666 = vpop.permute.xlu0 %665
      %667 = vrot.lane.b32.xlu0 %v565, 96
      %v668 = vpop.permute.xlu0 %667
      %669 = vrot.lane.b32.xlu0 %v568, 96
      %v670 = vpop.permute.xlu0 %669
      %671 = vrot.lane.b32.xlu0 %v573, 96
      %v672 = vpop.permute.xlu0 %671
      %673 = vrot.lane.b32.xlu0 %v576, 96
      %v674 = vpop.permute.xlu0 %673
      %v707 = vmax.f32 %v453, %v612
      %v708 = vmax.f32 %v456, %v614
      %v709 = vmax.f32 %v461, %v616
      %v710 = vmax.f32 %v464, %v618
      %v711 = vmax.f32 %v469, %v620
      %v712 = vmax.f32 %v472, %v622
      %v713 = vmax.f32 %v477, %v624
      %v714 = vmax.f32 %v480, %v626
      %v715 = vmax.f32 %v485, %v628
      %v716 = vmax.f32 %v488, %v630
      %v717 = vmax.f32 %v493, %v632
      %v718 = vmax.f32 %v496, %v634
      %v719 = vmax.f32 %v501, %v636
      %v720 = vmax.f32 %v504, %v638
      %v721 = vmax.f32 %v509, %v640
      %v722 = vmax.f32 %v512, %v642
      %v723 = vmax.f32 %v517, %v644
      %v724 = vmax.f32 %v520, %v646
      %v725 = vmax.f32 %v525, %v648
      %v726 = vmax.f32 %v528, %v650
      %v727 = vmax.f32 %v533, %v652
      %v728 = vmax.f32 %v536, %v654
      %v729 = vmax.f32 %v541, %v656
      %v730 = vmax.f32 %v544, %v658
      %v731 = vmax.f32 %v549, %v660
      %v732 = vmax.f32 %v552, %v662
      %v733 = vmax.f32 %v557, %v664
      %v734 = vmax.f32 %v560, %v666
      %v735 = vmax.f32 %v565, %v668
      %v736 = vmax.f32 %v568, %v670
      %v737 = vmax.f32 %v573, %v672
      %v738 = vmax.f32 %v576, %v674
      %771 = vrot.lane.b32.xlu0 %v707, 64
      %v772 = vpop.permute.xlu0 %771
      %773 = vrot.lane.b32.xlu0 %v708, 64
      %v774 = vpop.permute.xlu0 %773
      %775 = vrot.lane.b32.xlu0 %v709, 64
      %v776 = vpop.permute.xlu0 %775
      %777 = vrot.lane.b32.xlu0 %v710, 64
      %v778 = vpop.permute.xlu0 %777
      %779 = vrot.lane.b32.xlu0 %v711, 64
      %v780 = vpop.permute.xlu0 %779
      %781 = vrot.lane.b32.xlu0 %v712, 64
      %v782 = vpop.permute.xlu0 %781
      %783 = vrot.lane.b32.xlu0 %v713, 64
      %v784 = vpop.permute.xlu0 %783
      %785 = vrot.lane.b32.xlu0 %v714, 64
      %v786 = vpop.permute.xlu0 %785
      %787 = vrot.lane.b32.xlu0 %v715, 64
      %v788 = vpop.permute.xlu0 %787
      %789 = vrot.lane.b32.xlu0 %v716, 64
      %v790 = vpop.permute.xlu0 %789
      %791 = vrot.lane.b32.xlu0 %v717, 64
      %v792 = vpop.permute.xlu0 %791
      %793 = vrot.lane.b32.xlu0 %v718, 64
      %v794 = vpop.permute.xlu0 %793
      %795 = vrot.lane.b32.xlu0 %v719, 64
      %v796 = vpop.permute.xlu0 %795
      %797 = vrot.lane.b32.xlu0 %v720, 64
      %v798 = vpop.permute.xlu0 %797
      %799 = vrot.lane.b32.xlu0 %v721, 64
      %v800 = vpop.permute.xlu0 %799
      %801 = vrot.lane.b32.xlu0 %v722, 64
      %v802 = vpop.permute.xlu0 %801
      %803 = vrot.lane.b32.xlu0 %v723, 64
      %v804 = vpop.permute.xlu0 %803
      %805 = vrot.lane.b32.xlu0 %v724, 64
      %v806 = vpop.permute.xlu0 %805
      %807 = vrot.lane.b32.xlu0 %v725, 64
      %v808 = vpop.permute.xlu0 %807
      %809 = vrot.lane.b32.xlu0 %v726, 64
      %v810 = vpop.permute.xlu0 %809
      %811 = vrot.lane.b32.xlu0 %v727, 64
      %v812 = vpop.permute.xlu0 %811
      %813 = vrot.lane.b32.xlu0 %v728, 64
      %v814 = vpop.permute.xlu0 %813
      %815 = vrot.lane.b32.xlu0 %v729, 64
      %v816 = vpop.permute.xlu0 %815
      %817 = vrot.lane.b32.xlu0 %v730, 64
      %v818 = vpop.permute.xlu0 %817
      %819 = vrot.lane.b32.xlu0 %v731, 64
      %v820 = vpop.permute.xlu0 %819
      %821 = vrot.lane.b32.xlu0 %v732, 64
      %v822 = vpop.permute.xlu0 %821
      %823 = vrot.lane.b32.xlu0 %v733, 64
      %v824 = vpop.permute.xlu0 %823
      %825 = vrot.lane.b32.xlu0 %v734, 64
      %v826 = vpop.permute.xlu0 %825
      %827 = vrot.lane.b32.xlu0 %v735, 64
      %v828 = vpop.permute.xlu0 %827
      %829 = vrot.lane.b32.xlu0 %v736, 64
      %v830 = vpop.permute.xlu0 %829
      %831 = vrot.lane.b32.xlu0 %v737, 64
      %v832 = vpop.permute.xlu0 %831
      %833 = vrot.lane.b32.xlu0 %v738, 64
      %v834 = vpop.permute.xlu0 %833
      %v867 = vmax.f32 %v707, %v772
      %v868 = vmax.f32 %v708, %v774
      %v869 = vmax.f32 %v709, %v776
      %v870 = vmax.f32 %v710, %v778
      %v871 = vmax.f32 %v711, %v780
      %v872 = vmax.f32 %v712, %v782
      %v873 = vmax.f32 %v713, %v784
      %v874 = vmax.f32 %v714, %v786
      %v875 = vmax.f32 %v715, %v788
      %v876 = vmax.f32 %v716, %v790
      %v877 = vmax.f32 %v717, %v792
      %v878 = vmax.f32 %v718, %v794
      %v879 = vmax.f32 %v719, %v796
      %v880 = vmax.f32 %v720, %v798
      %v881 = vmax.f32 %v721, %v800
      %v882 = vmax.f32 %v722, %v802
      %v883 = vmax.f32 %v723, %v804
      %v884 = vmax.f32 %v724, %v806
      %v885 = vmax.f32 %v725, %v808
      %v886 = vmax.f32 %v726, %v810
      %v887 = vmax.f32 %v727, %v812
      %v888 = vmax.f32 %v728, %v814
      %v889 = vmax.f32 %v729, %v816
      %v890 = vmax.f32 %v730, %v818
      %v891 = vmax.f32 %v731, %v820
      %v892 = vmax.f32 %v732, %v822
      %v893 = vmax.f32 %v733, %v824
      %v894 = vmax.f32 %v734, %v826
      %v895 = vmax.f32 %v735, %v828
      %v896 = vmax.f32 %v736, %v830
      %v897 = vmax.f32 %v737, %v832
      %v898 = vmax.f32 %v738, %v834
      %v899 = vld [vmem:[%s2] sm:$0x1]
      %v901 = vlaneseq
      %v902 = vshrl.u32 %v901, 7
      %v903 = vsub.s32 0, %v902
      %v904 = vrot.slane %v899, %v903
      %v906 = vadd.f32 %v867, %v904
      %v907 = vadd.f32 %v868, %v904
      %v908 = vadd.f32 %v869, %v904
      %v909 = vadd.f32 %v870, %v904
      %v910 = vadd.f32 %v871, %v904
      %v911 = vadd.f32 %v872, %v904
      %v912 = vadd.f32 %v873, %v904
      %v913 = vadd.f32 %v874, %v904
      %v914 = vadd.f32 %v875, %v904
      %v915 = vadd.f32 %v876, %v904
      %v916 = vadd.f32 %v877, %v904
      %v917 = vadd.f32 %v878, %v904
      %v918 = vadd.f32 %v879, %v904
      %v919 = vadd.f32 %v880, %v904
      %v920 = vadd.f32 %v881, %v904
      %v921 = vadd.f32 %v882, %v904
      %v922 = vadd.f32 %v883, %v904
      %v923 = vadd.f32 %v884, %v904
      %v924 = vadd.f32 %v885, %v904
      %v925 = vadd.f32 %v886, %v904
      %v926 = vadd.f32 %v887, %v904
      %v927 = vadd.f32 %v888, %v904
      %v928 = vadd.f32 %v889, %v904
      %v929 = vadd.f32 %v890, %v904
      %v930 = vadd.f32 %v891, %v904
      %v931 = vadd.f32 %v892, %v904
      %v932 = vadd.f32 %v893, %v904
      %v933 = vadd.f32 %v894, %v904
      %v934 = vadd.f32 %v895, %v904
      %v935 = vadd.f32 %v896, %v904
      %v936 = vadd.f32 %v897, %v904
      %v937 = vadd.f32 %v898, %v904
      %v938 = vmax.f32 %v906, 0.0
      %v939 = vmax.f32 %v907, 0.0
      %v940 = vmax.f32 %v908, 0.0
      %v941 = vmax.f32 %v909, 0.0
      %v942 = vmax.f32 %v910, 0.0
      %v943 = vmax.f32 %v911, 0.0
      %v944 = vmax.f32 %v912, 0.0
      %v945 = vmax.f32 %v913, 0.0
      %v946 = vmax.f32 %v914, 0.0
      %v947 = vmax.f32 %v915, 0.0
      %v948 = vmax.f32 %v916, 0.0
      %v949 = vmax.f32 %v917, 0.0
      %v950 = vmax.f32 %v918, 0.0
      %v951 = vmax.f32 %v919, 0.0
      %v952 = vmax.f32 %v920, 0.0
      %v953 = vmax.f32 %v921, 0.0
      %v954 = vmax.f32 %v922, 0.0
      %v955 = vmax.f32 %v923, 0.0
      %v956 = vmax.f32 %v924, 0.0
      %v957 = vmax.f32 %v925, 0.0
      %v958 = vmax.f32 %v926, 0.0
      %v959 = vmax.f32 %v927, 0.0
      %v960 = vmax.f32 %v928, 0.0
      %v961 = vmax.f32 %v929, 0.0
      %v962 = vmax.f32 %v930, 0.0
      %v963 = vmax.f32 %v931, 0.0
      %v964 = vmax.f32 %v932, 0.0
      %v965 = vmax.f32 %v933, 0.0
      %v966 = vmax.f32 %v934, 0.0
      %v967 = vmax.f32 %v935, 0.0
      %v968 = vmax.f32 %v936, 0.0
      %v969 = vmax.f32 %v937, 0.0
      %v979 = vrot.slane 0.0, 7
      %v980 = vrot.slane %v955, 7
      %v981 = vrot.slane %v957, 7
      %v982 = vrot.slane %v959, 7
      %v983 = vrot.slane %v961, 7
      %v984 = vrot.slane %v963, 7
      %v985 = vrot.slane %v965, 7
      %v986 = vrot.slane %v967, 7
      %v987 = vrot.slane %v969, 7
      %vm997 = vcmask 1040384
      %v998 = vsel %vm997, 0.0, %v979
      %v999 = vsel %vm997, 0.0, %v980
      %v1000 = vsel %vm997, 0.0, %v981
      %v1001 = vsel %vm997, 0.0, %v982
      %v1002 = vsel %vm997, 0.0, %v983
      %v1003 = vsel %vm997, 0.0, %v984
      %v1004 = vsel %vm997, 0.0, %v985
      %v1005 = vsel %vm997, 0.0, %v986
      %v1006 = vsel %vm997, 0.0, %v987
      %v1015 = vrot.slane 0.0, 1
      %v1016 = vrot.slane %v954, 1
      %v1017 = vrot.slane %v956, 1
      %v1018 = vrot.slane %v958, 1
      %v1019 = vrot.slane %v960, 1
      %v1020 = vrot.slane %v962, 1
      %v1021 = vrot.slane %v964, 1
      %v1022 = vrot.slane %v966, 1
      %v1023 = vrot.slane %v968, 1
      %vm1033 = vcmask 1046528
      %v1034 = vsel %vm1033, %v1015, 0.0
      %v1035 = vsel %vm1033, %v1016, 0.0
      %v1036 = vsel %vm1033, %v1017, 0.0
      %v1037 = vsel %vm1033, %v1018, 0.0
      %v1038 = vsel %vm1033, %v1019, 0.0
      %v1039 = vsel %vm1033, %v1020, 0.0
      %v1040 = vsel %vm1033, %v1021, 0.0
      %v1041 = vsel %vm1033, %v1022, 0.0
      %v1042 = vsel %vm1033, %v1023, 0.0
      %1043 = vrot.lane.b32.xlu0 0.0, 32
      %v1044 = vpop.permute.xlu0 %1043
      %1045 = vrot.lane.b32.xlu0 %v954, 32
      %v1046 = vpop.permute.xlu0 %1045
      %1047 = vrot.lane.b32.xlu0 %v956, 32
      %v1048 = vpop.permute.xlu0 %1047
      %1049 = vrot.lane.b32.xlu0 %v958, 32
      %v1050 = vpop.permute.xlu0 %1049
      %1051 = vrot.lane.b32.xlu0 %v960, 32
      %v1052 = vpop.permute.xlu0 %1051
      %1053 = vrot.lane.b32.xlu0 %v962, 32
      %v1054 = vpop.permute.xlu0 %1053
      %1055 = vrot.lane.b32.xlu0 %v964, 32
      %v1056 = vpop.permute.xlu0 %1055
      %1057 = vrot.lane.b32.xlu0 %v966, 32
      %v1058 = vpop.permute.xlu0 %1057
      %1059 = vrot.lane.b32.xlu0 %v968, 32
      %v1060 = vpop.permute.xlu0 %1059
      %1070 = vrot.lane.b32.xlu0 0.0, 64
      %v1071 = vpop.permute.xlu0 %1070
      %1072 = vrot.lane.b32.xlu0 %v955, 64
      %v1073 = vpop.permute.xlu0 %1072
      %1074 = vrot.lane.b32.xlu0 %v957, 64
      %v1075 = vpop.permute.xlu0 %1074
      %1076 = vrot.lane.b32.xlu0 %v959, 64
      %v1077 = vpop.permute.xlu0 %1076
      %1078 = vrot.lane.b32.xlu0 %v961, 64
      %v1079 = vpop.permute.xlu0 %1078
      %1080 = vrot.lane.b32.xlu0 %v963, 64
      %v1081 = vpop.permute.xlu0 %1080
      %1082 = vrot.lane.b32.xlu0 %v965, 64
      %v1083 = vpop.permute.xlu0 %1082
      %1084 = vrot.lane.b32.xlu0 %v967, 64
      %v1085 = vpop.permute.xlu0 %1084
      %1086 = vrot.lane.b32.xlu0 %v969, 64
      %v1087 = vpop.permute.xlu0 %1086
      %1097 = vrot.lane.b32.xlu0 0.0, 96
      %v1098 = vpop.permute.xlu0 %1097
      %1099 = vrot.lane.b32.xlu0 %v954, 96
      %v1100 = vpop.permute.xlu0 %1099
      %1101 = vrot.lane.b32.xlu0 %v956, 96
      %v1102 = vpop.permute.xlu0 %1101
      %1103 = vrot.lane.b32.xlu0 %v958, 96
      %v1104 = vpop.permute.xlu0 %1103
      %1105 = vrot.lane.b32.xlu0 %v960, 96
      %v1106 = vpop.permute.xlu0 %1105
      %1107 = vrot.lane.b32.xlu0 %v962, 96
      %v1108 = vpop.permute.xlu0 %1107
      %1109 = vrot.lane.b32.xlu0 %v964, 96
      %v1110 = vpop.permute.xlu0 %1109
      %1111 = vrot.lane.b32.xlu0 %v966, 96
      %v1112 = vpop.permute.xlu0 %1111
      %1113 = vrot.lane.b32.xlu0 %v968, 96
      %v1114 = vpop.permute.xlu0 %1113
      %1133 = vrot.lane.b32.xlu0 %v1034, 32
      %v1134 = vpop.permute.xlu0 %1133
      %1135 = vrot.lane.b32.xlu0 %v1035, 32
      %v1136 = vpop.permute.xlu0 %1135
      %1137 = vrot.lane.b32.xlu0 %v1036, 32
      %v1138 = vpop.permute.xlu0 %1137
      %1139 = vrot.lane.b32.xlu0 %v1037, 32
      %v1140 = vpop.permute.xlu0 %1139
      %1141 = vrot.lane.b32.xlu0 %v1038, 32
      %v1142 = vpop.permute.xlu0 %1141
      %1143 = vrot.lane.b32.xlu0 %v1039, 32
      %v1144 = vpop.permute.xlu0 %1143
      %1145 = vrot.lane.b32.xlu0 %v1040, 32
      %v1146 = vpop.permute.xlu0 %1145
      %1147 = vrot.lane.b32.xlu0 %v1041, 32
      %v1148 = vpop.permute.xlu0 %1147
      %1149 = vrot.lane.b32.xlu0 %v1042, 32
      %v1150 = vpop.permute.xlu0 %1149
      %vm1160 = vcmask 261120
      %v1161 = vsel %vm1160, %v998, %v1044
      %v1162 = vsel %vm1160, %v999, %v1046
      %v1163 = vsel %vm1160, %v1000, %v1048
      %v1164 = vsel %vm1160, %v1001, %v1050
      %v1165 = vsel %vm1160, %v1002, %v1052
      %v1166 = vsel %vm1160, %v1003, %v1054
      %v1167 = vsel %vm1160, %v1004, %v1056
      %v1168 = vsel %vm1160, %v1005, %v1058
      %v1169 = vsel %vm1160, %v1006, %v1060
      %vm1170 = vcmask 523264
      %v1171 = vsel %vm1170, %v1161, %v1071
      %v1172 = vsel %vm1170, %v1162, %v1073
      %v1173 = vsel %vm1170, %v1163, %v1075
      %v1174 = vsel %vm1170, %v1164, %v1077
      %v1175 = vsel %vm1170, %v1165, %v1079
      %v1176 = vsel %vm1170, %v1166, %v1081
      %v1177 = vsel %vm1170, %v1167, %v1083
      %v1178 = vsel %vm1170, %v1168, %v1085
      %v1179 = vsel %vm1170, %v1169, %v1087
      %vm1180 = vcmask 785408
      %v1181 = vsel %vm1180, %v1171, %v1098
      %v1182 = vsel %vm1180, %v1172, %v1100
      %v1183 = vsel %vm1180, %v1173, %v1102
      %v1184 = vsel %vm1180, %v1174, %v1104
      %v1185 = vsel %vm1180, %v1175, %v1106
      %v1186 = vsel %vm1180, %v1176, %v1108
      %v1187 = vsel %vm1180, %v1177, %v1110
      %v1188 = vsel %vm1180, %v1178, %v1112
      %v1189 = vsel %vm1180, %v1179, %v1114
      %v1190 = vsel %vm1160, 0.0, %v1134
      %v1191 = vsel %vm1160, %v955, %v1136
      %v1192 = vsel %vm1160, %v957, %v1138
      %v1193 = vsel %vm1160, %v959, %v1140
      %v1194 = vsel %vm1160, %v961, %v1142
      %v1195 = vsel %vm1160, %v963, %v1144
      %v1196 = vsel %vm1160, %v965, %v1146
      %v1197 = vsel %vm1160, %v967, %v1148
      %v1198 = vsel %vm1160, %v969, %v1150
      %v1207 = vrot.slane %v939, 7
      %v1208 = vrot.slane %v941, 7
      %v1209 = vrot.slane %v943, 7
      %v1210 = vrot.slane %v945, 7
      %v1211 = vrot.slane %v947, 7
      %v1212 = vrot.slane %v949, 7
      %v1213 = vrot.slane %v951, 7
      %v1214 = vrot.slane %v953, 7
      %v1223 = vsel %vm997, 0.0, %v1207
      %v1224 = vsel %vm997, 0.0, %v1208
      %v1225 = vsel %vm997, 0.0, %v1209
      %v1226 = vsel %vm997, 0.0, %v1210
      %v1227 = vsel %vm997, 0.0, %v1211
      %v1228 = vsel %vm997, 0.0, %v1212
      %v1229 = vsel %vm997, 0.0, %v1213
      %v1230 = vsel %vm997, 0.0, %v1214
      %v1239 = vrot.slane %v938, 1
      %v1240 = vrot.slane %v940, 1
      %v1241 = vrot.slane %v942, 1
      %v1242 = vrot.slane %v944, 1
      %v1243 = vrot.slane %v946, 1
      %v1244 = vrot.slane %v948, 1
      %v1245 = vrot.slane %v950, 1
      %v1246 = vrot.slane %v952, 1
      %v1255 = vsel %vm1033, %v1239, 0.0
      %v1256 = vsel %vm1033, %v1240, 0.0
      %v1257 = vsel %vm1033, %v1241, 0.0
      %v1258 = vsel %vm1033, %v1242, 0.0
      %v1259 = vsel %vm1033, %v1243, 0.0
      %v1260 = vsel %vm1033, %v1244, 0.0
      %v1261 = vsel %vm1033, %v1245, 0.0
      %v1262 = vsel %vm1033, %v1246, 0.0
      %1263 = vrot.lane.b32.xlu0 %v938, 32
      %v1264 = vpop.permute.xlu0 %1263
      %1265 = vrot.lane.b32.xlu0 %v940, 32
      %v1266 = vpop.permute.xlu0 %1265
      %1267 = vrot.lane.b32.xlu0 %v942, 32
      %v1268 = vpop.permute.xlu0 %1267
      %1269 = vrot.lane.b32.xlu0 %v944, 32
      %v1270 = vpop.permute.xlu0 %1269
      %1271 = vrot.lane.b32.xlu0 %v946, 32
      %v1272 = vpop.permute.xlu0 %1271
      %1273 = vrot.lane.b32.xlu0 %v948, 32
      %v1274 = vpop.permute.xlu0 %1273
      %1275 = vrot.lane.b32.xlu0 %v950, 32
      %v1276 = vpop.permute.xlu0 %1275
      %1277 = vrot.lane.b32.xlu0 %v952, 32
      %v1278 = vpop.permute.xlu0 %1277
      %1287 = vrot.lane.b32.xlu0 %v939, 64
      %v1288 = vpop.permute.xlu0 %1287
      %1289 = vrot.lane.b32.xlu0 %v941, 64
      %v1290 = vpop.permute.xlu0 %1289
      %1291 = vrot.lane.b32.xlu0 %v943, 64
      %v1292 = vpop.permute.xlu0 %1291
      %1293 = vrot.lane.b32.xlu0 %v945, 64
      %v1294 = vpop.permute.xlu0 %1293
      %1295 = vrot.lane.b32.xlu0 %v947, 64
      %v1296 = vpop.permute.xlu0 %1295
      %1297 = vrot.lane.b32.xlu0 %v949, 64
      %v1298 = vpop.permute.xlu0 %1297
      %1299 = vrot.lane.b32.xlu0 %v951, 64
      %v1300 = vpop.permute.xlu0 %1299
      %1301 = vrot.lane.b32.xlu0 %v953, 64
      %v1302 = vpop.permute.xlu0 %1301
      %1311 = vrot.lane.b32.xlu0 %v938, 96
      %v1312 = vpop.permute.xlu0 %1311
      %1313 = vrot.lane.b32.xlu0 %v940, 96
      %v1314 = vpop.permute.xlu0 %1313
      %1315 = vrot.lane.b32.xlu0 %v942, 96
      %v1316 = vpop.permute.xlu0 %1315
      %1317 = vrot.lane.b32.xlu0 %v944, 96
      %v1318 = vpop.permute.xlu0 %1317
      %1319 = vrot.lane.b32.xlu0 %v946, 96
      %v1320 = vpop.permute.xlu0 %1319
      %1321 = vrot.lane.b32.xlu0 %v948, 96
      %v1322 = vpop.permute.xlu0 %1321
      %1323 = vrot.lane.b32.xlu0 %v950, 96
      %v1324 = vpop.permute.xlu0 %1323
      %1325 = vrot.lane.b32.xlu0 %v952, 96
      %v1326 = vpop.permute.xlu0 %1325
      %1343 = vrot.lane.b32.xlu0 %v1255, 32
      %v1344 = vpop.permute.xlu0 %1343
      %1345 = vrot.lane.b32.xlu0 %v1256, 32
      %v1346 = vpop.permute.xlu0 %1345
      %1347 = vrot.lane.b32.xlu0 %v1257, 32
      %v1348 = vpop.permute.xlu0 %1347
      %1349 = vrot.lane.b32.xlu0 %v1258, 32
      %v1350 = vpop.permute.xlu0 %1349
      %1351 = vrot.lane.b32.xlu0 %v1259, 32
      %v1352 = vpop.permute.xlu0 %1351
      %1353 = vrot.lane.b32.xlu0 %v1260, 32
      %v1354 = vpop.permute.xlu0 %1353
      %1355 = vrot.lane.b32.xlu0 %v1261, 32
      %v1356 = vpop.permute.xlu0 %1355
      %1357 = vrot.lane.b32.xlu0 %v1262, 32
      %v1358 = vpop.permute.xlu0 %1357
      %v1367 = vsel %vm1160, %v1223, %v1264
      %v1368 = vsel %vm1160, %v1224, %v1266
      %v1369 = vsel %vm1160, %v1225, %v1268
      %v1370 = vsel %vm1160, %v1226, %v1270
      %v1371 = vsel %vm1160, %v1227, %v1272
      %v1372 = vsel %vm1160, %v1228, %v1274
      %v1373 = vsel %vm1160, %v1229, %v1276
      %v1374 = vsel %vm1160, %v1230, %v1278
      %v1375 = vsel %vm1170, %v1367, %v1288
      %v1376 = vsel %vm1170, %v1368, %v1290
      %v1377 = vsel %vm1170, %v1369, %v1292
      %v1378 = vsel %vm1170, %v1370, %v1294
      %v1379 = vsel %vm1170, %v1371, %v1296
      %v1380 = vsel %vm1170, %v1372, %v1298
      %v1381 = vsel %vm1170, %v1373, %v1300
      %v1382 = vsel %vm1170, %v1374, %v1302
      %v1383 = vsel %vm1180, %v1375, %v1312
      %v1384 = vsel %vm1180, %v1376, %v1314
      %v1385 = vsel %vm1180, %v1377, %v1316
      %v1386 = vsel %vm1180, %v1378, %v1318
      %v1387 = vsel %vm1180, %v1379, %v1320
      %v1388 = vsel %vm1180, %v1380, %v1322
      %v1389 = vsel %vm1180, %v1381, %v1324
      %v1390 = vsel %vm1180, %v1382, %v1326
      %v1391 = vsel %vm1160, %v939, %v1344
      %v1392 = vsel %vm1160, %v941, %v1346
      %v1393 = vsel %vm1160, %v943, %v1348
      %v1394 = vsel %vm1160, %v945, %v1350
      %v1395 = vsel %vm1160, %v947, %v1352
      %v1396 = vsel %vm1160, %v949, %v1354
      %v1397 = vsel %vm1160, %v951, %v1356
      %v1398 = vsel %vm1160, %v953, %v1358
      %v1399 = vpack.c.bf16 %v1182, %v1181
      %v1400 = vpack.c.bf16 %v1191, %v1190
      %v1401 = vpack.c.bf16 %v1184, %v1183
      %v1402 = vpack.c.bf16 %v1193, %v1192
      %v1403 = vpack.c.bf16 %v1186, %v1185
      %v1404 = vpack.c.bf16 %v1195, %v1194
      %v1405 = vpack.c.bf16 %v1188, %v1187
      %v1406 = vpack.c.bf16 %v1197, %v1196
      %v1407 = vld [vmem:[%s3] sm:$0xf]
      %v1408 = vld [vmem:[%s3 + $0x4] sm:$0xf]
      %v1409 = vld [vmem:[%s3 + $0x8] sm:$0xf]
      %v1410 = vld [vmem:[%s3 + $0xc] sm:$0xf]
      %v1411 = vld [vmem:[%s3 + $0x10] sm:$0xf]
      %v1412 = vld [vmem:[%s3 + $0x14] sm:$0xf]
      %v1413 = vld [vmem:[%s3 + $0x18] sm:$0xf]
      %v1414 = vld [vmem:[%s3 + $0x1c] sm:$0xf]
      %v1415 = vld [vmem:[%s3 + $0x20] sm:$0xf]
      %v1416 = vld [vmem:[%s3 + $0x24] sm:$0xf]
      %v1417 = vld [vmem:[%s3 + $0x28] sm:$0xf]
      %v1418 = vld [vmem:[%s3 + $0x2c] sm:$0xf]
      %v1419 = vld [vmem:[%s3 + $0x30] sm:$0xf]
      %v1420 = vld [vmem:[%s3 + $0x34] sm:$0xf]
      %v1421 = vld [vmem:[%s3 + $0x38] sm:$0xf]
      %v1422 = vld [vmem:[%s3 + $0x3c] sm:$0xf]
      %v1423 = vld [vmem:[%s3 + $0x40] sm:$0xf]
      %v1424 = vld [vmem:[%s3 + $0x44] sm:$0xf]
      %v1425 = vld [vmem:[%s3 + $0x48] sm:$0xf]
      %v1426 = vld [vmem:[%s3 + $0x4c] sm:$0xf]
      %v1427 = vld [vmem:[%s3 + $0x50] sm:$0xf]
      %v1428 = vld [vmem:[%s3 + $0x54] sm:$0xf]
      %v1429 = vld [vmem:[%s3 + $0x58] sm:$0xf]
      %v1430 = vld [vmem:[%s3 + $0x5c] sm:$0xf]
      %v1431 = vpack.c.bf16 %v1384, %v1383
      %v1432 = vpack.c.bf16 %v1392, %v1391
      %v1433 = vpack.c.bf16 %v1386, %v1385
      %v1434 = vpack.c.bf16 %v1394, %v1393
      %v1435 = vpack.c.bf16 %v1388, %v1387
      %v1436 = vpack.c.bf16 %v1396, %v1395
      %v1437 = vpack.c.bf16 %v1390, %v1389
      %v1438 = vpack.c.bf16 %v1398, %v1397
      %s1439 = scalar_lea.vmem %s3, 96
      %v1440 = vld [vmem:[%s1439] sm:$0xf]
      %v1441 = vld [vmem:[%s1439 + $0x4] sm:$0xf]
      %v1442 = vld [vmem:[%s1439 + $0x8] sm:$0xf]
      %v1443 = vld [vmem:[%s1439 + $0xc] sm:$0xf]
      %v1444 = vld [vmem:[%s1439 + $0x10] sm:$0xf]
      %v1445 = vld [vmem:[%s1439 + $0x14] sm:$0xf]
      %v1446 = vld [vmem:[%s1439 + $0x18] sm:$0xf]
      %v1447 = vld [vmem:[%s1439 + $0x1c] sm:$0xf]
      %v1448 = vld [vmem:[%s1439 + $0x20] sm:$0xf]
      %v1449 = vld [vmem:[%s1439 + $0x24] sm:$0xf]
      %v1450 = vld [vmem:[%s1439 + $0x28] sm:$0xf]
      %v1451 = vld [vmem:[%s1439 + $0x2c] sm:$0xf]
      %v1452 = vld [vmem:[%s1439 + $0x30] sm:$0xf]
      %v1453 = vld [vmem:[%s1439 + $0x34] sm:$0xf]
      %v1454 = vld [vmem:[%s1439 + $0x38] sm:$0xf]
      %v1455 = vld [vmem:[%s1439 + $0x3c] sm:$0xf]
      %v1456 = vld [vmem:[%s1439 + $0x40] sm:$0xf]
      %v1457 = vld [vmem:[%s1439 + $0x44] sm:$0xf]
      %v1458 = vld [vmem:[%s1439 + $0x48] sm:$0xf]
      %v1459 = vld [vmem:[%s1439 + $0x4c] sm:$0xf]
      %v1460 = vld [vmem:[%s1439 + $0x50] sm:$0xf]
      %v1461 = vld [vmem:[%s1439 + $0x54] sm:$0xf]
      %v1462 = vld [vmem:[%s1439 + $0x58] sm:$0xf]
      %v1463 = vld [vmem:[%s1439 + $0x5c] sm:$0xf]
      %v1488 = vunpack.c.l.b16 %v1440
      %v1489 = vunpack.c.l.b16 %v1441
      %v1490 = vunpack.c.l.b16 %v1442
      %v1491 = vunpack.c.l.b16 %v1443
      %v1492 = vunpack.c.l.b16 %v1444
      %v1493 = vunpack.c.l.b16 %v1445
      %v1494 = vunpack.c.l.b16 %v1446
      %v1495 = vunpack.c.l.b16 %v1447
      %v1496 = vunpack.c.l.b16 %v1448
      %v1497 = vunpack.c.l.b16 %v1449
      %v1498 = vunpack.c.l.b16 %v1450
      %v1499 = vunpack.c.l.b16 %v1451
      %v1500 = vunpack.c.l.b16 %v1452
      %v1501 = vunpack.c.l.b16 %v1453
      %v1502 = vunpack.c.l.b16 %v1454
      %v1503 = vunpack.c.l.b16 %v1455
      %v1504 = vunpack.c.l.b16 %v1456
      %v1505 = vunpack.c.l.b16 %v1457
      %v1506 = vunpack.c.l.b16 %v1458
      %v1507 = vunpack.c.l.b16 %v1459
      %v1508 = vunpack.c.l.b16 %v1460
      %v1509 = vunpack.c.l.b16 %v1461
      %v1510 = vunpack.c.l.b16 %v1462
      %v1511 = vunpack.c.l.b16 %v1463
      %v1512 = vpack.c.b16 %v1489, %v1488
      %v1513 = vpack.c.b16 %v1491, %v1490
      %v1514 = vpack.c.b16 %v1493, %v1492
      %v1515 = vpack.c.b16 %v1495, %v1494
      %v1516 = vpack.c.b16 %v1497, %v1496
      %v1517 = vpack.c.b16 %v1499, %v1498
      %v1518 = vpack.c.b16 %v1501, %v1500
      %v1519 = vpack.c.b16 %v1503, %v1502
      %v1520 = vpack.c.b16 %v1505, %v1504
      %v1521 = vpack.c.b16 %v1507, %v1506
      %v1522 = vpack.c.b16 %v1509, %v1508
      %v1523 = vpack.c.b16 %v1511, %v1510
      %v1537 = vsel %vm1170, %v1432, 0
      %v1540 = vsel %vm1170, %v1434, 0
      %v1543 = vsel %vm1170, %v1436, 0
      %v1546 = vsel %vm1170, %v1438, 0
      %1548 = vmatprep.subr.bf16.mxu0 0
      %1549 = vmatpush1.bf16.msra.mxu0 %v1512
      %1550 = vmatprep.subr.bf16.mxu0 0
      %1551 = vmatpush1.bf16.msra.mxu0 %v1513
      %1552 = vmatprep.subr.bf16.mxu0 0
      %1553 = vmatpush1.bf16.msra.mxu0 %v1514
      %1554 = vmatprep.subr.bf16.mxu0 0
      %1555 = vmatpush1.bf16.msra.mxu0 %v1515
      %1556 = vmatprep.subr.bf16.mxu0 0
      %1557 = vmatpush1.bf16.msra.mxu0 %v1516
      %1558 = vmatprep.subr.bf16.mxu0 0
      %1559 = vmatpush1.bf16.msra.mxu0 %v1517
      %1560 = vmatprep.subr.bf16.mxu0 0
      %1561 = vmatpush1.bf16.msra.mxu0 %v1518
      %1562 = vmatprep.subr.bf16.mxu0 0
      %1563 = vmatpush1.bf16.msra.mxu0 %v1519
      %1564 = vmatprep.subr.bf16.mxu0 0
      %1565 = vmatpush1.bf16.msra.mxu0 %v1520
      %1566 = vmatprep.subr.bf16.mxu0 0
      %1567 = vmatpush1.bf16.msra.mxu0 %v1521
      %1568 = vmatprep.subr.bf16.mxu0 0
      %1569 = vmatpush1.bf16.msra.mxu0 %v1522
      %1570 = vmatprep.subr.bf16.mxu0 0
      %1571 = vmatpush1.bf16.msra.mxu0 %v1523
      %1572 = vmatprep.subr.bf16.mxu0 0
      %1573 = vmatpush1.bf16.msra.mxu0 0
      %1574 = vmatprep.subr.bf16.mxu0 0
      %1575 = vmatpush1.bf16.msra.mxu0 0
      %1576 = vmatprep.subr.bf16.mxu0 0
      %1577 = vmatpush1.bf16.msra.mxu0 0
      %1578 = vmatprep.subr.bf16.mxu0 0
      %1579 = vmatpush1.bf16.msra.mxu0 0
      %1580 = vmatprep.mubr.bf16.mxu0 %v1537
      %1581 = vmatmul.mubr.bf16.gmra.mrb[0].mxu0 %v1431
      %v1582 = vpop.f32.mrb[0].mxu0
      %v1583 = vadd.f32 0.0, %v1582
      %v1584 = vpop.f32.mrb[0].mxu0
      %v1585 = vpop.f32.mrb[0].mxu0
      %v1586 = vadd.f32 0.0, %v1585
      %v1587 = vpop.f32.mrb[0].mxu0
      %1588 = vmatprep.mubr.bf16.mxu0 %v1540
      %1589 = vmatmul.mubr.bf16.gmra.mrb[0].mxu0 %v1433
      %v1590 = vpop.f32.mrb[0].mxu0
      %v1591 = vadd.f32 0.0, %v1590
      %v1592 = vpop.f32.mrb[0].mxu0
      %v1593 = vpop.f32.mrb[0].mxu0
      %v1594 = vadd.f32 0.0, %v1593
      %v1595 = vpop.f32.mrb[0].mxu0
      %1596 = vmatprep.mubr.bf16.mxu0 %v1543
      %1597 = vmatmul.mubr.bf16.gmra.mrb[0].mxu0 %v1435
      %v1598 = vpop.f32.mrb[0].mxu0
      %v1599 = vadd.f32 0.0, %v1598
      %v1600 = vpop.f32.mrb[0].mxu0
      %v1601 = vpop.f32.mrb[0].mxu0
      %v1602 = vadd.f32 0.0, %v1601
      %v1603 = vpop.f32.mrb[0].mxu0
      %1604 = vmatprep.mubr.bf16.mxu0 %v1546
      %1605 = vmatmul.mubr.bf16.gmra.mrb[0].mxu0 %v1437
      %v1606 = vpop.f32.mrb[0].mxu0
      %v1607 = vadd.f32 0.0, %v1606
      %v1608 = vpop.f32.mrb[0].mxu0
      %v1609 = vpop.f32.mrb[0].mxu0
      %v1610 = vadd.f32 0.0, %v1609
      %v1611 = vpop.f32.mrb[0].mxu0
      %1612 = vdwg.mxu0
      %v1637 = vunpack.c.l.b16 %v1407
      %v1638 = vunpack.c.l.b16 %v1408
      %v1639 = vunpack.c.l.b16 %v1409
      %v1640 = vunpack.c.l.b16 %v1410
      %v1641 = vunpack.c.l.b16 %v1411
      %v1642 = vunpack.c.l.b16 %v1412
      %v1643 = vunpack.c.l.b16 %v1413
      %v1644 = vunpack.c.l.b16 %v1414
      %v1645 = vunpack.c.l.b16 %v1415
      %v1646 = vunpack.c.l.b16 %v1416
      %v1647 = vunpack.c.l.b16 %v1417
      %v1648 = vunpack.c.l.b16 %v1418
      %v1649 = vunpack.c.l.b16 %v1419
      %v1650 = vunpack.c.l.b16 %v1420
      %v1651 = vunpack.c.l.b16 %v1421
      %v1652 = vunpack.c.l.b16 %v1422
      %v1653 = vunpack.c.l.b16 %v1423
      %v1654 = vunpack.c.l.b16 %v1424
      %v1655 = vunpack.c.l.b16 %v1425
      %v1656 = vunpack.c.l.b16 %v1426
      %v1657 = vunpack.c.l.b16 %v1427
      %v1658 = vunpack.c.l.b16 %v1428
      %v1659 = vunpack.c.l.b16 %v1429
      %v1660 = vunpack.c.l.b16 %v1430
      %v1661 = vpack.c.b16 %v1638, %v1637
      %v1662 = vpack.c.b16 %v1640, %v1639
      %v1663 = vpack.c.b16 %v1642, %v1641
      %v1664 = vpack.c.b16 %v1644, %v1643
      %v1665 = vpack.c.b16 %v1646, %v1645
      %v1666 = vpack.c.b16 %v1648, %v1647
      %v1667 = vpack.c.b16 %v1650, %v1649
      %v1668 = vpack.c.b16 %v1652, %v1651
      %v1669 = vpack.c.b16 %v1654, %v1653
      %v1670 = vpack.c.b16 %v1656, %v1655
      %v1671 = vpack.c.b16 %v1658, %v1657
      %v1672 = vpack.c.b16 %v1660, %v1659
      %v1686 = vsel %vm1170, %v1400, 0
      %v1689 = vsel %vm1170, %v1402, 0
      %v1692 = vsel %vm1170, %v1404, 0
      %v1695 = vsel %vm1170, %v1406, 0
      %1697 = vmatprep.subr.bf16.mxu0 0
      %1698 = vmatpush1.bf16.msra.mxu0 %v1661
      %1699 = vmatprep.subr.bf16.mxu0 0
      %1700 = vmatpush1.bf16.msra.mxu0 %v1662
      %1701 = vmatprep.subr.bf16.mxu0 0
      %1702 = vmatpush1.bf16.msra.mxu0 %v1663
      %1703 = vmatprep.subr.bf16.mxu0 0
      %1704 = vmatpush1.bf16.msra.mxu0 %v1664
      %1705 = vmatprep.subr.bf16.mxu0 0
      %1706 = vmatpush1.bf16.msra.mxu0 %v1665
      %1707 = vmatprep.subr.bf16.mxu0 0
      %1708 = vmatpush1.bf16.msra.mxu0 %v1666
      %1709 = vmatprep.subr.bf16.mxu0 0
      %1710 = vmatpush1.bf16.msra.mxu0 %v1667
      %1711 = vmatprep.subr.bf16.mxu0 0
      %1712 = vmatpush1.bf16.msra.mxu0 %v1668
      %1713 = vmatprep.subr.bf16.mxu0 0
      %1714 = vmatpush1.bf16.msra.mxu0 %v1669
      %1715 = vmatprep.subr.bf16.mxu0 0
      %1716 = vmatpush1.bf16.msra.mxu0 %v1670
      %1717 = vmatprep.subr.bf16.mxu0 0
      %1718 = vmatpush1.bf16.msra.mxu0 %v1671
      %1719 = vmatprep.subr.bf16.mxu0 0
      %1720 = vmatpush1.bf16.msra.mxu0 %v1672
      %1721 = vmatprep.subr.bf16.mxu0 0
      %1722 = vmatpush1.bf16.msra.mxu0 0
      %1723 = vmatprep.subr.bf16.mxu0 0
      %1724 = vmatpush1.bf16.msra.mxu0 0
      %1725 = vmatprep.subr.bf16.mxu0 0
      %1726 = vmatpush1.bf16.msra.mxu0 0
      %1727 = vmatprep.subr.bf16.mxu0 0
      %1728 = vmatpush1.bf16.msra.mxu0 0
      %1729 = vmatprep.mubr.bf16.mxu0 %v1686
      %1730 = vmatmul.mubr.bf16.gmra.mrb[0].mxu0 %v1399
      %v1731 = vpop.f32.mrb[0].mxu0
      %v1732 = vadd.f32 %v1583, %v1731
      %v1733 = vpop.f32.mrb[0].mxu0
      %v1734 = vpop.f32.mrb[0].mxu0
      %v1735 = vadd.f32 %v1586, %v1734
      %v1736 = vpop.f32.mrb[0].mxu0
      %1737 = vmatprep.mubr.bf16.mxu0 %v1689
      %1738 = vmatmul.mubr.bf16.gmra.mrb[0].mxu0 %v1401
      %v1739 = vpop.f32.mrb[0].mxu0
      %v1740 = vadd.f32 %v1591, %v1739
      %v1741 = vpop.f32.mrb[0].mxu0
      %v1742 = vpop.f32.mrb[0].mxu0
      %v1743 = vadd.f32 %v1594, %v1742
      %v1744 = vpop.f32.mrb[0].mxu0
      %1745 = vmatprep.mubr.bf16.mxu0 %v1692
      %1746 = vmatmul.mubr.bf16.gmra.mrb[0].mxu0 %v1403
      %v1747 = vpop.f32.mrb[0].mxu0
      %v1748 = vadd.f32 %v1599, %v1747
      %v1749 = vpop.f32.mrb[0].mxu0
      %v1750 = vpop.f32.mrb[0].mxu0
      %v1751 = vadd.f32 %v1602, %v1750
      %v1752 = vpop.f32.mrb[0].mxu0
      %1753 = vmatprep.mubr.bf16.mxu0 %v1695
      %1754 = vmatmul.mubr.bf16.gmra.mrb[0].mxu0 %v1405
      %v1755 = vpop.f32.mrb[0].mxu0
      %v1756 = vadd.f32 %v1607, %v1755
      %v1757 = vpop.f32.mrb[0].mxu0
      %v1758 = vpop.f32.mrb[0].mxu0
      %v1759 = vadd.f32 %v1610, %v1758
      %v1760 = vpop.f32.mrb[0].mxu0
      %1761 = vdwg.mxu0
      %v1762 = vpack.c.bf16 %v1183, %v1182
      %v1763 = vpack.c.bf16 %v1192, %v1191
      %v1764 = vpack.c.bf16 %v1185, %v1184
      %v1765 = vpack.c.bf16 %v1194, %v1193
      %v1766 = vpack.c.bf16 %v1187, %v1186
      %v1767 = vpack.c.bf16 %v1196, %v1195
      %v1768 = vpack.c.bf16 %v1189, %v1188
      %v1769 = vpack.c.bf16 %v1198, %v1197
      %s1770 = scalar_lea.vmem %s3, 192
      %v1771 = vld [vmem:[%s1770] sm:$0xf]
      %v1772 = vld [vmem:[%s1770 + $0x4] sm:$0xf]
      %v1773 = vld [vmem:[%s1770 + $0x8] sm:$0xf]
      %v1774 = vld [vmem:[%s1770 + $0xc] sm:$0xf]
      %v1775 = vld [vmem:[%s1770 + $0x10] sm:$0xf]
      %v1776 = vld [vmem:[%s1770 + $0x14] sm:$0xf]
      %v1777 = vld [vmem:[%s1770 + $0x18] sm:$0xf]
      %v1778 = vld [vmem:[%s1770 + $0x1c] sm:$0xf]
      %v1779 = vld [vmem:[%s1770 + $0x20] sm:$0xf]
      %v1780 = vld [vmem:[%s1770 + $0x24] sm:$0xf]
      %v1781 = vld [vmem:[%s1770 + $0x28] sm:$0xf]
      %v1782 = vld [vmem:[%s1770 + $0x2c] sm:$0xf]
      %v1783 = vld [vmem:[%s1770 + $0x30] sm:$0xf]
      %v1784 = vld [vmem:[%s1770 + $0x34] sm:$0xf]
      %v1785 = vld [vmem:[%s1770 + $0x38] sm:$0xf]
      %v1786 = vld [vmem:[%s1770 + $0x3c] sm:$0xf]
      %v1787 = vld [vmem:[%s1770 + $0x40] sm:$0xf]
      %v1788 = vld [vmem:[%s1770 + $0x44] sm:$0xf]
      %v1789 = vld [vmem:[%s1770 + $0x48] sm:$0xf]
      %v1790 = vld [vmem:[%s1770 + $0x4c] sm:$0xf]
      %v1791 = vld [vmem:[%s1770 + $0x50] sm:$0xf]
      %v1792 = vld [vmem:[%s1770 + $0x54] sm:$0xf]
      %v1793 = vld [vmem:[%s1770 + $0x58] sm:$0xf]
      %v1794 = vld [vmem:[%s1770 + $0x5c] sm:$0xf]
      %v1819 = vunpack.c.l.b16 %v1771
      %v1820 = vunpack.c.l.b16 %v1772
      %v1821 = vunpack.c.l.b16 %v1773
      %v1822 = vunpack.c.l.b16 %v1774
      %v1823 = vunpack.c.l.b16 %v1775
      %v1824 = vunpack.c.l.b16 %v1776
      %v1825 = vunpack.c.l.b16 %v1777
      %v1826 = vunpack.c.l.b16 %v1778
      %v1827 = vunpack.c.l.b16 %v1779
      %v1828 = vunpack.c.l.b16 %v1780
      %v1829 = vunpack.c.l.b16 %v1781
      %v1830 = vunpack.c.l.b16 %v1782
      %v1831 = vunpack.c.l.b16 %v1783
      %v1832 = vunpack.c.l.b16 %v1784
      %v1833 = vunpack.c.l.b16 %v1785
      %v1834 = vunpack.c.l.b16 %v1786
      %v1835 = vunpack.c.l.b16 %v1787
      %v1836 = vunpack.c.l.b16 %v1788
      %v1837 = vunpack.c.l.b16 %v1789
      %v1838 = vunpack.c.l.b16 %v1790
      %v1839 = vunpack.c.l.b16 %v1791
      %v1840 = vunpack.c.l.b16 %v1792
      %v1841 = vunpack.c.l.b16 %v1793
      %v1842 = vunpack.c.l.b16 %v1794
      %v1843 = vpack.c.b16 %v1820, %v1819
      %v1844 = vpack.c.b16 %v1822, %v1821
      %v1845 = vpack.c.b16 %v1824, %v1823
      %v1846 = vpack.c.b16 %v1826, %v1825
      %v1847 = vpack.c.b16 %v1828, %v1827
      %v1848 = vpack.c.b16 %v1830, %v1829
      %v1849 = vpack.c.b16 %v1832, %v1831
      %v1850 = vpack.c.b16 %v1834, %v1833
      %v1851 = vpack.c.b16 %v1836, %v1835
      %v1852 = vpack.c.b16 %v1838, %v1837
      %v1853 = vpack.c.b16 %v1840, %v1839
      %v1854 = vpack.c.b16 %v1842, %v1841
      %v1868 = vsel %vm1170, %v1763, 0
      %v1871 = vsel %vm1170, %v1765, 0
      %v1874 = vsel %vm1170, %v1767, 0
      %v1877 = vsel %vm1170, %v1769, 0
      %1879 = vmatprep.subr.bf16.mxu0 0
      %1880 = vmatpush1.bf16.msra.mxu0 %v1843
      %1881 = vmatprep.subr.bf16.mxu0 0
      %1882 = vmatpush1.bf16.msra.mxu0 %v1844
      %1883 = vmatprep.subr.bf16.mxu0 0
      %1884 = vmatpush1.bf16.msra.mxu0 %v1845
      %1885 = vmatprep.subr.bf16.mxu0 0
      %1886 = vmatpush1.bf16.msra.mxu0 %v1846
      %1887 = vmatprep.subr.bf16.mxu0 0
      %1888 = vmatpush1.bf16.msra.mxu0 %v1847
      %1889 = vmatprep.subr.bf16.mxu0 0
      %1890 = vmatpush1.bf16.msra.mxu0 %v1848
      %1891 = vmatprep.subr.bf16.mxu0 0
      %1892 = vmatpush1.bf16.msra.mxu0 %v1849
      %1893 = vmatprep.subr.bf16.mxu0 0
      %1894 = vmatpush1.bf16.msra.mxu0 %v1850
      %1895 = vmatprep.subr.bf16.mxu0 0
      %1896 = vmatpush1.bf16.msra.mxu0 %v1851
      %1897 = vmatprep.subr.bf16.mxu0 0
      %1898 = vmatpush1.bf16.msra.mxu0 %v1852
      %1899 = vmatprep.subr.bf16.mxu0 0
      %1900 = vmatpush1.bf16.msra.mxu0 %v1853
      %1901 = vmatprep.subr.bf16.mxu0 0
      %1902 = vmatpush1.bf16.msra.mxu0 %v1854
      %1903 = vmatprep.subr.bf16.mxu0 0
      %1904 = vmatpush1.bf16.msra.mxu0 0
      %1905 = vmatprep.subr.bf16.mxu0 0
      %1906 = vmatpush1.bf16.msra.mxu0 0
      %1907 = vmatprep.subr.bf16.mxu0 0
      %1908 = vmatpush1.bf16.msra.mxu0 0
      %1909 = vmatprep.subr.bf16.mxu0 0
      %1910 = vmatpush1.bf16.msra.mxu0 0
      %1911 = vmatprep.mubr.bf16.mxu0 %v1868
      %1912 = vmatmul.mubr.bf16.gmra.mrb[0].mxu0 %v1762
      %v1913 = vpop.f32.mrb[0].mxu0
      %v1914 = vadd.f32 0.0, %v1913
      %v1915 = vpop.f32.mrb[0].mxu0
      %v1916 = vpop.f32.mrb[0].mxu0
      %v1917 = vadd.f32 0.0, %v1916
      %v1918 = vpop.f32.mrb[0].mxu0
      %1919 = vmatprep.mubr.bf16.mxu0 %v1871
      %1920 = vmatmul.mubr.bf16.gmra.mrb[0].mxu0 %v1764
      %v1921 = vpop.f32.mrb[0].mxu0
      %v1922 = vadd.f32 0.0, %v1921
      %v1923 = vpop.f32.mrb[0].mxu0
      %v1924 = vpop.f32.mrb[0].mxu0
      %v1925 = vadd.f32 0.0, %v1924
      %v1926 = vpop.f32.mrb[0].mxu0
      %1927 = vmatprep.mubr.bf16.mxu0 %v1874
      %1928 = vmatmul.mubr.bf16.gmra.mrb[0].mxu0 %v1766
      %v1929 = vpop.f32.mrb[0].mxu0
      %v1930 = vadd.f32 0.0, %v1929
      %v1931 = vpop.f32.mrb[0].mxu0
      %v1932 = vpop.f32.mrb[0].mxu0
      %v1933 = vadd.f32 0.0, %v1932
      %v1934 = vpop.f32.mrb[0].mxu0
      %1935 = vmatprep.mubr.bf16.mxu0 %v1877
      %1936 = vmatmul.mubr.bf16.gmra.mrb[0].mxu0 %v1768
      %v1937 = vpop.f32.mrb[0].mxu0
      %v1938 = vadd.f32 0.0, %v1937
      %v1939 = vpop.f32.mrb[0].mxu0
      %v1940 = vpop.f32.mrb[0].mxu0
      %v1941 = vadd.f32 0.0, %v1940
      %v1942 = vpop.f32.mrb[0].mxu0
      %1943 = vdwg.mxu0
      %v1944 = vadd.f32 %v1732, %v1914
      %v1945 = vadd.f32 %v1735, %v1917
      %v1946 = vadd.f32 %v1740, %v1922
      %v1947 = vadd.f32 %v1743, %v1925
      %v1948 = vadd.f32 %v1748, %v1930
      %v1949 = vadd.f32 %v1751, %v1933
      %v1950 = vadd.f32 %v1756, %v1938
      %v1951 = vadd.f32 %v1759, %v1941
      %1952 = vmatprep.subr.bf16.mxu0 0
      %1953 = vmatpush1.bf16.msra.mxu0 %v1512
      %1954 = vmatprep.subr.bf16.mxu0 0
      %1955 = vmatpush1.bf16.msra.mxu0 %v1513
      %1956 = vmatprep.subr.bf16.mxu0 0
      %1957 = vmatpush1.bf16.msra.mxu0 %v1514
      %1958 = vmatprep.subr.bf16.mxu0 0
      %1959 = vmatpush1.bf16.msra.mxu0 %v1515
      %1960 = vmatprep.subr.bf16.mxu0 0
      %1961 = vmatpush1.bf16.msra.mxu0 %v1516
      %1962 = vmatprep.subr.bf16.mxu0 0
      %1963 = vmatpush1.bf16.msra.mxu0 %v1517
      %1964 = vmatprep.subr.bf16.mxu0 0
      %1965 = vmatpush1.bf16.msra.mxu0 %v1518
      %1966 = vmatprep.subr.bf16.mxu0 0
      %1967 = vmatpush1.bf16.msra.mxu0 %v1519
      %1968 = vmatprep.subr.bf16.mxu0 0
      %1969 = vmatpush1.bf16.msra.mxu0 %v1520
      %1970 = vmatprep.subr.bf16.mxu0 0
      %1971 = vmatpush1.bf16.msra.mxu0 %v1521
      %1972 = vmatprep.subr.bf16.mxu0 0
      %1973 = vmatpush1.bf16.msra.mxu0 %v1522
      %1974 = vmatprep.subr.bf16.mxu0 0
      %1975 = vmatpush1.bf16.msra.mxu0 %v1523
      %1976 = vmatprep.subr.bf16.mxu0 0
      %1977 = vmatpush1.bf16.msra.mxu0 0
      %1978 = vmatprep.subr.bf16.mxu0 0
      %1979 = vmatpush1.bf16.msra.mxu0 0
      %1980 = vmatprep.subr.bf16.mxu0 0
      %1981 = vmatpush1.bf16.msra.mxu0 0
      %1982 = vmatprep.subr.bf16.mxu0 0
      %1983 = vmatpush1.bf16.msra.mxu0 0
      %1984 = vmatprep.mubr.bf16.mxu0 %v1868
      %1985 = vmatmul.mubr.bf16.gmra.mrb[0].mxu0 %v1762
      %v1986 = vpop.f32.mrb[0].mxu0
      %v1987 = vadd.f32 0.0, %v1986
      %v1988 = vpop.f32.mrb[0].mxu0
      %v1989 = vpop.f32.mrb[0].mxu0
      %v1990 = vadd.f32 0.0, %v1989
      %v1991 = vpop.f32.mrb[0].mxu0
      %1992 = vmatprep.mubr.bf16.mxu0 %v1871
      %1993 = vmatmul.mubr.bf16.gmra.mrb[0].mxu0 %v1764
      %v1994 = vpop.f32.mrb[0].mxu0
      %v1995 = vadd.f32 0.0, %v1994
      %v1996 = vpop.f32.mrb[0].mxu0
      %v1997 = vpop.f32.mrb[0].mxu0
      %v1998 = vadd.f32 0.0, %v1997
      %v1999 = vpop.f32.mrb[0].mxu0
      %2000 = vmatprep.mubr.bf16.mxu0 %v1874
      %2001 = vmatmul.mubr.bf16.gmra.mrb[0].mxu0 %v1766
      %v2002 = vpop.f32.mrb[0].mxu0
      %v2003 = vadd.f32 0.0, %v2002
      %v2004 = vpop.f32.mrb[0].mxu0
      %v2005 = vpop.f32.mrb[0].mxu0
      %v2006 = vadd.f32 0.0, %v2005
      %v2007 = vpop.f32.mrb[0].mxu0
      %2008 = vmatprep.mubr.bf16.mxu0 %v1877
      %2009 = vmatmul.mubr.bf16.gmra.mrb[0].mxu0 %v1768
      %v2010 = vpop.f32.mrb[0].mxu0
      %v2011 = vadd.f32 0.0, %v2010
      %v2012 = vpop.f32.mrb[0].mxu0
      %v2013 = vpop.f32.mrb[0].mxu0
      %v2014 = vadd.f32 0.0, %v2013
      %v2015 = vpop.f32.mrb[0].mxu0
      %2016 = vdwg.mxu0
      %2017 = vmatprep.subr.bf16.mxu0 0
      %2018 = vmatpush1.bf16.msra.mxu0 %v1661
      %2019 = vmatprep.subr.bf16.mxu0 0
      %2020 = vmatpush1.bf16.msra.mxu0 %v1662
      %2021 = vmatprep.subr.bf16.mxu0 0
      %2022 = vmatpush1.bf16.msra.mxu0 %v1663
      %2023 = vmatprep.subr.bf16.mxu0 0
      %2024 = vmatpush1.bf16.msra.mxu0 %v1664
      %2025 = vmatprep.subr.bf16.mxu0 0
      %2026 = vmatpush1.bf16.msra.mxu0 %v1665
      %2027 = vmatprep.subr.bf16.mxu0 0
      %2028 = vmatpush1.bf16.msra.mxu0 %v1666
      %2029 = vmatprep.subr.bf16.mxu0 0
      %2030 = vmatpush1.bf16.msra.mxu0 %v1667
      %2031 = vmatprep.subr.bf16.mxu0 0
      %2032 = vmatpush1.bf16.msra.mxu0 %v1668
      %2033 = vmatprep.subr.bf16.mxu0 0
      %2034 = vmatpush1.bf16.msra.mxu0 %v1669
      %2035 = vmatprep.subr.bf16.mxu0 0
      %2036 = vmatpush1.bf16.msra.mxu0 %v1670
      %2037 = vmatprep.subr.bf16.mxu0 0
      %2038 = vmatpush1.bf16.msra.mxu0 %v1671
      %2039 = vmatprep.subr.bf16.mxu0 0
      %2040 = vmatpush1.bf16.msra.mxu0 %v1672
      %2041 = vmatprep.subr.bf16.mxu0 0
      %2042 = vmatpush1.bf16.msra.mxu0 0
      %2043 = vmatprep.subr.bf16.mxu0 0
      %2044 = vmatpush1.bf16.msra.mxu0 0
      %2045 = vmatprep.subr.bf16.mxu0 0
      %2046 = vmatpush1.bf16.msra.mxu0 0
      %2047 = vmatprep.subr.bf16.mxu0 0
      %2048 = vmatpush1.bf16.msra.mxu0 0
      %2049 = vmatprep.mubr.bf16.mxu0 %v1537
      %2050 = vmatmul.mubr.bf16.gmra.mrb[0].mxu0 %v1431
      %v2051 = vpop.f32.mrb[0].mxu0
      %v2052 = vadd.f32 %v1987, %v2051
      %v2053 = vpop.f32.mrb[0].mxu0
      %v2054 = vpop.f32.mrb[0].mxu0
      %v2055 = vadd.f32 %v1990, %v2054
      %v2056 = vpop.f32.mrb[0].mxu0
      %2057 = vmatprep.mubr.bf16.mxu0 %v1540
      %2058 = vmatmul.mubr.bf16.gmra.mrb[0].mxu0 %v1433
      %v2059 = vpop.f32.mrb[0].mxu0
      %v2060 = vadd.f32 %v1995, %v2059
      %v2061 = vpop.f32.mrb[0].mxu0
      %v2062 = vpop.f32.mrb[0].mxu0
      %v2063 = vadd.f32 %v1998, %v2062
      %v2064 = vpop.f32.mrb[0].mxu0
      %2065 = vmatprep.mubr.bf16.mxu0 %v1543
      %2066 = vmatmul.mubr.bf16.gmra.mrb[0].mxu0 %v1435
      %v2067 = vpop.f32.mrb[0].mxu0
      %v2068 = vadd.f32 %v2003, %v2067
      %v2069 = vpop.f32.mrb[0].mxu0
      %v2070 = vpop.f32.mrb[0].mxu0
      %v2071 = vadd.f32 %v2006, %v2070
      %v2072 = vpop.f32.mrb[0].mxu0
      %2073 = vmatprep.mubr.bf16.mxu0 %v1546
      %2074 = vmatmul.mubr.bf16.gmra.mrb[0].mxu0 %v1437
      %v2075 = vpop.f32.mrb[0].mxu0
      %v2076 = vadd.f32 %v2011, %v2075
      %v2077 = vpop.f32.mrb[0].mxu0
      %v2078 = vpop.f32.mrb[0].mxu0
      %v2079 = vadd.f32 %v2014, %v2078
      %v2080 = vpop.f32.mrb[0].mxu0
      %2081 = vdwg.mxu0
      %v2082 = vpack.c.bf16 %v1385, %v1384
      %v2083 = vpack.c.bf16 %v1393, %v1392
      %v2084 = vpack.c.bf16 %v1387, %v1386
      %v2085 = vpack.c.bf16 %v1395, %v1394
      %v2086 = vpack.c.bf16 %v1389, %v1388
      %v2087 = vpack.c.bf16 %v1397, %v1396
      %v2088 = vpack.c.bf16 %v1181, %v1390
      %v2089 = vpack.c.bf16 %v1190, %v1398
      %v2091 = vsel %vm1170, %v2083, 0
      %v2094 = vsel %vm1170, %v2085, 0
      %v2097 = vsel %vm1170, %v2087, 0
      %v2100 = vsel %vm1170, %v2089, 0
      %2102 = vmatprep.subr.bf16.mxu0 0
      %2103 = vmatpush1.bf16.msra.mxu0 %v1843
      %2104 = vmatprep.subr.bf16.mxu0 0
      %2105 = vmatpush1.bf16.msra.mxu0 %v1844
      %2106 = vmatprep.subr.bf16.mxu0 0
      %2107 = vmatpush1.bf16.msra.mxu0 %v1845
      %2108 = vmatprep.subr.bf16.mxu0 0
      %2109 = vmatpush1.bf16.msra.mxu0 %v1846
      %2110 = vmatprep.subr.bf16.mxu0 0
      %2111 = vmatpush1.bf16.msra.mxu0 %v1847
      %2112 = vmatprep.subr.bf16.mxu0 0
      %2113 = vmatpush1.bf16.msra.mxu0 %v1848
      %2114 = vmatprep.subr.bf16.mxu0 0
      %2115 = vmatpush1.bf16.msra.mxu0 %v1849
      %2116 = vmatprep.subr.bf16.mxu0 0
      %2117 = vmatpush1.bf16.msra.mxu0 %v1850
      %2118 = vmatprep.subr.bf16.mxu0 0
      %2119 = vmatpush1.bf16.msra.mxu0 %v1851
      %2120 = vmatprep.subr.bf16.mxu0 0
      %2121 = vmatpush1.bf16.msra.mxu0 %v1852
      %2122 = vmatprep.subr.bf16.mxu0 0
      %2123 = vmatpush1.bf16.msra.mxu0 %v1853
      %2124 = vmatprep.subr.bf16.mxu0 0
      %2125 = vmatpush1.bf16.msra.mxu0 %v1854
      %2126 = vmatprep.subr.bf16.mxu0 0
      %2127 = vmatpush1.bf16.msra.mxu0 0
      %2128 = vmatprep.subr.bf16.mxu0 0
      %2129 = vmatpush1.bf16.msra.mxu0 0
      %2130 = vmatprep.subr.bf16.mxu0 0
      %2131 = vmatpush1.bf16.msra.mxu0 0
      %2132 = vmatprep.subr.bf16.mxu0 0
      %2133 = vmatpush1.bf16.msra.mxu0 0
      %2134 = vmatprep.mubr.bf16.mxu0 %v2091
      %2135 = vmatmul.mubr.bf16.gmra.mrb[0].mxu0 %v2082
      %v2136 = vpop.f32.mrb[0].mxu0
      %v2137 = vadd.f32 0.0, %v2136
      %v2138 = vpop.f32.mrb[0].mxu0
      %v2139 = vpop.f32.mrb[0].mxu0
      %v2140 = vadd.f32 0.0, %v2139
      %v2141 = vpop.f32.mrb[0].mxu0
      %2142 = vmatprep.mubr.bf16.mxu0 %v2094
      %2143 = vmatmul.mubr.bf16.gmra.mrb[0].mxu0 %v2084
      %v2144 = vpop.f32.mrb[0].mxu0
      %v2145 = vadd.f32 0.0, %v2144
      %v2146 = vpop.f32.mrb[0].mxu0
      %v2147 = vpop.f32.mrb[0].mxu0
      %v2148 = vadd.f32 0.0, %v2147
      %v2149 = vpop.f32.mrb[0].mxu0
      %2150 = vmatprep.mubr.bf16.mxu0 %v2097
      %2151 = vmatmul.mubr.bf16.gmra.mrb[0].mxu0 %v2086
      %v2152 = vpop.f32.mrb[0].mxu0
      %v2153 = vadd.f32 0.0, %v2152
      %v2154 = vpop.f32.mrb[0].mxu0
      %v2155 = vpop.f32.mrb[0].mxu0
      %v2156 = vadd.f32 0.0, %v2155
      %v2157 = vpop.f32.mrb[0].mxu0
      %2158 = vmatprep.mubr.bf16.mxu0 %v2100
      %2159 = vmatmul.mubr.bf16.gmra.mrb[0].mxu0 %v2088
      %v2160 = vpop.f32.mrb[0].mxu0
      %v2161 = vadd.f32 0.0, %v2160
      %v2162 = vpop.f32.mrb[0].mxu0
      %v2163 = vpop.f32.mrb[0].mxu0
      %v2164 = vadd.f32 0.0, %v2163
      %v2165 = vpop.f32.mrb[0].mxu0
      %2166 = vdwg.mxu0
      %v2167 = vadd.f32 %v2052, %v2137
      %v2168 = vadd.f32 %v2055, %v2140
      %v2169 = vadd.f32 %v2060, %v2145
      %v2170 = vadd.f32 %v2063, %v2148
      %v2171 = vadd.f32 %v2068, %v2153
      %v2172 = vadd.f32 %v2071, %v2156
      %v2173 = vadd.f32 %v2076, %v2161
      %v2174 = vadd.f32 %v2079, %v2164
      %v2175 = vmax.f32 %v1944, %v2167
      %v2176 = vmax.f32 %v1945, %v2168
      %v2177 = vmax.f32 %v1946, %v2169
      %v2178 = vmax.f32 %v1947, %v2170
      %v2179 = vmax.f32 %v1948, %v2171
      %v2180 = vmax.f32 %v1949, %v2172
      %v2181 = vmax.f32 %v1950, %v2173
      %v2182 = vmax.f32 %v1951, %v2174
      %2191 = vrot.lane.b32.xlu0 %v2175, 64
      %v2192 = vpop.permute.xlu0 %2191
      %2193 = vrot.lane.b32.xlu0 %v2176, 64
      %v2194 = vpop.permute.xlu0 %2193
      %2195 = vrot.lane.b32.xlu0 %v2177, 64
      %v2196 = vpop.permute.xlu0 %2195
      %2197 = vrot.lane.b32.xlu0 %v2178, 64
      %v2198 = vpop.permute.xlu0 %2197
      %2199 = vrot.lane.b32.xlu0 %v2179, 64
      %v2200 = vpop.permute.xlu0 %2199
      %2201 = vrot.lane.b32.xlu0 %v2180, 64
      %v2202 = vpop.permute.xlu0 %2201
      %2203 = vrot.lane.b32.xlu0 %v2181, 64
      %v2204 = vpop.permute.xlu0 %2203
      %2205 = vrot.lane.b32.xlu0 %v2182, 64
      %v2206 = vpop.permute.xlu0 %2205
      %v2215 = vmax.f32 %v2175, %v2192
      %v2216 = vmax.f32 %v2176, %v2194
      %v2217 = vmax.f32 %v2177, %v2196
      %v2218 = vmax.f32 %v2178, %v2198
      %v2219 = vmax.f32 %v2179, %v2200
      %v2220 = vmax.f32 %v2180, %v2202
      %v2221 = vmax.f32 %v2181, %v2204
      %v2222 = vmax.f32 %v2182, %v2206
      %v2223 = vld [vmem:[%s4] sm:$0x1]
      %v2225 = vlaneseq
      %v2226 = vshrl.u32 %v2225, 7
      %v2227 = vsub.s32 0, %v2226
      %v2228 = vrot.slane %v2223, %v2227
      %v2230 = vadd.f32 %v2215, %v2228
      %v2231 = vadd.f32 %v2216, %v2228
      %v2232 = vadd.f32 %v2217, %v2228
      %v2233 = vadd.f32 %v2218, %v2228
      %v2234 = vadd.f32 %v2219, %v2228
      %v2235 = vadd.f32 %v2220, %v2228
      %v2236 = vadd.f32 %v2221, %v2228
      %v2237 = vadd.f32 %v2222, %v2228
      %v2238 = vmax.f32 %v2230, 0.0
      %v2239 = vmax.f32 %v2231, 0.0
      %v2240 = vmax.f32 %v2232, 0.0
      %v2241 = vmax.f32 %v2233, 0.0
      %v2242 = vmax.f32 %v2234, 0.0
      %v2243 = vmax.f32 %v2235, 0.0
      %v2244 = vmax.f32 %v2236, 0.0
      %v2245 = vmax.f32 %v2237, 0.0
      %v2246 = vpack.c.bf16 %v2239, %v2238
      %v2247 = vpack.c.bf16 %v2241, %v2240
      %v2248 = vpack.c.bf16 %v2243, %v2242
      %v2249 = vpack.c.bf16 %v2245, %v2244
      %v2254 = vunpack.c.l.b16 %v2246
      %v2255 = vunpack.c.h.b16 %v2246
      %v2256 = vunpack.c.l.b16 %v2247
      %v2257 = vunpack.c.h.b16 %v2247
      %v2258 = vunpack.c.l.b16 %v2248
      %v2259 = vunpack.c.h.b16 %v2248
      %v2260 = vunpack.c.l.b16 %v2249
      %v2261 = vunpack.c.h.b16 %v2249
      %v2262 = vpack.c.b16 %v2254, %v2254
      %v2263 = vpack.c.b16 %v2255, %v2255
      %v2264 = vpack.c.b16 %v2256, %v2256
      %v2265 = vpack.c.b16 %v2257, %v2257
      %v2266 = vpack.c.b16 %v2258, %v2258
      %v2267 = vpack.c.b16 %v2259, %v2259
      %v2268 = vpack.c.b16 %v2260, %v2260
      %v2269 = vpack.c.b16 %v2261, %v2261
      %vm2278 = vcmask 519168
      %2279 = vst.msk [vmem:[%s224] sm:$0xf] %vm2278, %v2262
      %2280 = vst.msk [vmem:[%s224 + $0x4] sm:$0xf] %vm2278, %v2263
      %2281 = vst.msk [vmem:[%s224 + $0x8] sm:$0xf] %vm2278, %v2264
      %2282 = vst.msk [vmem:[%s224 + $0xc] sm:$0xf] %vm2278, %v2265
      %2283 = vst.msk [vmem:[%s224 + $0x10] sm:$0xf] %vm2278, %v2266
      %2284 = vst.msk [vmem:[%s224 + $0x14] sm:$0xf] %vm2278, %v2267
      %2285 = vst.msk [vmem:[%s224 + $0x18] sm:$0xf] %vm2278, %v2268
      %2286 = vst.msk [vmem:[%s224 + $0x1c] sm:$0xf] %vm2278, %v2269
      %p2287 = scmp.lt.s32.totalorder %s16, 1
      %s2288 = scalar_select %p2287, %s16, 1
      %s2289 = smul.addr %s2288, 8
      %s2290 = smul.addr %s2289, 4
      %s2291 = scalar_lea.vmem %s5, %s2290
      // Predicated region
      $region41: #{network_forward.2} parent=39 // pred_check
        %p2292 = pneg %p144
      $region42: #{network_forward.2} parent=39 // pred_check_branch
        %2294 = sbr.rel (%p2292) target = $region44
      $region43: #{network_forward.2} parent=39 // pred_region
        _
      $region44: #{network_forward.2} parent=39 // pred_fallthru
        _
    $region40: #{network_forward.2} parent=5 // pred_fallthru
      _
    %p2295 = scmp.le.s32.totalorder 2, %s11
    // Predicated region
    $region45: #{network_forward.2} parent=5 // pred_check
      %p2296 = pneg %p2295
    $region46: #{network_forward.2} parent=5 // pred_check_branch
      %2298 = sbr.rel (%p2296) target = $region48
    $region47: #{network_forward.2} parent=5 // pred_region
      %s2299 = ssub.s32 %s11, 2
      // Predicated region
      $region49: #{network_forward.2} parent=47 // pred_check
        %p2300 = pneg %p150
      $region50: #{network_forward.2} parent=47 // pred_check_branch
        %2302 = sbr.rel (%p2300) target = $region52
      $region51: #{network_forward.2} parent=47 // pred_region
        %p2303 = scmp.lt.s32.totalorder %s17, 1
        %s2304 = scalar_select %p2303, %s17, 1
        %s2305 = smul.addr %s2304, 8
        %s2306 = smul.addr %s2305, 4
        %s2307 = scalar_lea.vmem %s5, %s2306
      $region52: #{network_forward.2} parent=47 // pred_fallthru
        _
    $region48: #{network_forward.2} parent=5 // pred_fallthru
      _
  $region6: #{network_forward.2} parent=0 // loop_footer
    %s15 = sadd.s32 1, %s11
  $region7: #{network_forward.2} parent=0 // loop_footer_branch
    %10 = sbr.rel target = $region3
  $region8: #{network_forward.2} parent=0 // loop_exit
    _

// kernel: network_forward.3
$region0: #{network_forward.3}
  #allocation0 [shape = 'u32[]', space=smem, size = 0x4, offset = 0x4, fixed_abs, tag = 'smem constant byte address 0x4 - core index']
  #allocation1 [shape = 'u32[144,128]{1,0:T(1,128)}', space=vmem, size = 0x12000, scoped, tag = 'internal scratch']
  %s0 = inlined_call_operand.vmem [shape: bf16[2,4096], index: 0, kind: input, shape index: {}]
  %s1 = inlined_call_operand.vmem [shape: bf16[4096,128], index: 1, kind: input, shape index: {}]
  %s2 = inlined_call_operand.vmem [shape: f32[1,128], index: 2, kind: input, shape index: {}]
  %s3 = inlined_call_operand.vmem [shape: bf16[128,128], index: 3, kind: input, shape index: {}]
  %s4 = inlined_call_operand.vmem [shape: f32[1,128], index: 4, kind: input, shape index: {}]
  %s5 = inlined_call_operand.hbm [shape: f32[2,128], index: 5, kind: output, shape index: {}]
  %s6 = sld [smem:[#allocation0]]
  $region30: #{network_forward.3} parent=0
    _
  %s8 = ssub.s32 1, %s6
  %s9 = scalar_select 0, %s8, %s6
  $region1: #{network_forward.3} parent=0
    #allocation2 [shape = 'u8[1024]{0}', space=vmem, size = 0x400, scoped, tag = 'output window, operand 0, single buffered']
    #allocation3 [shape = 's32[1]{0}', space=sflag, size = 0x4, scoped, tag = 'scoped memory for network_forward.3']
    %10 = vsyncpa [#allocation3], 0
    // Predicated region
    $region2: #{network_forward.3} parent=1 // pred_check
      _
    $region3: #{network_forward.3} parent=1 // pred_check_branch
      %12 = sbr.rel (0) target = $region5
    $region4: #{network_forward.3} parent=1 // pred_region
      _
    $region5: #{network_forward.3} parent=1 // pred_fallthru
      _
    // Predicated region
    $region6: #{network_forward.3} parent=1 // pred_check
      _
    $region7: #{network_forward.3} parent=1 // pred_check_branch
      %14 = sbr.rel (0) target = $region9
    $region8: #{network_forward.3} parent=1 // pred_region
      _
    $region9: #{network_forward.3} parent=1 // pred_fallthru
      _
    // Predicated region
    $region10: #{network_forward.3} parent=1 // pred_check
      _
    $region11: #{network_forward.3} parent=1 // pred_check_branch
      %16 = sbr.rel (0) target = $region13
    $region12: #{network_forward.3} parent=1 // pred_region
      _
    $region13: #{network_forward.3} parent=1 // pred_fallthru
      _
    // Predicated region
    $region14: #{network_forward.3} parent=1 // pred_check
      _
    $region15: #{network_forward.3} parent=1 // pred_check_branch
      %18 = sbr.rel (0) target = $region17
    $region16: #{network_forward.3} parent=1 // pred_region
      _
    $region17: #{network_forward.3} parent=1 // pred_fallthru
      _
    // Predicated region
    $region18: #{network_forward.3} parent=1 // pred_check
      _
    $region19: #{network_forward.3} parent=1 // pred_check_branch
      %20 = sbr.rel (0) target = $region21
    $region20: #{network_forward.3} parent=1 // pred_region
      _
    $region21: #{network_forward.3} parent=1 // pred_fallthru
      _
    %v22 = vld [vmem:[%s0] sm:$0xff]
    %v23 = vld [vmem:[%s0 + $0x8] sm:$0xff]
    %v24 = vld [vmem:[%s0 + $0x10] sm:$0xff]
    %v25 = vld [vmem:[%s0 + $0x18] sm:$0xff]
    %v26 = vld [vmem:[%s1] sm:$0xf]
    %v27 = vld [vmem:[%s1 + $0x4] sm:$0xf]
    %v28 = vld [vmem:[%s1 + $0x8] sm:$0xf]
    %v29 = vld [vmem:[%s1 + $0xc] sm:$0xf]
    %v30 = vld [vmem:[%s1 + $0x10] sm:$0xf]
    %v31 = vld [vmem:[%s1 + $0x14] sm:$0xf]
    %v32 = vld [vmem:[%s1 + $0x18] sm:$0xf]
    %v33 = vld [vmem:[%s1 + $0x1c] sm:$0xf]
    %v34 = vld [vmem:[%s1 + $0x20] sm:$0xf]
    %v35 = vld [vmem:[%s1 + $0x24] sm:$0xf]
    %v36 = vld [vmem:[%s1 + $0x28] sm:$0xf]
    %v37 = vld [vmem:[%s1 + $0x2c] sm:$0xf]
    %v38 = vld [vmem:[%s1 + $0x30] sm:$0xf]
    %v39 = vld [vmem:[%s1 + $0x34] sm:$0xf]
    %v40 = vld [vmem:[%s1 + $0x38] sm:$0xf]
    %v41 = vld [vmem:[%s1 + $0x3c] sm:$0xf]
    %v42 = vld [vmem:[%s1 + $0x40] sm:$0xf]
    %v43 = vld [vmem:[%s1 + $0x44] sm:$0xf]
    %v44 = vld [vmem:[%s1 + $0x48] sm:$0xf]
    %v45 = vld [vmem:[%s1 + $0x4c] sm:$0xf]
    %v46 = vld [vmem:[%s1 + $0x50] sm:$0xf]
    %v47 = vld [vmem:[%s1 + $0x54] sm:$0xf]
    %v48 = vld [vmem:[%s1 + $0x58] sm:$0xf]
    %v49 = vld [vmem:[%s1 + $0x5c] sm:$0xf]
    %v50 = vld [vmem:[%s1 + $0x60] sm:$0xf]
    %v51 = vld [vmem:[%s1 + $0x64] sm:$0xf]
    %v52 = vld [vmem:[%s1 + $0x68] sm:$0xf]
    %v53 = vld [vmem:[%s1 + $0x6c] sm:$0xf]
    %v54 = vld [vmem:[%s1 + $0x70] sm:$0xf]
    %v55 = vld [vmem:[%s1 + $0x74] sm:$0xf]
    %v56 = vld [vmem:[%s1 + $0x78] sm:$0xf]
    %v57 = vld [vmem:[%s1 + $0x7c] sm:$0xf]
    %v58 = vld [vmem:[%s1 + $0x80] sm:$0xf]
    %v59 = vld [vmem:[%s1 + $0x84] sm:$0xf]
    %v60 = vld [vmem:[%s1 + $0x88] sm:$0xf]
    %v61 = vld [vmem:[%s1 + $0x8c] sm:$0xf]
    %v62 = vld [vmem:[%s1 + $0x90] sm:$0xf]
    %v63 = vld [vmem:[%s1 + $0x94] sm:$0xf]
    %v64 = vld [vmem:[%s1 + $0x98] sm:$0xf]
    %v65 = vld [vmem:[%s1 + $0x9c] sm:$0xf]
    %v66 = vld [vmem:[%s1 + $0xa0] sm:$0xf]
    %v67 = vld [vmem:[%s1 + $0xa4] sm:$0xf]
    %v68 = vld [vmem:[%s1 + $0xa8] sm:$0xf]
    %v69 = vld [vmem:[%s1 + $0xac] sm:$0xf]
    %v70 = vld [vmem:[%s1 + $0xb0] sm:$0xf]
    %v71 = vld [vmem:[%s1 + $0xb4] sm:$0xf]
    %v72 = vld [vmem:[%s1 + $0xb8] sm:$0xf]
    %v73 = vld [vmem:[%s1 + $0xbc] sm:$0xf]
    %v74 = vld [vmem:[%s1 + $0xc0] sm:$0xf]
    %v75 = vld [vmem:[%s1 + $0xc4] sm:$0xf]
    %v76 = vld [vmem:[%s1 + $0xc8] sm:$0xf]
    %v77 = vld [vmem:[%s1 + $0xcc] sm:$0xf]
    %v78 = vld [vmem:[%s1 + $0xd0] sm:$0xf]
    %v79 = vld [vmem:[%s1 + $0xd4] sm:$0xf]
    %v80 = vld [vmem:[%s1 + $0xd8] sm:$0xf]
    %v81 = vld [vmem:[%s1 + $0xdc] sm:$0xf]
    %v82 = vld [vmem:[%s1 + $0xe0] sm:$0xf]
    %v83 = vld [vmem:[%s1 + $0xe4] sm:$0xf]
    %v84 = vld [vmem:[%s1 + $0xe8] sm:$0xf]
    %v85 = vld [vmem:[%s1 + $0xec] sm:$0xf]
    %v86 = vld [vmem:[%s1 + $0xf0] sm:$0xf]
    %v87 = vld [vmem:[%s1 + $0xf4] sm:$0xf]
    %v88 = vld [vmem:[%s1 + $0xf8] sm:$0xf]
    %v89 = vld [vmem:[%s1 + $0xfc] sm:$0xf]
    %v90 = vld [vmem:[%s1 + $0x100] sm:$0xf]
    %v91 = vld [vmem:[%s1 + $0x104] sm:$0xf]
    %v92 = vld [vmem:[%s1 + $0x108] sm:$0xf]
    %v93 = vld [vmem:[%s1 + $0x10c] sm:$0xf]
    %v94 = vld [vmem:[%s1 + $0x110] sm:$0xf]
    %v95 = vld [vmem:[%s1 + $0x114] sm:$0xf]
    %v96 = vld [vmem:[%s1 + $0x118] sm:$0xf]
    %v97 = vld [vmem:[%s1 + $0x11c] sm:$0xf]
    %v98 = vld [vmem:[%s1 + $0x120] sm:$0xf]
    %v99 = vld [vmem:[%s1 + $0x124] sm:$0xf]
    %v100 = vld [vmem:[%s1 + $0x128] sm:$0xf]
    %v101 = vld [vmem:[%s1 + $0x12c] sm:$0xf]
    %v102 = vld [vmem:[%s1 + $0x130] sm:$0xf]
    %v103 = vld [vmem:[%s1 + $0x134] sm:$0xf]
    %v104 = vld [vmem:[%s1 + $0x138] sm:$0xf]
    %v105 = vld [vmem:[%s1 + $0x13c] sm:$0xf]
    %v106 = vld [vmem:[%s1 + $0x140] sm:$0xf]
    %v107 = vld [vmem:[%s1 + $0x144] sm:$0xf]
    %v108 = vld [vmem:[%s1 + $0x148] sm:$0xf]
    %v109 = vld [vmem:[%s1 + $0x14c] sm:$0xf]
    %v110 = vld [vmem:[%s1 + $0x150] sm:$0xf]
    %v111 = vld [vmem:[%s1 + $0x154] sm:$0xf]
    %v112 = vld [vmem:[%s1 + $0x158] sm:$0xf]
    %v113 = vld [vmem:[%s1 + $0x15c] sm:$0xf]
    %v114 = vld [vmem:[%s1 + $0x160] sm:$0xf]
    %v115 = vld [vmem:[%s1 + $0x164] sm:$0xf]
    %v116 = vld [vmem:[%s1 + $0x168] sm:$0xf]
    %v117 = vld [vmem:[%s1 + $0x16c] sm:$0xf]
    %v118 = vld [vmem:[%s1 + $0x170] sm:$0xf]
    %v119 = vld [vmem:[%s1 + $0x174] sm:$0xf]
    %v120 = vld [vmem:[%s1 + $0x178] sm:$0xf]
    %v121 = vld [vmem:[%s1 + $0x17c] sm:$0xf]
    %v122 = vld [vmem:[%s1 + $0x180] sm:$0xf]
    %v123 = vld [vmem:[%s1 + $0x184] sm:$0xf]
    %v124 = vld [vmem:[%s1 + $0x188] sm:$0xf]
    %v125 = vld [vmem:[%s1 + $0x18c] sm:$0xf]
    %v126 = vld [vmem:[%s1 + $0x190] sm:$0xf]
    %v127 = vld [vmem:[%s1 + $0x194] sm:$0xf]
    %v128 = vld [vmem:[%s1 + $0x198] sm:$0xf]
    %v129 = vld [vmem:[%s1 + $0x19c] sm:$0xf]
    %v130 = vld [vmem:[%s1 + $0x1a0] sm:$0xf]
    %v131 = vld [vmem:[%s1 + $0x1a4] sm:$0xf]
    %v132 = vld [vmem:[%s1 + $0x1a8] sm:$0xf]
    %v133 = vld [vmem:[%s1 + $0x1ac] sm:$0xf]
    %v134 = vld [vmem:[%s1 + $0x1b0] sm:$0xf]
    %v135 = vld [vmem:[%s1 + $0x1b4] sm:$0xf]
    %v136 = vld [vmem:[%s1 + $0x1b8] sm:$0xf]
    %v137 = vld [vmem:[%s1 + $0x1bc] sm:$0xf]
    %v138 = vld [vmem:[%s1 + $0x1c0] sm:$0xf]
    %v139 = vld [vmem:[%s1 + $0x1c4] sm:$0xf]
    %v140 = vld [vmem:[%s1 + $0x1c8] sm:$0xf]
    %v141 = vld [vmem:[%s1 + $0x1cc] sm:$0xf]
    %v142 = vld [vmem:[%s1 + $0x1d0] sm:$0xf]
    %v143 = vld [vmem:[%s1 + $0x1d4] sm:$0xf]
    %v144 = vld [vmem:[%s1 + $0x1d8] sm:$0xf]
    %v145 = vld [vmem:[%s1 + $0x1dc] sm:$0xf]
    %v146 = vld [vmem:[%s1 + $0x1e0] sm:$0xf]
    %v147 = vld [vmem:[%s1 + $0x1e4] sm:$0xf]
    %v148 = vld [vmem:[%s1 + $0x1e8] sm:$0xf]
    %v149 = vld [vmem:[%s1 + $0x1ec] sm:$0xf]
    %v150 = vld [vmem:[%s1 + $0x1f0] sm:$0xf]
    %v151 = vld [vmem:[%s1 + $0x1f4] sm:$0xf]
    %v152 = vld [vmem:[%s1 + $0x1f8] sm:$0xf]
    %v153 = vld [vmem:[%s1 + $0x1fc] sm:$0xf]
    %v154 = vld [vmem:[%s1 + $0x200] sm:$0xf]
    %v155 = vld [vmem:[%s1 + $0x204] sm:$0xf]
    %v156 = vld [vmem:[%s1 + $0x208] sm:$0xf]
    %v157 = vld [vmem:[%s1 + $0x20c] sm:$0xf]
    %v158 = vld [vmem:[%s1 + $0x210] sm:$0xf]
    %v159 = vld [vmem:[%s1 + $0x214] sm:$0xf]
    %v160 = vld [vmem:[%s1 + $0x218] sm:$0xf]
    %v161 = vld [vmem:[%s1 + $0x21c] sm:$0xf]
    %v162 = vld [vmem:[%s1 + $0x220] sm:$0xf]
    %v163 = vld [vmem:[%s1 + $0x224] sm:$0xf]
    %v164 = vld [vmem:[%s1 + $0x228] sm:$0xf]
    %v165 = vld [vmem:[%s1 + $0x22c] sm:$0xf]
    %v166 = vld [vmem:[%s1 + $0x230] sm:$0xf]
    %v167 = vld [vmem:[%s1 + $0x234] sm:$0xf]
    %v168 = vld [vmem:[%s1 + $0x238] sm:$0xf]
    %v169 = vld [vmem:[%s1 + $0x23c] sm:$0xf]
    %v170 = vld [vmem:[%s1 + $0x240] sm:$0xf]
    %v171 = vld [vmem:[%s1 + $0x244] sm:$0xf]
    %v172 = vld [vmem:[%s1 + $0x248] sm:$0xf]
    %v173 = vld [vmem:[%s1 + $0x24c] sm:$0xf]
    %v174 = vld [vmem:[%s1 + $0x250] sm:$0xf]
    %v175 = vld [vmem:[%s1 + $0x254] sm:$0xf]
    %v176 = vld [vmem:[%s1 + $0x258] sm:$0xf]
    %v177 = vld [vmem:[%s1 + $0x25c] sm:$0xf]
    %v178 = vld [vmem:[%s1 + $0x260] sm:$0xf]
    %v179 = vld [vmem:[%s1 + $0x264] sm:$0xf]
    %v180 = vld [vmem:[%s1 + $0x268] sm:$0xf]
    %v181 = vld [vmem:[%s1 + $0x26c] sm:$0xf]
    %v182 = vld [vmem:[%s1 + $0x270] sm:$0xf]
    %v183 = vld [vmem:[%s1 + $0x274] sm:$0xf]
    %v184 = vld [vmem:[%s1 + $0x278] sm:$0xf]
    %v185 = vld [vmem:[%s1 + $0x27c] sm:$0xf]
    %v186 = vld [vmem:[%s1 + $0x280] sm:$0xf]
    %v187 = vld [vmem:[%s1 + $0x284] sm:$0xf]
    %v188 = vld [vmem:[%s1 + $0x288] sm:$0xf]
    %v189 = vld [vmem:[%s1 + $0x28c] sm:$0xf]
    %v190 = vld [vmem:[%s1 + $0x290] sm:$0xf]
    %v191 = vld [vmem:[%s1 + $0x294] sm:$0xf]
    %v192 = vld [vmem:[%s1 + $0x298] sm:$0xf]
    %v193 = vld [vmem:[%s1 + $0x29c] sm:$0xf]
    %v194 = vld [vmem:[%s1 + $0x2a0] sm:$0xf]
    %v195 = vld [vmem:[%s1 + $0x2a4] sm:$0xf]
    %v196 = vld [vmem:[%s1 + $0x2a8] sm:$0xf]
    %v197 = vld [vmem:[%s1 + $0x2ac] sm:$0xf]
    %v198 = vld [vmem:[%s1 + $0x2b0] sm:$0xf]
    %v199 = vld [vmem:[%s1 + $0x2b4] sm:$0xf]
    %v200 = vld [vmem:[%s1 + $0x2b8] sm:$0xf]
    %v201 = vld [vmem:[%s1 + $0x2bc] sm:$0xf]
    %v202 = vld [vmem:[%s1 + $0x2c0] sm:$0xf]
    %v203 = vld [vmem:[%s1 + $0x2c4] sm:$0xf]
    %v204 = vld [vmem:[%s1 + $0x2c8] sm:$0xf]
    %v205 = vld [vmem:[%s1 + $0x2cc] sm:$0xf]
    %v206 = vld [vmem:[%s1 + $0x2d0] sm:$0xf]
    %v207 = vld [vmem:[%s1 + $0x2d4] sm:$0xf]
    %v208 = vld [vmem:[%s1 + $0x2d8] sm:$0xf]
    %v209 = vld [vmem:[%s1 + $0x2dc] sm:$0xf]
    %v210 = vld [vmem:[%s1 + $0x2e0] sm:$0xf]
    %v211 = vld [vmem:[%s1 + $0x2e4] sm:$0xf]
    %v212 = vld [vmem:[%s1 + $0x2e8] sm:$0xf]
    %v213 = vld [vmem:[%s1 + $0x2ec] sm:$0xf]
    %v214 = vld [vmem:[%s1 + $0x2f0] sm:$0xf]
    %v215 = vld [vmem:[%s1 + $0x2f4] sm:$0xf]
    %v216 = vld [vmem:[%s1 + $0x2f8] sm:$0xf]
    %v217 = vld [vmem:[%s1 + $0x2fc] sm:$0xf]
    %v218 = vld [vmem:[%s1 + $0x300] sm:$0xf]
    %v219 = vld [vmem:[%s1 + $0x304] sm:$0xf]
    %v220 = vld [vmem:[%s1 + $0x308] sm:$0xf]
    %v221 = vld [vmem:[%s1 + $0x30c] sm:$0xf]
    %v222 = vld [vmem:[%s1 + $0x310] sm:$0xf]
    %v223 = vld [vmem:[%s1 + $0x314] sm:$0xf]
    %v224 = vld [vmem:[%s1 + $0x318] sm:$0xf]
    %v225 = vld [vmem:[%s1 + $0x31c] sm:$0xf]
    %v226 = vld [vmem:[%s1 + $0x320] sm:$0xf]
    %v227 = vld [vmem:[%s1 + $0x324] sm:$0xf]
    %v228 = vld [vmem:[%s1 + $0x328] sm:$0xf]
    %v229 = vld [vmem:[%s1 + $0x32c] sm:$0xf]
    %v230 = vld [vmem:[%s1 + $0x330] sm:$0xf]
    %v231 = vld [vmem:[%s1 + $0x334] sm:$0xf]
    %v232 = vld [vmem:[%s1 + $0x338] sm:$0xf]
    %v233 = vld [vmem:[%s1 + $0x33c] sm:$0xf]
    %v234 = vld [vmem:[%s1 + $0x340] sm:$0xf]
    %v235 = vld [vmem:[%s1 + $0x344] sm:$0xf]
    %v236 = vld [vmem:[%s1 + $0x348] sm:$0xf]
    %v237 = vld [vmem:[%s1 + $0x34c] sm:$0xf]
    %v238 = vld [vmem:[%s1 + $0x350] sm:$0xf]
    %v239 = vld [vmem:[%s1 + $0x354] sm:$0xf]
    %v240 = vld [vmem:[%s1 + $0x358] sm:$0xf]
    %v241 = vld [vmem:[%s1 + $0x35c] sm:$0xf]
    %v242 = vld [vmem:[%s1 + $0x360] sm:$0xf]
    %v243 = vld [vmem:[%s1 + $0x364] sm:$0xf]
    %v244 = vld [vmem:[%s1 + $0x368] sm:$0xf]
    %v245 = vld [vmem:[%s1 + $0x36c] sm:$0xf]
    %v246 = vld [vmem:[%s1 + $0x370] sm:$0xf]
    %v247 = vld [vmem:[%s1 + $0x374] sm:$0xf]
    %v248 = vld [vmem:[%s1 + $0x378] sm:$0xf]
    %v249 = vld [vmem:[%s1 + $0x37c] sm:$0xf]
    %v250 = vld [vmem:[%s1 + $0x380] sm:$0xf]
    %v251 = vld [vmem:[%s1 + $0x384] sm:$0xf]
    %v252 = vld [vmem:[%s1 + $0x388] sm:$0xf]
    %v253 = vld [vmem:[%s1 + $0x38c] sm:$0xf]
    %v254 = vld [vmem:[%s1 + $0x390] sm:$0xf]
    %v255 = vld [vmem:[%s1 + $0x394] sm:$0xf]
    %v256 = vld [vmem:[%s1 + $0x398] sm:$0xf]
    %v257 = vld [vmem:[%s1 + $0x39c] sm:$0xf]
    %v258 = vld [vmem:[%s1 + $0x3a0] sm:$0xf]
    %v259 = vld [vmem:[%s1 + $0x3a4] sm:$0xf]
    %v260 = vld [vmem:[%s1 + $0x3a8] sm:$0xf]
    %v261 = vld [vmem:[%s1 + $0x3ac] sm:$0xf]
    %v262 = vld [vmem:[%s1 + $0x3b0] sm:$0xf]
    %v263 = vld [vmem:[%s1 + $0x3b4] sm:$0xf]
    %v264 = vld [vmem:[%s1 + $0x3b8] sm:$0xf]
    %v265 = vld [vmem:[%s1 + $0x3bc] sm:$0xf]
    %v266 = vld [vmem:[%s1 + $0x3c0] sm:$0xf]
    %v267 = vld [vmem:[%s1 + $0x3c4] sm:$0xf]
    %v268 = vld [vmem:[%s1 + $0x3c8] sm:$0xf]
    %v269 = vld [vmem:[%s1 + $0x3cc] sm:$0xf]
    %v270 = vld [vmem:[%s1 + $0x3d0] sm:$0xf]
    %v271 = vld [vmem:[%s1 + $0x3d4] sm:$0xf]
    %v272 = vld [vmem:[%s1 + $0x3d8] sm:$0xf]
    %v273 = vld [vmem:[%s1 + $0x3dc] sm:$0xf]
    %v274 = vld [vmem:[%s1 + $0x3e0] sm:$0xf]
    %v275 = vld [vmem:[%s1 + $0x3e4] sm:$0xf]
    %v276 = vld [vmem:[%s1 + $0x3e8] sm:$0xf]
    %v277 = vld [vmem:[%s1 + $0x3ec] sm:$0xf]
    %v278 = vld [vmem:[%s1 + $0x3f0] sm:$0xf]
    %v279 = vld [vmem:[%s1 + $0x3f4] sm:$0xf]
    %v280 = vld [vmem:[%s1 + $0x3f8] sm:$0xf]
    %v281 = vld [vmem:[%s1 + $0x3fc] sm:$0xf]
    %v282 = vld [vmem:[%s1 + $0x400] sm:$0xf]
    %v283 = vld [vmem:[%s1 + $0x404] sm:$0xf]
    %v284 = vld [vmem:[%s1 + $0x408] sm:$0xf]
    %v285 = vld [vmem:[%s1 + $0x40c] sm:$0xf]
    %v286 = vld [vmem:[%s1 + $0x410] sm:$0xf]
    %v287 = vld [vmem:[%s1 + $0x414] sm:$0xf]
    %v288 = vld [vmem:[%s1 + $0x418] sm:$0xf]
    %v289 = vld [vmem:[%s1 + $0x41c] sm:$0xf]
    %v290 = vld [vmem:[%s1 + $0x420] sm:$0xf]
    %v291 = vld [vmem:[%s1 + $0x424] sm:$0xf]
    %v292 = vld [vmem:[%s1 + $0x428] sm:$0xf]
    %v293 = vld [vmem:[%s1 + $0x42c] sm:$0xf]
    %v294 = vld [vmem:[%s1 + $0x430] sm:$0xf]
    %v295 = vld [vmem:[%s1 + $0x434] sm:$0xf]
    %v296 = vld [vmem:[%s1 + $0x438] sm:$0xf]
    %v297 = vld [vmem:[%s1 + $0x43c] sm:$0xf]
    %v298 = vld [vmem:[%s1 + $0x440] sm:$0xf]
    %v299 = vld [vmem:[%s1 + $0x444] sm:$0xf]
    %v300 = vld [vmem:[%s1 + $0x448] sm:$0xf]
    %v301 = vld [vmem:[%s1 + $0x44c] sm:$0xf]
    %v302 = vld [vmem:[%s1 + $0x450] sm:$0xf]
    %v303 = vld [vmem:[%s1 + $0x454] sm:$0xf]
    %v304 = vld [vmem:[%s1 + $0x458] sm:$0xf]
    %v305 = vld [vmem:[%s1 + $0x45c] sm:$0xf]
    %v306 = vld [vmem:[%s1 + $0x460] sm:$0xf]
    %v307 = vld [vmem:[%s1 + $0x464] sm:$0xf]
    %v308 = vld [vmem:[%s1 + $0x468] sm:$0xf]
    %v309 = vld [vmem:[%s1 + $0x46c] sm:$0xf]
    %v310 = vld [vmem:[%s1 + $0x470] sm:$0xf]
    %v311 = vld [vmem:[%s1 + $0x474] sm:$0xf]
    %v312 = vld [vmem:[%s1 + $0x478] sm:$0xf]
    %v313 = vld [vmem:[%s1 + $0x47c] sm:$0xf]
    %v314 = vld [vmem:[%s1 + $0x480] sm:$0xf]
    %v315 = vld [vmem:[%s1 + $0x484] sm:$0xf]
    %v316 = vld [vmem:[%s1 + $0x488] sm:$0xf]
    %v317 = vld [vmem:[%s1 + $0x48c] sm:$0xf]
    %v318 = vld [vmem:[%s1 + $0x490] sm:$0xf]
    %v319 = vld [vmem:[%s1 + $0x494] sm:$0xf]
    %v320 = vld [vmem:[%s1 + $0x498] sm:$0xf]
    %v321 = vld [vmem:[%s1 + $0x49c] sm:$0xf]
    %v322 = vld [vmem:[%s1 + $0x4a0] sm:$0xf]
    %v323 = vld [vmem:[%s1 + $0x4a4] sm:$0xf]
    %v324 = vld [vmem:[%s1 + $0x4a8] sm:$0xf]
    %v325 = vld [vmem:[%s1 + $0x4ac] sm:$0xf]
    %v326 = vld [vmem:[%s1 + $0x4b0] sm:$0xf]
    %v327 = vld [vmem:[%s1 + $0x4b4] sm:$0xf]
    %v328 = vld [vmem:[%s1 + $0x4b8] sm:$0xf]
    %v329 = vld [vmem:[%s1 + $0x4bc] sm:$0xf]
    %v330 = vld [vmem:[%s1 + $0x4c0] sm:$0xf]
    %v331 = vld [vmem:[%s1 + $0x4c4] sm:$0xf]
    %v332 = vld [vmem:[%s1 + $0x4c8] sm:$0xf]
    %v333 = vld [vmem:[%s1 + $0x4cc] sm:$0xf]
    %v334 = vld [vmem:[%s1 + $0x4d0] sm:$0xf]
    %v335 = vld [vmem:[%s1 + $0x4d4] sm:$0xf]
    %v336 = vld [vmem:[%s1 + $0x4d8] sm:$0xf]
    %v337 = vld [vmem:[%s1 + $0x4dc] sm:$0xf]
    %v338 = vld [vmem:[%s1 + $0x4e0] sm:$0xf]
    %v339 = vld [vmem:[%s1 + $0x4e4] sm:$0xf]
    %v340 = vld [vmem:[%s1 + $0x4e8] sm:$0xf]
    %v341 = vld [vmem:[%s1 + $0x4ec] sm:$0xf]
    %v342 = vld [vmem:[%s1 + $0x4f0] sm:$0xf]
    %v343 = vld [vmem:[%s1 + $0x4f4] sm:$0xf]
    %v344 = vld [vmem:[%s1 + $0x4f8] sm:$0xf]
    %v345 = vld [vmem:[%s1 + $0x4fc] sm:$0xf]
    %v346 = vld [vmem:[%s1 + $0x500] sm:$0xf]
    %v347 = vld [vmem:[%s1 + $0x504] sm:$0xf]
    %v348 = vld [vmem:[%s1 + $0x508] sm:$0xf]
    %v349 = vld [vmem:[%s1 + $0x50c] sm:$0xf]
    %v350 = vld [vmem:[%s1 + $0x510] sm:$0xf]
    %v351 = vld [vmem:[%s1 + $0x514] sm:$0xf]
    %v352 = vld [vmem:[%s1 + $0x518] sm:$0xf]
    %v353 = vld [vmem:[%s1 + $0x51c] sm:$0xf]
    %v354 = vld [vmem:[%s1 + $0x520] sm:$0xf]
    %v355 = vld [vmem:[%s1 + $0x524] sm:$0xf]
    %v356 = vld [vmem:[%s1 + $0x528] sm:$0xf]
    %v357 = vld [vmem:[%s1 + $0x52c] sm:$0xf]
    %v358 = vld [vmem:[%s1 + $0x530] sm:$0xf]
    %v359 = vld [vmem:[%s1 + $0x534] sm:$0xf]
    %v360 = vld [vmem:[%s1 + $0x538] sm:$0xf]
    %v361 = vld [vmem:[%s1 + $0x53c] sm:$0xf]
    %v362 = vld [vmem:[%s1 + $0x540] sm:$0xf]
    %v363 = vld [vmem:[%s1 + $0x544] sm:$0xf]
    %v364 = vld [vmem:[%s1 + $0x548] sm:$0xf]
    %v365 = vld [vmem:[%s1 + $0x54c] sm:$0xf]
    %v366 = vld [vmem:[%s1 + $0x550] sm:$0xf]
    %v367 = vld [vmem:[%s1 + $0x554] sm:$0xf]
    %v368 = vld [vmem:[%s1 + $0x558] sm:$0xf]
    %v369 = vld [vmem:[%s1 + $0x55c] sm:$0xf]
    %v370 = vld [vmem:[%s1 + $0x560] sm:$0xf]
    %v371 = vld [vmem:[%s1 + $0x564] sm:$0xf]
    %v372 = vld [vmem:[%s1 + $0x568] sm:$0xf]
    %v373 = vld [vmem:[%s1 + $0x56c] sm:$0xf]
    %v374 = vld [vmem:[%s1 + $0x570] sm:$0xf]
    %v375 = vld [vmem:[%s1 + $0x574] sm:$0xf]
    %v376 = vld [vmem:[%s1 + $0x578] sm:$0xf]
    %v377 = vld [vmem:[%s1 + $0x57c] sm:$0xf]
    %v378 = vld [vmem:[%s1 + $0x580] sm:$0xf]
    %v379 = vld [vmem:[%s1 + $0x584] sm:$0xf]
    %v380 = vld [vmem:[%s1 + $0x588] sm:$0xf]
    %v381 = vld [vmem:[%s1 + $0x58c] sm:$0xf]
    %v382 = vld [vmem:[%s1 + $0x590] sm:$0xf]
    %v383 = vld [vmem:[%s1 + $0x594] sm:$0xf]
    %v384 = vld [vmem:[%s1 + $0x598] sm:$0xf]
    %v385 = vld [vmem:[%s1 + $0x59c] sm:$0xf]
    %v386 = vld [vmem:[%s1 + $0x5a0] sm:$0xf]
    %v387 = vld [vmem:[%s1 + $0x5a4] sm:$0xf]
    %v388 = vld [vmem:[%s1 + $0x5a8] sm:$0xf]
    %v389 = vld [vmem:[%s1 + $0x5ac] sm:$0xf]
    %v390 = vld [vmem:[%s1 + $0x5b0] sm:$0xf]
    %v391 = vld [vmem:[%s1 + $0x5b4] sm:$0xf]
    %v392 = vld [vmem:[%s1 + $0x5b8] sm:$0xf]
    %v393 = vld [vmem:[%s1 + $0x5bc] sm:$0xf]
    %v394 = vld [vmem:[%s1 + $0x5c0] sm:$0xf]
    %v395 = vld [vmem:[%s1 + $0x5c4] sm:$0xf]
    %v396 = vld [vmem:[%s1 + $0x5c8] sm:$0xf]
    %v397 = vld [vmem:[%s1 + $0x5cc] sm:$0xf]
    %v398 = vld [vmem:[%s1 + $0x5d0] sm:$0xf]
    %v399 = vld [vmem:[%s1 + $0x5d4] sm:$0xf]
    %v400 = vld [vmem:[%s1 + $0x5d8] sm:$0xf]
    %v401 = vld [vmem:[%s1 + $0x5dc] sm:$0xf]
    %v402 = vld [vmem:[%s1 + $0x5e0] sm:$0xf]
    %v403 = vld [vmem:[%s1 + $0x5e4] sm:$0xf]
    %v404 = vld [vmem:[%s1 + $0x5e8] sm:$0xf]
    %v405 = vld [vmem:[%s1 + $0x5ec] sm:$0xf]
    %v406 = vld [vmem:[%s1 + $0x5f0] sm:$0xf]
    %v407 = vld [vmem:[%s1 + $0x5f4] sm:$0xf]
    %v408 = vld [vmem:[%s1 + $0x5f8] sm:$0xf]
    %v409 = vld [vmem:[%s1 + $0x5fc] sm:$0xf]
    %v410 = vld [vmem:[%s1 + $0x600] sm:$0xf]
    %v411 = vld [vmem:[%s1 + $0x604] sm:$0xf]
    %v412 = vld [vmem:[%s1 + $0x608] sm:$0xf]
    %v413 = vld [vmem:[%s1 + $0x60c] sm:$0xf]
    %v414 = vld [vmem:[%s1 + $0x610] sm:$0xf]
    %v415 = vld [vmem:[%s1 + $0x614] sm:$0xf]
    %v416 = vld [vmem:[%s1 + $0x618] sm:$0xf]
    %v417 = vld [vmem:[%s1 + $0x61c] sm:$0xf]
    %v418 = vld [vmem:[%s1 + $0x620] sm:$0xf]
    %v419 = vld [vmem:[%s1 + $0x624] sm:$0xf]
    %v420 = vld [vmem:[%s1 + $0x628] sm:$0xf]
    %v421 = vld [vmem:[%s1 + $0x62c] sm:$0xf]
    %v422 = vld [vmem:[%s1 + $0x630] sm:$0xf]
    %v423 = vld [vmem:[%s1 + $0x634] sm:$0xf]
    %v424 = vld [vmem:[%s1 + $0x638] sm:$0xf]
    %v425 = vld [vmem:[%s1 + $0x63c] sm:$0xf]
    %v426 = vld [vmem:[%s1 + $0x640] sm:$0xf]
    %v427 = vld [vmem:[%s1 + $0x644] sm:$0xf]
    %v428 = vld [vmem:[%s1 + $0x648] sm:$0xf]
    %v429 = vld [vmem:[%s1 + $0x64c] sm:$0xf]
    %v430 = vld [vmem:[%s1 + $0x650] sm:$0xf]
    %v431 = vld [vmem:[%s1 + $0x654] sm:$0xf]
    %v432 = vld [vmem:[%s1 + $0x658] sm:$0xf]
    %v433 = vld [vmem:[%s1 + $0x65c] sm:$0xf]
    %v434 = vld [vmem:[%s1 + $0x660] sm:$0xf]
    %v435 = vld [vmem:[%s1 + $0x664] sm:$0xf]
    %v436 = vld [vmem:[%s1 + $0x668] sm:$0xf]
    %v437 = vld [vmem:[%s1 + $0x66c] sm:$0xf]
    %v438 = vld [vmem:[%s1 + $0x670] sm:$0xf]
    %v439 = vld [vmem:[%s1 + $0x674] sm:$0xf]
    %v440 = vld [vmem:[%s1 + $0x678] sm:$0xf]
    %v441 = vld [vmem:[%s1 + $0x67c] sm:$0xf]
    %v442 = vld [vmem:[%s1 + $0x680] sm:$0xf]
    %v443 = vld [vmem:[%s1 + $0x684] sm:$0xf]
    %v444 = vld [vmem:[%s1 + $0x688] sm:$0xf]
    %v445 = vld [vmem:[%s1 + $0x68c] sm:$0xf]
    %v446 = vld [vmem:[%s1 + $0x690] sm:$0xf]
    %v447 = vld [vmem:[%s1 + $0x694] sm:$0xf]
    %v448 = vld [vmem:[%s1 + $0x698] sm:$0xf]
    %v449 = vld [vmem:[%s1 + $0x69c] sm:$0xf]
    %v450 = vld [vmem:[%s1 + $0x6a0] sm:$0xf]
    %v451 = vld [vmem:[%s1 + $0x6a4] sm:$0xf]
    %v452 = vld [vmem:[%s1 + $0x6a8] sm:$0xf]
    %v453 = vld [vmem:[%s1 + $0x6ac] sm:$0xf]
    %v454 = vld [vmem:[%s1 + $0x6b0] sm:$0xf]
    %v455 = vld [vmem:[%s1 + $0x6b4] sm:$0xf]
    %v456 = vld [vmem:[%s1 + $0x6b8] sm:$0xf]
    %v457 = vld [vmem:[%s1 + $0x6bc] sm:$0xf]
    %v458 = vld [vmem:[%s1 + $0x6c0] sm:$0xf]
    %v459 = vld [vmem:[%s1 + $0x6c4] sm:$0xf]
    %v460 = vld [vmem:[%s1 + $0x6c8] sm:$0xf]
    %v461 = vld [vmem:[%s1 + $0x6cc] sm:$0xf]
    %v462 = vld [vmem:[%s1 + $0x6d0] sm:$0xf]
    %v463 = vld [vmem:[%s1 + $0x6d4] sm:$0xf]
    %v464 = vld [vmem:[%s1 + $0x6d8] sm:$0xf]
    %v465 = vld [vmem:[%s1 + $0x6dc] sm:$0xf]
    %v466 = vld [vmem:[%s1 + $0x6e0] sm:$0xf]
    %v467 = vld [vmem:[%s1 + $0x6e4] sm:$0xf]
    %v468 = vld [vmem:[%s1 + $0x6e8] sm:$0xf]
    %v469 = vld [vmem:[%s1 + $0x6ec] sm:$0xf]
    %v470 = vld [vmem:[%s1 + $0x6f0] sm:$0xf]
    %v471 = vld [vmem:[%s1 + $0x6f4] sm:$0xf]
    %v472 = vld [vmem:[%s1 + $0x6f8] sm:$0xf]
    %v473 = vld [vmem:[%s1 + $0x6fc] sm:$0xf]
    %v474 = vld [vmem:[%s1 + $0x700] sm:$0xf]
    %v475 = vld [vmem:[%s1 + $0x704] sm:$0xf]
    %v476 = vld [vmem:[%s1 + $0x708] sm:$0xf]
    %v477 = vld [vmem:[%s1 + $0x70c] sm:$0xf]
    %v478 = vld [vmem:[%s1 + $0x710] sm:$0xf]
    %v479 = vld [vmem:[%s1 + $0x714] sm:$0xf]
    %v480 = vld [vmem:[%s1 + $0x718] sm:$0xf]
    %v481 = vld [vmem:[%s1 + $0x71c] sm:$0xf]
    %v482 = vld [vmem:[%s1 + $0x720] sm:$0xf]
    %v483 = vld [vmem:[%s1 + $0x724] sm:$0xf]
    %v484 = vld [vmem:[%s1 + $0x728] sm:$0xf]
    %v485 = vld [vmem:[%s1 + $0x72c] sm:$0xf]
    %v486 = vld [vmem:[%s1 + $0x730] sm:$0xf]
    %v487 = vld [vmem:[%s1 + $0x734] sm:$0xf]
    %v488 = vld [vmem:[%s1 + $0x738] sm:$0xf]
    %v489 = vld [vmem:[%s1 + $0x73c] sm:$0xf]
    %v490 = vld [vmem:[%s1 + $0x740] sm:$0xf]
    %v491 = vld [vmem:[%s1 + $0x744] sm:$0xf]
    %v492 = vld [vmem:[%s1 + $0x748] sm:$0xf]
    %v493 = vld [vmem:[%s1 + $0x74c] sm:$0xf]
    %v494 = vld [vmem:[%s1 + $0x750] sm:$0xf]
    %v495 = vld [vmem:[%s1 + $0x754] sm:$0xf]
    %v496 = vld [vmem:[%s1 + $0x758] sm:$0xf]
    %v497 = vld [vmem:[%s1 + $0x75c] sm:$0xf]
    %v498 = vld [vmem:[%s1 + $0x760] sm:$0xf]
    %v499 = vld [vmem:[%s1 + $0x764] sm:$0xf]
    %v500 = vld [vmem:[%s1 + $0x768] sm:$0xf]
    %v501 = vld [vmem:[%s1 + $0x76c] sm:$0xf]
    %v502 = vld [vmem:[%s1 + $0x770] sm:$0xf]
    %v503 = vld [vmem:[%s1 + $0x774] sm:$0xf]
    %v504 = vld [vmem:[%s1 + $0x778] sm:$0xf]
    %v505 = vld [vmem:[%s1 + $0x77c] sm:$0xf]
    %v506 = vld [vmem:[%s1 + $0x780] sm:$0xf]
    %v507 = vld [vmem:[%s1 + $0x784] sm:$0xf]
    %v508 = vld [vmem:[%s1 + $0x788] sm:$0xf]
    %v509 = vld [vmem:[%s1 + $0x78c] sm:$0xf]
    %v510 = vld [vmem:[%s1 + $0x790] sm:$0xf]
    %v511 = vld [vmem:[%s1 + $0x794] sm:$0xf]
    %v512 = vld [vmem:[%s1 + $0x798] sm:$0xf]
    %v513 = vld [vmem:[%s1 + $0x79c] sm:$0xf]
    %v514 = vld [vmem:[%s1 + $0x7a0] sm:$0xf]
    %v515 = vld [vmem:[%s1 + $0x7a4] sm:$0xf]
    %v516 = vld [vmem:[%s1 + $0x7a8] sm:$0xf]
    %v517 = vld [vmem:[%s1 + $0x7ac] sm:$0xf]
    %v518 = vld [vmem:[%s1 + $0x7b0] sm:$0xf]
    %v519 = vld [vmem:[%s1 + $0x7b4] sm:$0xf]
    %v520 = vld [vmem:[%s1 + $0x7b8] sm:$0xf]
    %v521 = vld [vmem:[%s1 + $0x7bc] sm:$0xf]
    %v522 = vld [vmem:[%s1 + $0x7c0] sm:$0xf]
    %v523 = vld [vmem:[%s1 + $0x7c4] sm:$0xf]
    %v524 = vld [vmem:[%s1 + $0x7c8] sm:$0xf]
    %v525 = vld [vmem:[%s1 + $0x7cc] sm:$0xf]
    %v526 = vld [vmem:[%s1 + $0x7d0] sm:$0xf]
    %v527 = vld [vmem:[%s1 + $0x7d4] sm:$0xf]
    %v528 = vld [vmem:[%s1 + $0x7d8] sm:$0xf]
    %v529 = vld [vmem:[%s1 + $0x7dc] sm:$0xf]
    %v530 = vld [vmem:[%s1 + $0x7e0] sm:$0xf]
    %v531 = vld [vmem:[%s1 + $0x7e4] sm:$0xf]
    %v532 = vld [vmem:[%s1 + $0x7e8] sm:$0xf]
    %v533 = vld [vmem:[%s1 + $0x7ec] sm:$0xf]
    %v534 = vld [vmem:[%s1 + $0x7f0] sm:$0xf]
    %v535 = vld [vmem:[%s1 + $0x7f4] sm:$0xf]
    %v536 = vld [vmem:[%s1 + $0x7f8] sm:$0xf]
    %v537 = vld [vmem:[%s1 + $0x7fc] sm:$0xf]
    %v538 = vld [vmem:[%s2] sm:$0x1]
    %v540 = vlaneseq
    %v541 = vshrl.u32 %v540, 7
    %v542 = vsub.s32 0, %v541
    %v543 = vrot.slane %v538, %v542
    %v549 = vcombine.high %v22, %v22
    %v551 = vunpack.c.l.s4 1966171168
    %v552 = vunpack.c.0.s8 %v551
    %v553 = vlaneseq
    %v554 = vshrl.u32 %v553, 7
    %v555 = vsub.s32 %v552, %v554
    %v556 = vrot.slane %v22, %v555
    %v558 = vunpack.c.l.s4 1966171168
    %v559 = vunpack.c.0.s8 %v558
    %v560 = vlaneseq
    %v561 = vshrl.u32 %v560, 7
    %v562 = vsub.s32 %v559, %v561
    %v563 = vrot.slane %v549, %v562
    %v564 = vcombine.high %v556, %v556
    %v565 = vcombine.high %v563, %v563
    %v567 = vunpack.c.l.s4 1966171168
    %v568 = vunpack.c.0.s8 %v567
    %v569 = vlaneseq
    %v570 = vshrl.u32 %v569, 7
    %v571 = vsub.s32 %v568, %v570
    %v572 = vrot.slane %v556, %v571
    %v574 = vunpack.c.l.s4 1966171168
    %v575 = vunpack.c.0.s8 %v574
    %v576 = vlaneseq
    %v577 = vshrl.u32 %v576, 7
    %v578 = vsub.s32 %v575, %v577
    %v579 = vrot.slane %v563, %v578
    %v581 = vunpack.c.l.s4 1966171168
    %v582 = vunpack.c.0.s8 %v581
    %v583 = vlaneseq
    %v584 = vshrl.u32 %v583, 7
    %v585 = vsub.s32 %v582, %v584
    %v586 = vrot.slane %v564, %v585
    %v588 = vunpack.c.l.s4 1966171168
    %v589 = vunpack.c.0.s8 %v588
    %v590 = vlaneseq
    %v591 = vshrl.u32 %v590, 7
    %v592 = vsub.s32 %v589, %v591
    %v593 = vrot.slane %v565, %v592
    %v594 = vcombine.high %v572, %v572
    %v595 = vcombine.high %v579, %v579
    %v596 = vcombine.high %v586, %v586
    %v597 = vcombine.high %v593, %v593
    %v598 = vcombine.high %v23, %v23
    %v600 = vunpack.c.l.s4 1966171168
    %v601 = vunpack.c.0.s8 %v600
    %v602 = vlaneseq
    %v603 = vshrl.u32 %v602, 7
    %v604 = vsub.s32 %v601, %v603
    %v605 = vrot.slane %v23, %v604
    %v607 = vunpack.c.l.s4 1966171168
    %v608 = vunpack.c.0.s8 %v607
    %v609 = vlaneseq
    %v610 = vshrl.u32 %v609, 7
    %v611 = vsub.s32 %v608, %v610
    %v612 = vrot.slane %v598, %v611
    %v613 = vcombine.high %v605, %v605
    %v614 = vcombine.high %v612, %v612
    %v616 = vunpack.c.l.s4 1966171168
    %v617 = vunpack.c.0.s8 %v616
    %v618 = vlaneseq
    %v619 = vshrl.u32 %v618, 7
    %v620 = vsub.s32 %v617, %v619
    %v621 = vrot.slane %v605, %v620
    %v623 = vunpack.c.l.s4 1966171168
    %v624 = vunpack.c.0.s8 %v623
    %v625 = vlaneseq
    %v626 = vshrl.u32 %v625, 7
    %v627 = vsub.s32 %v624, %v626
    %v628 = vrot.slane %v612, %v627
    %v630 = vunpack.c.l.s4 1966171168
    %v631 = vunpack.c.0.s8 %v630
    %v632 = vlaneseq
    %v633 = vshrl.u32 %v632, 7
    %v634 = vsub.s32 %v631, %v633
    %v635 = vrot.slane %v613, %v634
    %v637 = vunpack.c.l.s4 1966171168
    %v638 = vunpack.c.0.s8 %v637
    %v639 = vlaneseq
    %v640 = vshrl.u32 %v639, 7
    %v641 = vsub.s32 %v638, %v640
    %v642 = vrot.slane %v614, %v641
    %v643 = vcombine.high %v621, %v621
    %v644 = vcombine.high %v628, %v628
    %v645 = vcombine.high %v635, %v635
    %v646 = vcombine.high %v642, %v642
    %v647 = vcombine.high %v24, %v24
    %v649 = vunpack.c.l.s4 1966171168
    %v650 = vunpack.c.0.s8 %v649
    %v651 = vlaneseq
    %v652 = vshrl.u32 %v651, 7
    %v653 = vsub.s32 %v650, %v652
    %v654 = vrot.slane %v24, %v653
    %v656 = vunpack.c.l.s4 1966171168
    %v657 = vunpack.c.0.s8 %v656
    %v658 = vlaneseq
    %v659 = vshrl.u32 %v658, 7
    %v660 = vsub.s32 %v657, %v659
    %v661 = vrot.slane %v647, %v660
    %v662 = vcombine.high %v654, %v654
    %v663 = vcombine.high %v661, %v661
    %v665 = vunpack.c.l.s4 1966171168
    %v666 = vunpack.c.0.s8 %v665
    %v667 = vlaneseq
    %v668 = vshrl.u32 %v667, 7
    %v669 = vsub.s32 %v666, %v668
    %v670 = vrot.slane %v654, %v669
    %v672 = vunpack.c.l.s4 1966171168
    %v673 = vunpack.c.0.s8 %v672
    %v674 = vlaneseq
    %v675 = vshrl.u32 %v674, 7
    %v676 = vsub.s32 %v673, %v675
    %v677 = vrot.slane %v661, %v676
    %v679 = vunpack.c.l.s4 1966171168
    %v680 = vunpack.c.0.s8 %v679
    %v681 = vlaneseq
    %v682 = vshrl.u32 %v681, 7
    %v683 = vsub.s32 %v680, %v682
    %v684 = vrot.slane %v662, %v683
    %v686 = vunpack.c.l.s4 1966171168
    %v687 = vunpack.c.0.s8 %v686
    %v688 = vlaneseq
    %v689 = vshrl.u32 %v688, 7
    %v690 = vsub.s32 %v687, %v689
    %v691 = vrot.slane %v663, %v690
    %v692 = vcombine.high %v670, %v670
    %v693 = vcombine.high %v677, %v677
    %v694 = vcombine.high %v684, %v684
    %v695 = vcombine.high %v691, %v691
    %v696 = vcombine.high %v25, %v25
    %v698 = vunpack.c.l.s4 1966171168
    %v699 = vunpack.c.0.s8 %v698
    %v700 = vlaneseq
    %v701 = vshrl.u32 %v700, 7
    %v702 = vsub.s32 %v699, %v701
    %v703 = vrot.slane %v25, %v702
    %v705 = vunpack.c.l.s4 1966171168
    %v706 = vunpack.c.0.s8 %v705
    %v707 = vlaneseq
    %v708 = vshrl.u32 %v707, 7
    %v709 = vsub.s32 %v706, %v708
    %v710 = vrot.slane %v696, %v709
    %v711 = vcombine.high %v703, %v703
    %v712 = vcombine.high %v710, %v710
    %v714 = vunpack.c.l.s4 1966171168
    %v715 = vunpack.c.0.s8 %v714
    %v716 = vlaneseq
    %v717 = vshrl.u32 %v716, 7
    %v718 = vsub.s32 %v715, %v717
    %v719 = vrot.slane %v703, %v718
    %v721 = vunpack.c.l.s4 1966171168
    %v722 = vunpack.c.0.s8 %v721
    %v723 = vlaneseq
    %v724 = vshrl.u32 %v723, 7
    %v725 = vsub.s32 %v722, %v724
    %v726 = vrot.slane %v710, %v725
    %v728 = vunpack.c.l.s4 1966171168
    %v729 = vunpack.c.0.s8 %v728
    %v730 = vlaneseq
    %v731 = vshrl.u32 %v730, 7
    %v732 = vsub.s32 %v729, %v731
    %v733 = vrot.slane %v711, %v732
    %v735 = vunpack.c.l.s4 1966171168
    %v736 = vunpack.c.0.s8 %v735
    %v737 = vlaneseq
    %v738 = vshrl.u32 %v737, 7
    %v739 = vsub.s32 %v736, %v738
    %v740 = vrot.slane %v712, %v739
    %v741 = vcombine.high %v719, %v719
    %v742 = vcombine.high %v726, %v726
    %v743 = vcombine.high %v733, %v733
    %v744 = vcombine.high %v740, %v740
    %v1289 = vunpack.c.l.b16 %v26
    %v1290 = vunpack.c.l.b16 %v27
    %v1291 = vunpack.c.l.b16 %v28
    %v1292 = vunpack.c.l.b16 %v29
    %v1293 = vunpack.c.l.b16 %v30
    %v1294 = vunpack.c.l.b16 %v31
    %v1295 = vunpack.c.l.b16 %v32
    %v1296 = vunpack.c.l.b16 %v33
    %v1297 = vunpack.c.l.b16 %v34
    %v1298 = vunpack.c.l.b16 %v35
    %v1299 = vunpack.c.l.b16 %v36
    %v1300 = vunpack.c.l.b16 %v37
    %v1301 = vunpack.c.l.b16 %v38
    %v1302 = vunpack.c.l.b16 %v39
    %v1303 = vunpack.c.l.b16 %v40
    %v1304 = vunpack.c.l.b16 %v41
    %v1305 = vunpack.c.l.b16 %v42
    %v1306 = vunpack.c.l.b16 %v43
    %v1307 = vunpack.c.l.b16 %v44
    %v1308 = vunpack.c.l.b16 %v45
    %v1309 = vunpack.c.l.b16 %v46
    %v1310 = vunpack.c.l.b16 %v47
    %v1311 = vunpack.c.l.b16 %v48
    %v1312 = vunpack.c.l.b16 %v49
    %v1313 = vunpack.c.l.b16 %v50
    %v1314 = vunpack.c.l.b16 %v51
    %v1315 = vunpack.c.l.b16 %v52
    %v1316 = vunpack.c.l.b16 %v53
    %v1317 = vunpack.c.l.b16 %v54
    %v1318 = vunpack.c.l.b16 %v55
    %v1319 = vunpack.c.l.b16 %v56
    %v1320 = vunpack.c.l.b16 %v57
    %v1321 = vunpack.c.l.b16 %v58
    %v1322 = vunpack.c.l.b16 %v59
    %v1323 = vunpack.c.l.b16 %v60
    %v1324 = vunpack.c.l.b16 %v61
    %v1325 = vunpack.c.l.b16 %v62
    %v1326 = vunpack.c.l.b16 %v63
    %v1327 = vunpack.c.l.b16 %v64
    %v1328 = vunpack.c.l.b16 %v65
    %v1329 = vunpack.c.l.b16 %v66
    %v1330 = vunpack.c.l.b16 %v67
    %v1331 = vunpack.c.l.b16 %v68
    %v1332 = vunpack.c.l.b16 %v69
    %v1333 = vunpack.c.l.b16 %v70
    %v1334 = vunpack.c.l.b16 %v71
    %v1335 = vunpack.c.l.b16 %v72
    %v1336 = vunpack.c.l.b16 %v73
    %v1337 = vunpack.c.l.b16 %v74
    %v1338 = vunpack.c.l.b16 %v75
    %v1339 = vunpack.c.l.b16 %v76
    %v1340 = vunpack.c.l.b16 %v77
    %v1341 = vunpack.c.l.b16 %v78
    %v1342 = vunpack.c.l.b16 %v79
    %v1343 = vunpack.c.l.b16 %v80
    %v1344 = vunpack.c.l.b16 %v81
    %v1345 = vunpack.c.l.b16 %v82
    %v1346 = vunpack.c.l.b16 %v83
    %v1347 = vunpack.c.l.b16 %v84
    %v1348 = vunpack.c.l.b16 %v85
    %v1349 = vunpack.c.l.b16 %v86
    %v1350 = vunpack.c.l.b16 %v87
    %v1351 = vunpack.c.l.b16 %v88
    %v1352 = vunpack.c.l.b16 %v89
    %v1353 = vunpack.c.l.b16 %v90
    %v1354 = vunpack.c.l.b16 %v91
    %v1355 = vunpack.c.l.b16 %v92
    %v1356 = vunpack.c.l.b16 %v93
    %v1357 = vunpack.c.l.b16 %v94
    %v1358 = vunpack.c.l.b16 %v95
    %v1359 = vunpack.c.l.b16 %v96
    %v1360 = vunpack.c.l.b16 %v97
    %v1361 = vunpack.c.l.b16 %v98
    %v1362 = vunpack.c.l.b16 %v99
    %v1363 = vunpack.c.l.b16 %v100
    %v1364 = vunpack.c.l.b16 %v101
    %v1365 = vunpack.c.l.b16 %v102
    %v1366 = vunpack.c.l.b16 %v103
    %v1367 = vunpack.c.l.b16 %v104
    %v1368 = vunpack.c.l.b16 %v105
    %v1369 = vunpack.c.l.b16 %v106
    %v1370 = vunpack.c.l.b16 %v107
    %v1371 = vunpack.c.l.b16 %v108
    %v1372 = vunpack.c.l.b16 %v109
    %v1373 = vunpack.c.l.b16 %v110
    %v1374 = vunpack.c.l.b16 %v111
    %v1375 = vunpack.c.l.b16 %v112
    %v1376 = vunpack.c.l.b16 %v113
    %v1377 = vunpack.c.l.b16 %v114
    %v1378 = vunpack.c.l.b16 %v115
    %v1379 = vunpack.c.l.b16 %v116
    %v1380 = vunpack.c.l.b16 %v117
    %v1381 = vunpack.c.l.b16 %v118
    %v1382 = vunpack.c.l.b16 %v119
    %v1383 = vunpack.c.l.b16 %v120
    %v1384 = vunpack.c.l.b16 %v121
    %v1385 = vunpack.c.l.b16 %v122
    %v1386 = vunpack.c.l.b16 %v123
    %v1387 = vunpack.c.l.b16 %v124
    %v1388 = vunpack.c.l.b16 %v125
    %v1389 = vunpack.c.l.b16 %v126
    %v1390 = vunpack.c.l.b16 %v127
    %v1391 = vunpack.c.l.b16 %v128
    %v1392 = vunpack.c.l.b16 %v129
    %v1393 = vunpack.c.l.b16 %v130
    %v1394 = vunpack.c.l.b16 %v131
    %v1395 = vunpack.c.l.b16 %v132
    %v1396 = vunpack.c.l.b16 %v133
    %v1397 = vunpack.c.l.b16 %v134
    %v1398 = vunpack.c.l.b16 %v135
    %v1399 = vunpack.c.l.b16 %v136
    %v1400 = vunpack.c.l.b16 %v137
    %v1401 = vunpack.c.l.b16 %v138
    %v1402 = vunpack.c.l.b16 %v139
    %v1403 = vunpack.c.l.b16 %v140
    %v1404 = vunpack.c.l.b16 %v141
    %v1405 = vunpack.c.l.b16 %v142
    %v1406 = vunpack.c.l.b16 %v143
    %v1407 = vunpack.c.l.b16 %v144
    %v1408 = vunpack.c.l.b16 %v145
    %v1409 = vunpack.c.l.b16 %v146
    %v1410 = vunpack.c.l.b16 %v147
    %v1411 = vunpack.c.l.b16 %v148
    %v1412 = vunpack.c.l.b16 %v149
    %v1413 = vunpack.c.l.b16 %v150
    %v1414 = vunpack.c.l.b16 %v151
    %v1415 = vunpack.c.l.b16 %v152
    %v1416 = vunpack.c.l.b16 %v153
    %v1417 = vunpack.c.l.b16 %v154
    %v1418 = vunpack.c.l.b16 %v155
    %v1419 = vunpack.c.l.b16 %v156
    %v1420 = vunpack.c.l.b16 %v157
    %v1421 = vunpack.c.l.b16 %v158
    %v1422 = vunpack.c.l.b16 %v159
    %v1423 = vunpack.c.l.b16 %v160
    %v1424 = vunpack.c.l.b16 %v161
    %v1425 = vunpack.c.l.b16 %v162
    %v1426 = vunpack.c.l.b16 %v163
    %v1427 = vunpack.c.l.b16 %v164
    %v1428 = vunpack.c.l.b16 %v165
    %v1429 = vunpack.c.l.b16 %v166
    %v1430 = vunpack.c.l.b16 %v167
    %v1431 = vunpack.c.l.b16 %v168
    %v1432 = vunpack.c.l.b16 %v169
    %v1433 = vunpack.c.l.b16 %v170
    %v1434 = vunpack.c.l.b16 %v171
    %v1435 = vunpack.c.l.b16 %v172
    %v1436 = vunpack.c.l.b16 %v173
    %v1437 = vunpack.c.l.b16 %v174
    %v1438 = vunpack.c.l.b16 %v175
    %v1439 = vunpack.c.l.b16 %v176
    %v1440 = vunpack.c.l.b16 %v177
    %v1441 = vunpack.c.l.b16 %v178
    %v1442 = vunpack.c.l.b16 %v179
    %v1443 = vunpack.c.l.b16 %v180
    %v1444 = vunpack.c.l.b16 %v181
    %v1445 = vunpack.c.l.b16 %v182
    %v1446 = vunpack.c.l.b16 %v183
    %v1447 = vunpack.c.l.b16 %v184
    %v1448 = vunpack.c.l.b16 %v185
    %v1449 = vunpack.c.l.b16 %v186
    %v1450 = vunpack.c.l.b16 %v187
    %v1451 = vunpack.c.l.b16 %v188
    %v1452 = vunpack.c.l.b16 %v189
    %v1453 = vunpack.c.l.b16 %v190
    %v1454 = vunpack.c.l.b16 %v191
    %v1455 = vunpack.c.l.b16 %v192
    %v1456 = vunpack.c.l.b16 %v193
    %v1457 = vunpack.c.l.b16 %v194
    %v1458 = vunpack.c.l.b16 %v195
    %v1459 = vunpack.c.l.b16 %v196
    %v1460 = vunpack.c.l.b16 %v197
    %v1461 = vunpack.c.l.b16 %v198
    %v1462 = vunpack.c.l.b16 %v199
    %v1463 = vunpack.c.l.b16 %v200
    %v1464 = vunpack.c.l.b16 %v201
    %v1465 = vunpack.c.l.b16 %v202
    %v1466 = vunpack.c.l.b16 %v203
    %v1467 = vunpack.c.l.b16 %v204
    %v1468 = vunpack.c.l.b16 %v205
    %v1469 = vunpack.c.l.b16 %v206
    %v1470 = vunpack.c.l.b16 %v207
    %v1471 = vunpack.c.l.b16 %v208
    %v1472 = vunpack.c.l.b16 %v209
    %v1473 = vunpack.c.l.b16 %v210
    %v1474 = vunpack.c.l.b16 %v211
    %v1475 = vunpack.c.l.b16 %v212
    %v1476 = vunpack.c.l.b16 %v213
    %v1477 = vunpack.c.l.b16 %v214
    %v1478 = vunpack.c.l.b16 %v215
    %v1479 = vunpack.c.l.b16 %v216
    %v1480 = vunpack.c.l.b16 %v217
    %v1481 = vunpack.c.l.b16 %v218
    %v1482 = vunpack.c.l.b16 %v219
    %v1483 = vunpack.c.l.b16 %v220
    %v1484 = vunpack.c.l.b16 %v221
    %v1485 = vunpack.c.l.b16 %v222
    %v1486 = vunpack.c.l.b16 %v223
    %v1487 = vunpack.c.l.b16 %v224
    %v1488 = vunpack.c.l.b16 %v225
    %v1489 = vunpack.c.l.b16 %v226
    %v1490 = vunpack.c.l.b16 %v227
    %v1491 = vunpack.c.l.b16 %v228
    %v1492 = vunpack.c.l.b16 %v229
    %v1493 = vunpack.c.l.b16 %v230
    %v1494 = vunpack.c.l.b16 %v231
    %v1495 = vunpack.c.l.b16 %v232
    %v1496 = vunpack.c.l.b16 %v233
    %v1497 = vunpack.c.l.b16 %v234
    %v1498 = vunpack.c.l.b16 %v235
    %v1499 = vunpack.c.l.b16 %v236
    %v1500 = vunpack.c.l.b16 %v237
    %v1501 = vunpack.c.l.b16 %v238
    %v1502 = vunpack.c.l.b16 %v239
    %v1503 = vunpack.c.l.b16 %v240
    %v1504 = vunpack.c.l.b16 %v241
    %v1505 = vunpack.c.l.b16 %v242
    %v1506 = vunpack.c.l.b16 %v243
    %v1507 = vunpack.c.l.b16 %v244
    %v1508 = vunpack.c.l.b16 %v245
    %v1509 = vunpack.c.l.b16 %v246
    %v1510 = vunpack.c.l.b16 %v247
    %v1511 = vunpack.c.l.b16 %v248
    %v1512 = vunpack.c.l.b16 %v249
    %v1513 = vunpack.c.l.b16 %v250
    %v1514 = vunpack.c.l.b16 %v251
    %v1515 = vunpack.c.l.b16 %v252
    %v1516 = vunpack.c.l.b16 %v253
    %v1517 = vunpack.c.l.b16 %v254
    %v1518 = vunpack.c.l.b16 %v255
    %v1519 = vunpack.c.l.b16 %v256
    %v1520 = vunpack.c.l.b16 %v257
    %v1521 = vunpack.c.l.b16 %v258
    %v1522 = vunpack.c.l.b16 %v259
    %v1523 = vunpack.c.l.b16 %v260
    %v1524 = vunpack.c.l.b16 %v261
    %v1525 = vunpack.c.l.b16 %v262
    %v1526 = vunpack.c.l.b16 %v263
    %v1527 = vunpack.c.l.b16 %v264
    %v1528 = vunpack.c.l.b16 %v265
    %v1529 = vunpack.c.l.b16 %v266
    %v1530 = vunpack.c.l.b16 %v267
    %v1531 = vunpack.c.l.b16 %v268
    %v1532 = vunpack.c.l.b16 %v269
    %v1533 = vunpack.c.l.b16 %v270
    %v1534 = vunpack.c.l.b16 %v271
    %v1535 = vunpack.c.l.b16 %v272
    %v1536 = vunpack.c.l.b16 %v273
    %v1537 = vunpack.c.l.b16 %v274
    %v1538 = vunpack.c.l.b16 %v275
    %v1539 = vunpack.c.l.b16 %v276
    %v1540 = vunpack.c.l.b16 %v277
    %v1541 = vunpack.c.l.b16 %v278
    %v1542 = vunpack.c.l.b16 %v279
    %v1543 = vunpack.c.l.b16 %v280
    %v1544 = vunpack.c.l.b16 %v281
    %v1545 = vunpack.c.l.b16 %v282
    %v1546 = vunpack.c.l.b16 %v283
    %v1547 = vunpack.c.l.b16 %v284
    %v1548 = vunpack.c.l.b16 %v285
    %v1549 = vunpack.c.l.b16 %v286
    %v1550 = vunpack.c.l.b16 %v287
    %v1551 = vunpack.c.l.b16 %v288
    %v1552 = vunpack.c.l.b16 %v289
    %v1553 = vunpack.c.l.b16 %v290
    %v1554 = vunpack.c.l.b16 %v291
    %v1555 = vunpack.c.l.b16 %v292
    %v1556 = vunpack.c.l.b16 %v293
    %v1557 = vunpack.c.l.b16 %v294
    %v1558 = vunpack.c.l.b16 %v295
    %v1559 = vunpack.c.l.b16 %v296
    %v1560 = vunpack.c.l.b16 %v297
    %v1561 = vunpack.c.l.b16 %v298
    %v1562 = vunpack.c.l.b16 %v299
    %v1563 = vunpack.c.l.b16 %v300
    %v1564 = vunpack.c.l.b16 %v301
    %v1565 = vunpack.c.l.b16 %v302
    %v1566 = vunpack.c.l.b16 %v303
    %v1567 = vunpack.c.l.b16 %v304
    %v1568 = vunpack.c.l.b16 %v305
    %v1569 = vunpack.c.l.b16 %v306
    %v1570 = vunpack.c.l.b16 %v307
    %v1571 = vunpack.c.l.b16 %v308
    %v1572 = vunpack.c.l.b16 %v309
    %v1573 = vunpack.c.l.b16 %v310
    %v1574 = vunpack.c.l.b16 %v311
    %v1575 = vunpack.c.l.b16 %v312
    %v1576 = vunpack.c.l.b16 %v313
    %v1577 = vunpack.c.l.b16 %v314
    %v1578 = vunpack.c.l.b16 %v315
    %v1579 = vunpack.c.l.b16 %v316
    %v1580 = vunpack.c.l.b16 %v317
    %v1581 = vunpack.c.l.b16 %v318
    %v1582 = vunpack.c.l.b16 %v319
    %v1583 = vunpack.c.l.b16 %v320
    %v1584 = vunpack.c.l.b16 %v321
    %v1585 = vunpack.c.l.b16 %v322
    %v1586 = vunpack.c.l.b16 %v323
    %v1587 = vunpack.c.l.b16 %v324
    %v1588 = vunpack.c.l.b16 %v325
    %v1589 = vunpack.c.l.b16 %v326
    %v1590 = vunpack.c.l.b16 %v327
    %v1591 = vunpack.c.l.b16 %v328
    %v1592 = vunpack.c.l.b16 %v329
    %v1593 = vunpack.c.l.b16 %v330
    %v1594 = vunpack.c.l.b16 %v331
    %v1595 = vunpack.c.l.b16 %v332
    %v1596 = vunpack.c.l.b16 %v333
    %v1597 = vunpack.c.l.b16 %v334
    %v1598 = vunpack.c.l.b16 %v335
    %v1599 = vunpack.c.l.b16 %v336
    %v1600 = vunpack.c.l.b16 %v337
    %v1601 = vunpack.c.l.b16 %v338
    %v1602 = vunpack.c.l.b16 %v339
    %v1603 = vunpack.c.l.b16 %v340
    %v1604 = vunpack.c.l.b16 %v341
    %v1605 = vunpack.c.l.b16 %v342
    %v1606 = vunpack.c.l.b16 %v343
    %v1607 = vunpack.c.l.b16 %v344
    %v1608 = vunpack.c.l.b16 %v345
    %v1609 = vunpack.c.l.b16 %v346
    %v1610 = vunpack.c.l.b16 %v347
    %v1611 = vunpack.c.l.b16 %v348
    %v1612 = vunpack.c.l.b16 %v349
    %v1613 = vunpack.c.l.b16 %v350
    %v1614 = vunpack.c.l.b16 %v351
    %v1615 = vunpack.c.l.b16 %v352
    %v1616 = vunpack.c.l.b16 %v353
    %v1617 = vunpack.c.l.b16 %v354
    %v1618 = vunpack.c.l.b16 %v355
    %v1619 = vunpack.c.l.b16 %v356
    %v1620 = vunpack.c.l.b16 %v357
    %v1621 = vunpack.c.l.b16 %v358
    %v1622 = vunpack.c.l.b16 %v359
    %v1623 = vunpack.c.l.b16 %v360
    %v1624 = vunpack.c.l.b16 %v361
    %v1625 = vunpack.c.l.b16 %v362
    %v1626 = vunpack.c.l.b16 %v363
    %v1627 = vunpack.c.l.b16 %v364
    %v1628 = vunpack.c.l.b16 %v365
    %v1629 = vunpack.c.l.b16 %v366
    %v1630 = vunpack.c.l.b16 %v367
    %v1631 = vunpack.c.l.b16 %v368
    %v1632 = vunpack.c.l.b16 %v369
    %v1633 = vunpack.c.l.b16 %v370
    %v1634 = vunpack.c.l.b16 %v371
    %v1635 = vunpack.c.l.b16 %v372
    %v1636 = vunpack.c.l.b16 %v373
    %v1637 = vunpack.c.l.b16 %v374
    %v1638 = vunpack.c.l.b16 %v375
    %v1639 = vunpack.c.l.b16 %v376
    %v1640 = vunpack.c.l.b16 %v377
    %v1641 = vunpack.c.l.b16 %v378
    %v1642 = vunpack.c.l.b16 %v379
    %v1643 = vunpack.c.l.b16 %v380
    %v1644 = vunpack.c.l.b16 %v381
    %v1645 = vunpack.c.l.b16 %v382
    %v1646 = vunpack.c.l.b16 %v383
    %v1647 = vunpack.c.l.b16 %v384
    %v1648 = vunpack.c.l.b16 %v385
    %v1649 = vunpack.c.l.b16 %v386
    %v1650 = vunpack.c.l.b16 %v387
    %v1651 = vunpack.c.l.b16 %v388
    %v1652 = vunpack.c.l.b16 %v389
    %v1653 = vunpack.c.l.b16 %v390
    %v1654 = vunpack.c.l.b16 %v391
    %v1655 = vunpack.c.l.b16 %v392
    %v1656 = vunpack.c.l.b16 %v393
    %v1657 = vunpack.c.l.b16 %v394
    %v1658 = vunpack.c.l.b16 %v395
    %v1659 = vunpack.c.l.b16 %v396
    %v1660 = vunpack.c.l.b16 %v397
    %v1661 = vunpack.c.l.b16 %v398
    %v1662 = vunpack.c.l.b16 %v399
    %v1663 = vunpack.c.l.b16 %v400
    %v1664 = vunpack.c.l.b16 %v401
    %v1665 = vunpack.c.l.b16 %v402
    %v1666 = vunpack.c.l.b16 %v403
    %v1667 = vunpack.c.l.b16 %v404
    %v1668 = vunpack.c.l.b16 %v405
    %v1669 = vunpack.c.l.b16 %v406
    %v1670 = vunpack.c.l.b16 %v407
    %v1671 = vunpack.c.l.b16 %v408
    %v1672 = vunpack.c.l.b16 %v409
    %v1673 = vunpack.c.l.b16 %v410
    %v1674 = vunpack.c.l.b16 %v411
    %v1675 = vunpack.c.l.b16 %v412
    %v1676 = vunpack.c.l.b16 %v413
    %v1677 = vunpack.c.l.b16 %v414
    %v1678 = vunpack.c.l.b16 %v415
    %v1679 = vunpack.c.l.b16 %v416
    %v1680 = vunpack.c.l.b16 %v417
    %v1681 = vunpack.c.l.b16 %v418
    %v1682 = vunpack.c.l.b16 %v419
    %v1683 = vunpack.c.l.b16 %v420
    %v1684 = vunpack.c.l.b16 %v421
    %v1685 = vunpack.c.l.b16 %v422
    %v1686 = vunpack.c.l.b16 %v423
    %v1687 = vunpack.c.l.b16 %v424
    %v1688 = vunpack.c.l.b16 %v425
    %v1689 = vunpack.c.l.b16 %v426
    %v1690 = vunpack.c.l.b16 %v427
    %v1691 = vunpack.c.l.b16 %v428
    %v1692 = vunpack.c.l.b16 %v429
    %v1693 = vunpack.c.l.b16 %v430
    %v1694 = vunpack.c.l.b16 %v431
    %v1695 = vunpack.c.l.b16 %v432
    %v1696 = vunpack.c.l.b16 %v433
    %v1697 = vunpack.c.l.b16 %v434
    %v1698 = vunpack.c.l.b16 %v435
    %v1699 = vunpack.c.l.b16 %v436
    %v1700 = vunpack.c.l.b16 %v437
    %v1701 = vunpack.c.l.b16 %v438
    %v1702 = vunpack.c.l.b16 %v439
    %v1703 = vunpack.c.l.b16 %v440
    %v1704 = vunpack.c.l.b16 %v441
    %v1705 = vunpack.c.l.b16 %v442
    %v1706 = vunpack.c.l.b16 %v443
    %v1707 = vunpack.c.l.b16 %v444
    %v1708 = vunpack.c.l.b16 %v445
    %v1709 = vunpack.c.l.b16 %v446
    %v1710 = vunpack.c.l.b16 %v447
    %v1711 = vunpack.c.l.b16 %v448
    %v1712 = vunpack.c.l.b16 %v449
    %v1713 = vunpack.c.l.b16 %v450
    %v1714 = vunpack.c.l.b16 %v451
    %v1715 = vunpack.c.l.b16 %v452
    %v1716 = vunpack.c.l.b16 %v453
    %v1717 = vunpack.c.l.b16 %v454
    %v1718 = vunpack.c.l.b16 %v455
    %v1719 = vunpack.c.l.b16 %v456
    %v1720 = vunpack.c.l.b16 %v457
    %v1721 = vunpack.c.l.b16 %v458
    %v1722 = vunpack.c.l.b16 %v459
    %v1723 = vunpack.c.l.b16 %v460
    %v1724 = vunpack.c.l.b16 %v461
    %v1725 = vunpack.c.l.b16 %v462
    %v1726 = vunpack.c.l.b16 %v463
    %v1727 = vunpack.c.l.b16 %v464
    %v1728 = vunpack.c.l.b16 %v465
    %v1729 = vunpack.c.l.b16 %v466
    %v1730 = vunpack.c.l.b16 %v467
    %v1731 = vunpack.c.l.b16 %v468
    %v1732 = vunpack.c.l.b16 %v469
    %v1733 = vunpack.c.l.b16 %v470
    %v1734 = vunpack.c.l.b16 %v471
    %v1735 = vunpack.c.l.b16 %v472
    %v1736 = vunpack.c.l.b16 %v473
    %v1737 = vunpack.c.l.b16 %v474
    %v1738 = vunpack.c.l.b16 %v475
    %v1739 = vunpack.c.l.b16 %v476
    %v1740 = vunpack.c.l.b16 %v477
    %v1741 = vunpack.c.l.b16 %v478
    %v1742 = vunpack.c.l.b16 %v479
    %v1743 = vunpack.c.l.b16 %v480
    %v1744 = vunpack.c.l.b16 %v481
    %v1745 = vunpack.c.l.b16 %v482
    %v1746 = vunpack.c.l.b16 %v483
    %v1747 = vunpack.c.l.b16 %v484
    %v1748 = vunpack.c.l.b16 %v485
    %v1749 = vunpack.c.l.b16 %v486
    %v1750 = vunpack.c.l.b16 %v487
    %v1751 = vunpack.c.l.b16 %v488
    %v1752 = vunpack.c.l.b16 %v489
    %v1753 = vunpack.c.l.b16 %v490
    %v1754 = vunpack.c.l.b16 %v491
    %v1755 = vunpack.c.l.b16 %v492
    %v1756 = vunpack.c.l.b16 %v493
    %v1757 = vunpack.c.l.b16 %v494
    %v1758 = vunpack.c.l.b16 %v495
    %v1759 = vunpack.c.l.b16 %v496
    %v1760 = vunpack.c.l.b16 %v497
    %v1761 = vunpack.c.l.b16 %v498
    %v1762 = vunpack.c.l.b16 %v499
    %v1763 = vunpack.c.l.b16 %v500
    %v1764 = vunpack.c.l.b16 %v501
    %v1765 = vunpack.c.l.b16 %v502
    %v1766 = vunpack.c.l.b16 %v503
    %v1767 = vunpack.c.l.b16 %v504
    %v1768 = vunpack.c.l.b16 %v505
    %v1769 = vunpack.c.l.b16 %v506
    %v1770 = vunpack.c.l.b16 %v507
    %v1771 = vunpack.c.l.b16 %v508
    %v1772 = vunpack.c.l.b16 %v509
    %v1773 = vunpack.c.l.b16 %v510
    %v1774 = vunpack.c.l.b16 %v511
    %v1775 = vunpack.c.l.b16 %v512
    %v1776 = vunpack.c.l.b16 %v513
    %v1777 = vunpack.c.l.b16 %v514
    %v1778 = vunpack.c.l.b16 %v515
    %v1779 = vunpack.c.l.b16 %v516
    %v1780 = vunpack.c.l.b16 %v517
    %v1781 = vunpack.c.l.b16 %v518
    %v1782 = vunpack.c.l.b16 %v519
    %v1783 = vunpack.c.l.b16 %v520
    %v1784 = vunpack.c.l.b16 %v521
    %v1785 = vunpack.c.l.b16 %v522
    %v1786 = vunpack.c.l.b16 %v523
    %v1787 = vunpack.c.l.b16 %v524
    %v1788 = vunpack.c.l.b16 %v525
    %v1789 = vunpack.c.l.b16 %v526
    %v1790 = vunpack.c.l.b16 %v527
    %v1791 = vunpack.c.l.b16 %v528
    %v1792 = vunpack.c.l.b16 %v529
    %v1793 = vunpack.c.l.b16 %v530
    %v1794 = vunpack.c.l.b16 %v531
    %v1795 = vunpack.c.l.b16 %v532
    %v1796 = vunpack.c.l.b16 %v533
    %v1797 = vunpack.c.l.b16 %v534
    %v1798 = vunpack.c.l.b16 %v535
    %v1799 = vunpack.c.l.b16 %v536
    %v1800 = vunpack.c.l.b16 %v537
    %v1801 = vpack.c.b16 %v1290, %v1289
    %v1802 = vpack.c.b16 %v1292, %v1291
    %v1803 = vpack.c.b16 %v1294, %v1293
    %v1804 = vpack.c.b16 %v1296, %v1295
    %v1805 = vpack.c.b16 %v1298, %v1297
    %v1806 = vpack.c.b16 %v1300, %v1299
    %v1807 = vpack.c.b16 %v1302, %v1301
    %v1808 = vpack.c.b16 %v1304, %v1303
    %v1809 = vpack.c.b16 %v1306, %v1305
    %v1810 = vpack.c.b16 %v1308, %v1307
    %v1811 = vpack.c.b16 %v1310, %v1309
    %v1812 = vpack.c.b16 %v1312, %v1311
    %v1813 = vpack.c.b16 %v1314, %v1313
    %v1814 = vpack.c.b16 %v1316, %v1315
    %v1815 = vpack.c.b16 %v1318, %v1317
    %v1816 = vpack.c.b16 %v1320, %v1319
    %v1817 = vpack.c.b16 %v1322, %v1321
    %v1818 = vpack.c.b16 %v1324, %v1323
    %v1819 = vpack.c.b16 %v1326, %v1325
    %v1820 = vpack.c.b16 %v1328, %v1327
    %v1821 = vpack.c.b16 %v1330, %v1329
    %v1822 = vpack.c.b16 %v1332, %v1331
    %v1823 = vpack.c.b16 %v1334, %v1333
    %v1824 = vpack.c.b16 %v1336, %v1335
    %v1825 = vpack.c.b16 %v1338, %v1337
    %v1826 = vpack.c.b16 %v1340, %v1339
    %v1827 = vpack.c.b16 %v1342, %v1341
    %v1828 = vpack.c.b16 %v1344, %v1343
    %v1829 = vpack.c.b16 %v1346, %v1345
    %v1830 = vpack.c.b16 %v1348, %v1347
    %v1831 = vpack.c.b16 %v1350, %v1349
    %v1832 = vpack.c.b16 %v1352, %v1351
    %v1833 = vpack.c.b16 %v1354, %v1353
    %v1834 = vpack.c.b16 %v1356, %v1355
    %v1835 = vpack.c.b16 %v1358, %v1357
    %v1836 = vpack.c.b16 %v1360, %v1359
    %v1837 = vpack.c.b16 %v1362, %v1361
    %v1838 = vpack.c.b16 %v1364, %v1363
    %v1839 = vpack.c.b16 %v1366, %v1365
    %v1840 = vpack.c.b16 %v1368, %v1367
    %v1841 = vpack.c.b16 %v1370, %v1369
    %v1842 = vpack.c.b16 %v1372, %v1371
    %v1843 = vpack.c.b16 %v1374, %v1373
    %v1844 = vpack.c.b16 %v1376, %v1375
    %v1845 = vpack.c.b16 %v1378, %v1377
    %v1846 = vpack.c.b16 %v1380, %v1379
    %v1847 = vpack.c.b16 %v1382, %v1381
    %v1848 = vpack.c.b16 %v1384, %v1383
    %v1849 = vpack.c.b16 %v1386, %v1385
    %v1850 = vpack.c.b16 %v1388, %v1387
    %v1851 = vpack.c.b16 %v1390, %v1389
    %v1852 = vpack.c.b16 %v1392, %v1391
    %v1853 = vpack.c.b16 %v1394, %v1393
    %v1854 = vpack.c.b16 %v1396, %v1395
    %v1855 = vpack.c.b16 %v1398, %v1397
    %v1856 = vpack.c.b16 %v1400, %v1399
    %v1857 = vpack.c.b16 %v1402, %v1401
    %v1858 = vpack.c.b16 %v1404, %v1403
    %v1859 = vpack.c.b16 %v1406, %v1405
    %v1860 = vpack.c.b16 %v1408, %v1407
    %v1861 = vpack.c.b16 %v1410, %v1409
    %v1862 = vpack.c.b16 %v1412, %v1411
    %v1863 = vpack.c.b16 %v1414, %v1413
    %v1864 = vpack.c.b16 %v1416, %v1415
    %v1865 = vpack.c.b16 %v1418, %v1417
    %v1866 = vpack.c.b16 %v1420, %v1419
    %v1867 = vpack.c.b16 %v1422, %v1421
    %v1868 = vpack.c.b16 %v1424, %v1423
    %v1869 = vpack.c.b16 %v1426, %v1425
    %v1870 = vpack.c.b16 %v1428, %v1427
    %v1871 = vpack.c.b16 %v1430, %v1429
    %v1872 = vpack.c.b16 %v1432, %v1431
    %v1873 = vpack.c.b16 %v1434, %v1433
    %v1874 = vpack.c.b16 %v1436, %v1435
    %v1875 = vpack.c.b16 %v1438, %v1437
    %v1876 = vpack.c.b16 %v1440, %v1439
    %v1877 = vpack.c.b16 %v1442, %v1441
    %v1878 = vpack.c.b16 %v1444, %v1443
    %v1879 = vpack.c.b16 %v1446, %v1445
    %v1880 = vpack.c.b16 %v1448, %v1447
    %v1881 = vpack.c.b16 %v1450, %v1449
    %v1882 = vpack.c.b16 %v1452, %v1451
    %v1883 = vpack.c.b16 %v1454, %v1453
    %v1884 = vpack.c.b16 %v1456, %v1455
    %v1885 = vpack.c.b16 %v1458, %v1457
    %v1886 = vpack.c.b16 %v1460, %v1459
    %v1887 = vpack.c.b16 %v1462, %v1461
    %v1888 = vpack.c.b16 %v1464, %v1463
    %v1889 = vpack.c.b16 %v1466, %v1465
    %v1890 = vpack.c.b16 %v1468, %v1467
    %v1891 = vpack.c.b16 %v1470, %v1469
    %v1892 = vpack.c.b16 %v1472, %v1471
    %v1893 = vpack.c.b16 %v1474, %v1473
    %v1894 = vpack.c.b16 %v1476, %v1475
    %v1895 = vpack.c.b16 %v1478, %v1477
    %v1896 = vpack.c.b16 %v1480, %v1479
    %v1897 = vpack.c.b16 %v1482, %v1481
    %v1898 = vpack.c.b16 %v1484, %v1483
    %v1899 = vpack.c.b16 %v1486, %v1485
    %v1900 = vpack.c.b16 %v1488, %v1487
    %v1901 = vpack.c.b16 %v1490, %v1489
    %v1902 = vpack.c.b16 %v1492, %v1491
    %v1903 = vpack.c.b16 %v1494, %v1493
    %v1904 = vpack.c.b16 %v1496, %v1495
    %v1905 = vpack.c.b16 %v1498, %v1497
    %v1906 = vpack.c.b16 %v1500, %v1499
    %v1907 = vpack.c.b16 %v1502, %v1501
    %v1908 = vpack.c.b16 %v1504, %v1503
    %v1909 = vpack.c.b16 %v1506, %v1505
    %v1910 = vpack.c.b16 %v1508, %v1507
    %v1911 = vpack.c.b16 %v1510, %v1509
    %v1912 = vpack.c.b16 %v1512, %v1511
    %v1913 = vpack.c.b16 %v1514, %v1513
    %v1914 = vpack.c.b16 %v1516, %v1515
    %v1915 = vpack.c.b16 %v1518, %v1517
    %v1916 = vpack.c.b16 %v1520, %v1519
    %v1917 = vpack.c.b16 %v1522, %v1521
    %v1918 = vpack.c.b16 %v1524, %v1523
    %v1919 = vpack.c.b16 %v1526, %v1525
    %v1920 = vpack.c.b16 %v1528, %v1527
    %v1921 = vpack.c.b16 %v1530, %v1529
    %v1922 = vpack.c.b16 %v1532, %v1531
    %v1923 = vpack.c.b16 %v1534, %v1533
    %v1924 = vpack.c.b16 %v1536, %v1535
    %v1925 = vpack.c.b16 %v1538, %v1537
    %v1926 = vpack.c.b16 %v1540, %v1539
    %v1927 = vpack.c.b16 %v1542, %v1541
    %v1928 = vpack.c.b16 %v1544, %v1543
    %v1929 = vpack.c.b16 %v1546, %v1545
    %v1930 = vpack.c.b16 %v1548, %v1547
    %v1931 = vpack.c.b16 %v1550, %v1549
    %v1932 = vpack.c.b16 %v1552, %v1551
    %v1933 = vpack.c.b16 %v1554, %v1553
    %v1934 = vpack.c.b16 %v1556, %v1555
    %v1935 = vpack.c.b16 %v1558, %v1557
    %v1936 = vpack.c.b16 %v1560, %v1559
    %v1937 = vpack.c.b16 %v1562, %v1561
    %v1938 = vpack.c.b16 %v1564, %v1563
    %v1939 = vpack.c.b16 %v1566, %v1565
    %v1940 = vpack.c.b16 %v1568, %v1567
    %v1941 = vpack.c.b16 %v1570, %v1569
    %v1942 = vpack.c.b16 %v1572, %v1571
    %v1943 = vpack.c.b16 %v1574, %v1573
    %v1944 = vpack.c.b16 %v1576, %v1575
    %v1945 = vpack.c.b16 %v1578, %v1577
    %v1946 = vpack.c.b16 %v1580, %v1579
    %v1947 = vpack.c.b16 %v1582, %v1581
    %v1948 = vpack.c.b16 %v1584, %v1583
    %v1949 = vpack.c.b16 %v1586, %v1585
    %v1950 = vpack.c.b16 %v1588, %v1587
    %v1951 = vpack.c.b16 %v1590, %v1589
    %v1952 = vpack.c.b16 %v1592, %v1591
    %v1953 = vpack.c.b16 %v1594, %v1593
    %v1954 = vpack.c.b16 %v1596, %v1595
    %v1955 = vpack.c.b16 %v1598, %v1597
    %v1956 = vpack.c.b16 %v1600, %v1599
    %v1957 = vpack.c.b16 %v1602, %v1601
    %v1958 = vpack.c.b16 %v1604, %v1603
    %v1959 = vpack.c.b16 %v1606, %v1605
    %v1960 = vpack.c.b16 %v1608, %v1607
    %v1961 = vpack.c.b16 %v1610, %v1609
    %v1962 = vpack.c.b16 %v1612, %v1611
    %v1963 = vpack.c.b16 %v1614, %v1613
    %v1964 = vpack.c.b16 %v1616, %v1615
    %v1965 = vpack.c.b16 %v1618, %v1617
    %v1966 = vpack.c.b16 %v1620, %v1619
    %v1967 = vpack.c.b16 %v1622, %v1621
    %v1968 = vpack.c.b16 %v1624, %v1623
    %v1969 = vpack.c.b16 %v1626, %v1625
    %v1970 = vpack.c.b16 %v1628, %v1627
    %v1971 = vpack.c.b16 %v1630, %v1629
    %v1972 = vpack.c.b16 %v1632, %v1631
    %v1973 = vpack.c.b16 %v1634, %v1633
    %v1974 = vpack.c.b16 %v1636, %v1635
    %v1975 = vpack.c.b16 %v1638, %v1637
    %v1976 = vpack.c.b16 %v1640, %v1639
    %v1977 = vpack.c.b16 %v1642, %v1641
    %v1978 = vpack.c.b16 %v1644, %v1643
    %v1979 = vpack.c.b16 %v1646, %v1645
    %v1980 = vpack.c.b16 %v1648, %v1647
    %v1981 = vpack.c.b16 %v1650, %v1649
    %v1982 = vpack.c.b16 %v1652, %v1651
    %v1983 = vpack.c.b16 %v1654, %v1653
    %v1984 = vpack.c.b16 %v1656, %v1655
    %v1985 = vpack.c.b16 %v1658, %v1657
    %v1986 = vpack.c.b16 %v1660, %v1659
    %v1987 = vpack.c.b16 %v1662, %v1661
    %v1988 = vpack.c.b16 %v1664, %v1663
    %v1989 = vpack.c.b16 %v1666, %v1665
    %v1990 = vpack.c.b16 %v1668, %v1667
    %v1991 = vpack.c.b16 %v1670, %v1669
    %v1992 = vpack.c.b16 %v1672, %v1671
    %v1993 = vpack.c.b16 %v1674, %v1673
    %v1994 = vpack.c.b16 %v1676, %v1675
    %v1995 = vpack.c.b16 %v1678, %v1677
    %v1996 = vpack.c.b16 %v1680, %v1679
    %v1997 = vpack.c.b16 %v1682, %v1681
    %v1998 = vpack.c.b16 %v1684, %v1683
    %v1999 = vpack.c.b16 %v1686, %v1685
    %v2000 = vpack.c.b16 %v1688, %v1687
    %v2001 = vpack.c.b16 %v1690, %v1689
    %v2002 = vpack.c.b16 %v1692, %v1691
    %v2003 = vpack.c.b16 %v1694, %v1693
    %v2004 = vpack.c.b16 %v1696, %v1695
    %v2005 = vpack.c.b16 %v1698, %v1697
    %v2006 = vpack.c.b16 %v1700, %v1699
    %v2007 = vpack.c.b16 %v1702, %v1701
    %v2008 = vpack.c.b16 %v1704, %v1703
    %v2009 = vpack.c.b16 %v1706, %v1705
    %v2010 = vpack.c.b16 %v1708, %v1707
    %v2011 = vpack.c.b16 %v1710, %v1709
    %v2012 = vpack.c.b16 %v1712, %v1711
    %v2013 = vpack.c.b16 %v1714, %v1713
    %v2014 = vpack.c.b16 %v1716, %v1715
    %v2015 = vpack.c.b16 %v1718, %v1717
    %v2016 = vpack.c.b16 %v1720, %v1719
    %v2017 = vpack.c.b16 %v1722, %v1721
    %v2018 = vpack.c.b16 %v1724, %v1723
    %v2019 = vpack.c.b16 %v1726, %v1725
    %v2020 = vpack.c.b16 %v1728, %v1727
    %v2021 = vpack.c.b16 %v1730, %v1729
    %v2022 = vpack.c.b16 %v1732, %v1731
    %v2023 = vpack.c.b16 %v1734, %v1733
    %v2024 = vpack.c.b16 %v1736, %v1735
    %v2025 = vpack.c.b16 %v1738, %v1737
    %v2026 = vpack.c.b16 %v1740, %v1739
    %v2027 = vpack.c.b16 %v1742, %v1741
    %v2028 = vpack.c.b16 %v1744, %v1743
    %v2029 = vpack.c.b16 %v1746, %v1745
    %v2030 = vpack.c.b16 %v1748, %v1747
    %v2031 = vpack.c.b16 %v1750, %v1749
    %v2032 = vpack.c.b16 %v1752, %v1751
    %v2033 = vpack.c.b16 %v1754, %v1753
    %v2034 = vpack.c.b16 %v1756, %v1755
    %v2035 = vpack.c.b16 %v1758, %v1757
    %v2036 = vpack.c.b16 %v1760, %v1759
    %v2037 = vpack.c.b16 %v1762, %v1761
    %v2038 = vpack.c.b16 %v1764, %v1763
    %v2039 = vpack.c.b16 %v1766, %v1765
    %v2040 = vpack.c.b16 %v1768, %v1767
    %v2041 = vpack.c.b16 %v1770, %v1769
    %v2042 = vpack.c.b16 %v1772, %v1771
    %v2043 = vpack.c.b16 %v1774, %v1773
    %v2044 = vpack.c.b16 %v1776, %v1775
    %v2045 = vpack.c.b16 %v1778, %v1777
    %v2046 = vpack.c.b16 %v1780, %v1779
    %v2047 = vpack.c.b16 %v1782, %v1781
    %v2048 = vpack.c.b16 %v1784, %v1783
    %v2049 = vpack.c.b16 %v1786, %v1785
    %v2050 = vpack.c.b16 %v1788, %v1787
    %v2051 = vpack.c.b16 %v1790, %v1789
    %v2052 = vpack.c.b16 %v1792, %v1791
    %v2053 = vpack.c.b16 %v1794, %v1793
    %v2054 = vpack.c.b16 %v1796, %v1795
    %v2055 = vpack.c.b16 %v1798, %v1797
    %v2056 = vpack.c.b16 %v1800, %v1799
    %2313 = vmatprep.subr.bf16.mxu0 0
    %2314 = vmatpush1.bf16.msra.mxu0 %v1801
    %2315 = vmatprep.subr.bf16.mxu0 0
    %2316 = vmatpush1.bf16.msra.mxu0 %v1802
    %2317 = vmatprep.subr.bf16.mxu0 0
    %2318 = vmatpush1.bf16.msra.mxu0 %v1803
    %2319 = vmatprep.subr.bf16.mxu0 0
    %2320 = vmatpush1.bf16.msra.mxu0 %v1804
    %2321 = vmatprep.subr.bf16.mxu0 0
    %2322 = vmatpush1.bf16.msra.mxu0 %v1805
    %2323 = vmatprep.subr.bf16.mxu0 0
    %2324 = vmatpush1.bf16.msra.mxu0 %v1806
    %2325 = vmatprep.subr.bf16.mxu0 0
    %2326 = vmatpush1.bf16.msra.mxu0 %v1807
    %2327 = vmatprep.subr.bf16.mxu0 0
    %2328 = vmatpush1.bf16.msra.mxu0 %v1808
    %2329 = vmatprep.subr.bf16.mxu0 0
    %2330 = vmatpush1.bf16.msra.mxu0 %v1809
    %2331 = vmatprep.subr.bf16.mxu0 0
    %2332 = vmatpush1.bf16.msra.mxu0 %v1810
    %2333 = vmatprep.subr.bf16.mxu0 0
    %2334 = vmatpush1.bf16.msra.mxu0 %v1811
    %2335 = vmatprep.subr.bf16.mxu0 0
    %2336 = vmatpush1.bf16.msra.mxu0 %v1812
    %2337 = vmatprep.subr.bf16.mxu0 0
    %2338 = vmatpush1.bf16.msra.mxu0 %v1813
    %2339 = vmatprep.subr.bf16.mxu0 0
    %2340 = vmatpush1.bf16.msra.mxu0 %v1814
    %2341 = vmatprep.subr.bf16.mxu0 0
    %2342 = vmatpush1.bf16.msra.mxu0 %v1815
    %2343 = vmatprep.subr.bf16.mxu0 0
    %2344 = vmatpush1.bf16.msra.mxu0 %v1816
    %2345 = vmatprep.mubr.bf16.mxu0 %v586
    %2346 = vmatmul.mubr.bf16.gmra.mrb[0].mxu0 %v572
    %v2347 = vpop.f32.mrb[0].mxu0
    %v2348 = vadd.f32 %v543, %v2347
    %v2349 = vpop.f32.mrb[0].mxu0
    %v2350 = vpop.f32.mrb[0].mxu0
    %v2351 = vpop.f32.mrb[0].mxu0
    %2352 = vdwg.mxu0
    %2353 = vmatprep.subr.bf16.mxu0 0
    %2354 = vmatpush1.bf16.msra.mxu0 %v1817
    %2355 = vmatprep.subr.bf16.mxu0 0
    %2356 = vmatpush1.bf16.msra.mxu0 %v1818
    %2357 = vmatprep.subr.bf16.mxu0 0
    %2358 = vmatpush1.bf16.msra.mxu0 %v1819
    %2359 = vmatprep.subr.bf16.mxu0 0
    %2360 = vmatpush1.bf16.msra.mxu0 %v1820
    %2361 = vmatprep.subr.bf16.mxu0 0
    %2362 = vmatpush1.bf16.msra.mxu0 %v1821
    %2363 = vmatprep.subr.bf16.mxu0 0
    %2364 = vmatpush1.bf16.msra.mxu0 %v1822
    %2365 = vmatprep.subr.bf16.mxu0 0
    %2366 = vmatpush1.bf16.msra.mxu0 %v1823
    %2367 = vmatprep.subr.bf16.mxu0 0
    %2368 = vmatpush1.bf16.msra.mxu0 %v1824
    %2369 = vmatprep.subr.bf16.mxu0 0
    %2370 = vmatpush1.bf16.msra.mxu0 %v1825
    %2371 = vmatprep.subr.bf16.mxu0 0
    %2372 = vmatpush1.bf16.msra.mxu0 %v1826
    %2373 = vmatprep.subr.bf16.mxu0 0
    %2374 = vmatpush1.bf16.msra.mxu0 %v1827
    %2375 = vmatprep.subr.bf16.mxu0 0
    %2376 = vmatpush1.bf16.msra.mxu0 %v1828
    %2377 = vmatprep.subr.bf16.mxu0 0
    %2378 = vmatpush1.bf16.msra.mxu0 %v1829
    %2379 = vmatprep.subr.bf16.mxu0 0
    %2380 = vmatpush1.bf16.msra.mxu0 %v1830
    %2381 = vmatprep.subr.bf16.mxu0 0
    %2382 = vmatpush1.bf16.msra.mxu0 %v1831
    %2383 = vmatprep.subr.bf16.mxu0 0
    %2384 = vmatpush1.bf16.msra.mxu0 %v1832
    %2385 = vmatprep.mubr.bf16.mxu0 %v596
    %2386 = vmatmul.mubr.bf16.gmra.mrb[0].mxu0 %v594
    %v2387 = vpop.f32.mrb[0].mxu0
    %v2388 = vadd.f32 %v2348, %v2387
    %v2389 = vpop.f32.mrb[0].mxu0
    %v2390 = vpop.f32.mrb[0].mxu0
    %v2391 = vpop.f32.mrb[0].mxu0
    %2392 = vdwg.mxu0
    %2393 = vmatprep.subr.bf16.mxu0 0
    %2394 = vmatpush1.bf16.msra.mxu0 %v1833
    %2395 = vmatprep.subr.bf16.mxu0 0
    %2396 = vmatpush1.bf16.msra.mxu0 %v1834
    %2397 = vmatprep.subr.bf16.mxu0 0
    %2398 = vmatpush1.bf16.msra.mxu0 %v1835
    %2399 = vmatprep.subr.bf16.mxu0 0
    %2400 = vmatpush1.bf16.msra.mxu0 %v1836
    %2401 = vmatprep.subr.bf16.mxu0 0
    %2402 = vmatpush1.bf16.msra.mxu0 %v1837
    %2403 = vmatprep.subr.bf16.mxu0 0
    %2404 = vmatpush1.bf16.msra.mxu0 %v1838
    %2405 = vmatprep.subr.bf16.mxu0 0
    %2406 = vmatpush1.bf16.msra.mxu0 %v1839
    %2407 = vmatprep.subr.bf16.mxu0 0
    %2408 = vmatpush1.bf16.msra.mxu0 %v1840
    %2409 = vmatprep.subr.bf16.mxu0 0
    %2410 = vmatpush1.bf16.msra.mxu0 %v1841
    %2411 = vmatprep.subr.bf16.mxu0 0
    %2412 = vmatpush1.bf16.msra.mxu0 %v1842
    %2413 = vmatprep.subr.bf16.mxu0 0
    %2414 = vmatpush1.bf16.msra.mxu0 %v1843
    %2415 = vmatprep.subr.bf16.mxu0 0
    %2416 = vmatpush1.bf16.msra.mxu0 %v1844
    %2417 = vmatprep.subr.bf16.mxu0 0
    %2418 = vmatpush1.bf16.msra.mxu0 %v1845
    %2419 = vmatprep.subr.bf16.mxu0 0
    %2420 = vmatpush1.bf16.msra.mxu0 %v1846
    %2421 = vmatprep.subr.bf16.mxu0 0
    %2422 = vmatpush1.bf16.msra.mxu0 %v1847
    %2423 = vmatprep.subr.bf16.mxu0 0
    %2424 = vmatpush1.bf16.msra.mxu0 %v1848
    %2425 = vmatprep.mubr.bf16.mxu0 %v593
    %2426 = vmatmul.mubr.bf16.gmra.mrb[0].mxu0 %v579
    %v2427 = vpop.f32.mrb[0].mxu0
    %v2428 = vadd.f32 %v2388, %v2427
    %v2429 = vpop.f32.mrb[0].mxu0
    %v2430 = vpop.f32.mrb[0].mxu0
    %v2431 = vpop.f32.mrb[0].mxu0
    %2432 = vdwg.mxu0
    %2433 = vmatprep.subr.bf16.mxu0 0
    %2434 = vmatpush1.bf16.msra.mxu0 %v1849
    %2435 = vmatprep.subr.bf16.mxu0 0
    %2436 = vmatpush1.bf16.msra.mxu0 %v1850
    %2437 = vmatprep.subr.bf16.mxu0 0
    %2438 = vmatpush1.bf16.msra.mxu0 %v1851
    %2439 = vmatprep.subr.bf16.mxu0 0
    %2440 = vmatpush1.bf16.msra.mxu0 %v1852
    %2441 = vmatprep.subr.bf16.mxu0 0
    %2442 = vmatpush1.bf16.msra.mxu0 %v1853
    %2443 = vmatprep.subr.bf16.mxu0 0
    %2444 = vmatpush1.bf16.msra.mxu0 %v1854
    %2445 = vmatprep.subr.bf16.mxu0 0
    %2446 = vmatpush1.bf16.msra.mxu0 %v1855
    %2447 = vmatprep.subr.bf16.mxu0 0
    %2448 = vmatpush1.bf16.msra.mxu0 %v1856
    %2449 = vmatprep.subr.bf16.mxu0 0
    %2450 = vmatpush1.bf16.msra.mxu0 %v1857
    %2451 = vmatprep.subr.bf16.mxu0 0
    %2452 = vmatpush1.bf16.msra.mxu0 %v1858
    %2453 = vmatprep.subr.bf16.mxu0 0
    %2454 = vmatpush1.bf16.msra.mxu0 %v1859
    %2455 = vmatprep.subr.bf16.mxu0 0
    %2456 = vmatpush1.bf16.msra.mxu0 %v1860
    %2457 = vmatprep.subr.bf16.mxu0 0
    %2458 = vmatpush1.bf16.msra.mxu0 %v1861
    %2459 = vmatprep.subr.bf16.mxu0 0
    %2460 = vmatpush1.bf16.msra.mxu0 %v1862
    %2461 = vmatprep.subr.bf16.mxu0 0
    %2462 = vmatpush1.bf16.msra.mxu0 %v1863
    %2463 = vmatprep.subr.bf16.mxu0 0
    %2464 = vmatpush1.bf16.msra.mxu0 %v1864
    %2465 = vmatprep.mubr.bf16.mxu0 %v597
    %2466 = vmatmul.mubr.bf16.gmra.mrb[0].mxu0 %v595
    %v2467 = vpop.f32.mrb[0].mxu0
    %v2468 = vadd.f32 %v2428, %v2467
    %v2469 = vpop.f32.mrb[0].mxu0
    %v2470 = vpop.f32.mrb[0].mxu0
    %v2471 = vpop.f32.mrb[0].mxu0
    %2472 = vdwg.mxu0
    %2473 = vmatprep.subr.bf16.mxu0 0
    %2474 = vmatpush1.bf16.msra.mxu0 %v1865
    %2475 = vmatprep.subr.bf16.mxu0 0
    %2476 = vmatpush1.bf16.msra.mxu0 %v1866
    %2477 = vmatprep.subr.bf16.mxu0 0
    %2478 = vmatpush1.bf16.msra.mxu0 %v1867
    %2479 = vmatprep.subr.bf16.mxu0 0
    %2480 = vmatpush1.bf16.msra.mxu0 %v1868
    %2481 = vmatprep.subr.bf16.mxu0 0
    %2482 = vmatpush1.bf16.msra.mxu0 %v1869
    %2483 = vmatprep.subr.bf16.mxu0 0
    %2484 = vmatpush1.bf16.msra.mxu0 %v1870
    %2485 = vmatprep.subr.bf16.mxu0 0
    %2486 = vmatpush1.bf16.msra.mxu0 %v1871
    %2487 = vmatprep.subr.bf16.mxu0 0
    %2488 = vmatpush1.bf16.msra.mxu0 %v1872
    %2489 = vmatprep.subr.bf16.mxu0 0
    %2490 = vmatpush1.bf16.msra.mxu0 %v1873
    %2491 = vmatprep.subr.bf16.mxu0 0
    %2492 = vmatpush1.bf16.msra.mxu0 %v1874
    %2493 = vmatprep.subr.bf16.mxu0 0
    %2494 = vmatpush1.bf16.msra.mxu0 %v1875
    %2495 = vmatprep.subr.bf16.mxu0 0
    %2496 = vmatpush1.bf16.msra.mxu0 %v1876
    %2497 = vmatprep.subr.bf16.mxu0 0
    %2498 = vmatpush1.bf16.msra.mxu0 %v1877
    %2499 = vmatprep.subr.bf16.mxu0 0
    %2500 = vmatpush1.bf16.msra.mxu0 %v1878
    %2501 = vmatprep.subr.bf16.mxu0 0
    %2502 = vmatpush1.bf16.msra.mxu0 %v1879
    %2503 = vmatprep.subr.bf16.mxu0 0
    %2504 = vmatpush1.bf16.msra.mxu0 %v1880
    %2505 = vmatprep.mubr.bf16.mxu0 %v635
    %2506 = vmatmul.mubr.bf16.gmra.mrb[0].mxu0 %v621
    %v2507 = vpop.f32.mrb[0].mxu0
    %v2508 = vadd.f32 %v2468, %v2507
    %v2509 = vpop.f32.mrb[0].mxu0
    %v2510 = vpop.f32.mrb[0].mxu0
    %v2511 = vpop.f32.mrb[0].mxu0
    %2512 = vdwg.mxu0
    %2513 = vmatprep.subr.bf16.mxu0 0
    %2514 = vmatpush1.bf16.msra.mxu0 %v1881
    %2515 = vmatprep.subr.bf16.mxu0 0
    %2516 = vmatpush1.bf16.msra.mxu0 %v1882
    %2517 = vmatprep.subr.bf16.mxu0 0
    %2518 = vmatpush1.bf16.msra.mxu0 %v1883
    %2519 = vmatprep.subr.bf16.mxu0 0
    %2520 = vmatpush1.bf16.msra.mxu0 %v1884
    %2521 = vmatprep.subr.bf16.mxu0 0
    %2522 = vmatpush1.bf16.msra.mxu0 %v1885
    %2523 = vmatprep.subr.bf16.mxu0 0
    %2524 = vmatpush1.bf16.msra.mxu0 %v1886
    %2525 = vmatprep.subr.bf16.mxu0 0
    %2526 = vmatpush1.bf16.msra.mxu0 %v1887
    %2527 = vmatprep.subr.bf16.mxu0 0
    %2528 = vmatpush1.bf16.msra.mxu0 %v1888
    %2529 = vmatprep.subr.bf16.mxu0 0
    %2530 = vmatpush1.bf16.msra.mxu0 %v1889
    %2531 = vmatprep.subr.bf16.mxu0 0
    %2532 = vmatpush1.bf16.msra.mxu0 %v1890
    %2533 = vmatprep.subr.bf16.mxu0 0
    %2534 = vmatpush1.bf16.msra.mxu0 %v1891
    %2535 = vmatprep.subr.bf16.mxu0 0
    %2536 = vmatpush1.bf16.msra.mxu0 %v1892
    %2537 = vmatprep.subr.bf16.mxu0 0
    %2538 = vmatpush1.bf16.msra.mxu0 %v1893
    %2539 = vmatprep.subr.bf16.mxu0 0
    %2540 = vmatpush1.bf16.msra.mxu0 %v1894
    %2541 = vmatprep.subr.bf16.mxu0 0
    %2542 = vmatpush1.bf16.msra.mxu0 %v1895
    %2543 = vmatprep.subr.bf16.mxu0 0
    %2544 = vmatpush1.bf16.msra.mxu0 %v1896
    %2545 = vmatprep.mubr.bf16.mxu0 %v645
    %2546 = vmatmul.mubr.bf16.gmra.mrb[0].mxu0 %v643
    %v2547 = vpop.f32.mrb[0].mxu0
    %v2548 = vadd.f32 %v2508, %v2547
    %v2549 = vpop.f32.mrb[0].mxu0
    %v2550 = vpop.f32.mrb[0].mxu0
    %v2551 = vpop.f32.mrb[0].mxu0
    %2552 = vdwg.mxu0
    %2553 = vmatprep.subr.bf16.mxu0 0
    %2554 = vmatpush1.bf16.msra.mxu0 %v1897
    %2555 = vmatprep.subr.bf16.mxu0 0
    %2556 = vmatpush1.bf16.msra.mxu0 %v1898
    %2557 = vmatprep.subr.bf16.mxu0 0
    %2558 = vmatpush1.bf16.msra.mxu0 %v1899
    %2559 = vmatprep.subr.bf16.mxu0 0
    %2560 = vmatpush1.bf16.msra.mxu0 %v1900
    %2561 = vmatprep.subr.bf16.mxu0 0
    %2562 = vmatpush1.bf16.msra.mxu0 %v1901
    %2563 = vmatprep.subr.bf16.mxu0 0
    %2564 = vmatpush1.bf16.msra.mxu0 %v1902
    %2565 = vmatprep.subr.bf16.mxu0 0
    %2566 = vmatpush1.bf16.msra.mxu0 %v1903
    %2567 = vmatprep.subr.bf16.mxu0 0
    %2568 = vmatpush1.bf16.msra.mxu0 %v1904
    %2569 = vmatprep.subr.bf16.mxu0 0
    %2570 = vmatpush1.bf16.msra.mxu0 %v1905
    %2571 = vmatprep.subr.bf16.mxu0 0
    %2572 = vmatpush1.bf16.msra.mxu0 %v1906
    %2573 = vmatprep.subr.bf16.mxu0 0
    %2574 = vmatpush1.bf16.msra.mxu0 %v1907
    %2575 = vmatprep.subr.bf16.mxu0 0
    %2576 = vmatpush1.bf16.msra.mxu0 %v1908
    %2577 = vmatprep.subr.bf16.mxu0 0
    %2578 = vmatpush1.bf16.msra.mxu0 %v1909
    %2579 = vmatprep.subr.bf16.mxu0 0
    %2580 = vmatpush1.bf16.msra.mxu0 %v1910
    %2581 = vmatprep.subr.bf16.mxu0 0
    %2582 = vmatpush1.bf16.msra.mxu0 %v1911
    %2583 = vmatprep.subr.bf16.mxu0 0
    %2584 = vmatpush1.bf16.msra.mxu0 %v1912
    %2585 = vmatprep.mubr.bf16.mxu0 %v642
    %2586 = vmatmul.mubr.bf16.gmra.mrb[0].mxu0 %v628
    %v2587 = vpop.f32.mrb[0].mxu0
    %v2588 = vadd.f32 %v2548, %v2587
    %v2589 = vpop.f32.mrb[0].mxu0
    %v2590 = vpop.f32.mrb[0].mxu0
    %v2591 = vpop.f32.mrb[0].mxu0
    %2592 = vdwg.mxu0
    %2593 = vmatprep.subr.bf16.mxu0 0
    %2594 = vmatpush1.bf16.msra.mxu0 %v1913
    %2595 = vmatprep.subr.bf16.mxu0 0
    %2596 = vmatpush1.bf16.msra.mxu0 %v1914
    %2597 = vmatprep.subr.bf16.mxu0 0
    %2598 = vmatpush1.bf16.msra.mxu0 %v1915
    %2599 = vmatprep.subr.bf16.mxu0 0
    %2600 = vmatpush1.bf16.msra.mxu0 %v1916
    %2601 = vmatprep.subr.bf16.mxu0 0
    %2602 = vmatpush1.bf16.msra.mxu0 %v1917
    %2603 = vmatprep.subr.bf16.mxu0 0
    %2604 = vmatpush1.bf16.msra.mxu0 %v1918
    %2605 = vmatprep.subr.bf16.mxu0 0
    %2606 = vmatpush1.bf16.msra.mxu0 %v1919
    %2607 = vmatprep.subr.bf16.mxu0 0
    %2608 = vmatpush1.bf16.msra.mxu0 %v1920
    %2609 = vmatprep.subr.bf16.mxu0 0
    %2610 = vmatpush1.bf16.msra.mxu0 %v1921
    %2611 = vmatprep.subr.bf16.mxu0 0
    %2612 = vmatpush1.bf16.msra.mxu0 %v1922
    %2613 = vmatprep.subr.bf16.mxu0 0
    %2614 = vmatpush1.bf16.msra.mxu0 %v1923
    %2615 = vmatprep.subr.bf16.mxu0 0
    %2616 = vmatpush1.bf16.msra.mxu0 %v1924
    %2617 = vmatprep.subr.bf16.mxu0 0
    %2618 = vmatpush1.bf16.msra.mxu0 %v1925
    %2619 = vmatprep.subr.bf16.mxu0 0
    %2620 = vmatpush1.bf16.msra.mxu0 %v1926
    %2621 = vmatprep.subr.bf16.mxu0 0
    %2622 = vmatpush1.bf16.msra.mxu0 %v1927
    %2623 = vmatprep.subr.bf16.mxu0 0
    %2624 = vmatpush1.bf16.msra.mxu0 %v1928
    %2625 = vmatprep.mubr.bf16.mxu0 %v646
    %2626 = vmatmul.mubr.bf16.gmra.mrb[0].mxu0 %v644
    %v2627 = vpop.f32.mrb[0].mxu0
    %v2628 = vadd.f32 %v2588, %v2627
    %v2629 = vpop.f32.mrb[0].mxu0
    %v2630 = vpop.f32.mrb[0].mxu0
    %v2631 = vpop.f32.mrb[0].mxu0
    %2632 = vdwg.mxu0
    %2633 = vmatprep.subr.bf16.mxu0 0
    %2634 = vmatpush1.bf16.msra.mxu0 %v1929
    %2635 = vmatprep.subr.bf16.mxu0 0
    %2636 = vmatpush1.bf16.msra.mxu0 %v1930
    %2637 = vmatprep.subr.bf16.mxu0 0
    %2638 = vmatpush1.bf16.msra.mxu0 %v1931
    %2639 = vmatprep.subr.bf16.mxu0 0
    %2640 = vmatpush1.bf16.msra.mxu0 %v1932
    %2641 = vmatprep.subr.bf16.mxu0 0
    %2642 = vmatpush1.bf16.msra.mxu0 %v1933
    %2643 = vmatprep.subr.bf16.mxu0 0
    %2644 = vmatpush1.bf16.msra.mxu0 %v1934
    %2645 = vmatprep.subr.bf16.mxu0 0
    %2646 = vmatpush1.bf16.msra.mxu0 %v1935
    %2647 = vmatprep.subr.bf16.mxu0 0
    %2648 = vmatpush1.bf16.msra.mxu0 %v1936
    %2649 = vmatprep.subr.bf16.mxu0 0
    %2650 = vmatpush1.bf16.msra.mxu0 %v1937
    %2651 = vmatprep.subr.bf16.mxu0 0
    %2652 = vmatpush1.bf16.msra.mxu0 %v1938
    %2653 = vmatprep.subr.bf16.mxu0 0
    %2654 = vmatpush1.bf16.msra.mxu0 %v1939
    %2655 = vmatprep.subr.bf16.mxu0 0
    %2656 = vmatpush1.bf16.msra.mxu0 %v1940
    %2657 = vmatprep.subr.bf16.mxu0 0
    %2658 = vmatpush1.bf16.msra.mxu0 %v1941
    %2659 = vmatprep.subr.bf16.mxu0 0
    %2660 = vmatpush1.bf16.msra.mxu0 %v1942
    %2661 = vmatprep.subr.bf16.mxu0 0
    %2662 = vmatpush1.bf16.msra.mxu0 %v1943
    %2663 = vmatprep.subr.bf16.mxu0 0
    %2664 = vmatpush1.bf16.msra.mxu0 %v1944
    %2665 = vmatprep.mubr.bf16.mxu0 %v684
    %2666 = vmatmul.mubr.bf16.gmra.mrb[0].mxu0 %v670
    %v2667 = vpop.f32.mrb[0].mxu0
    %v2668 = vadd.f32 %v2628, %v2667
    %v2669 = vpop.f32.mrb[0].mxu0
    %v2670 = vpop.f32.mrb[0].mxu0
    %v2671 = vpop.f32.mrb[0].mxu0
    %2672 = vdwg.mxu0
    %2673 = vmatprep.subr.bf16.mxu0 0
    %2674 = vmatpush1.bf16.msra.mxu0 %v1945
    %2675 = vmatprep.subr.bf16.mxu0 0
    %2676 = vmatpush1.bf16.msra.mxu0 %v1946
    %2677 = vmatprep.subr.bf16.mxu0 0
    %2678 = vmatpush1.bf16.msra.mxu0 %v1947
    %2679 = vmatprep.subr.bf16.mxu0 0
    %2680 = vmatpush1.bf16.msra.mxu0 %v1948
    %2681 = vmatprep.subr.bf16.mxu0 0
    %2682 = vmatpush1.bf16.msra.mxu0 %v1949
    %2683 = vmatprep.subr.bf16.mxu0 0
    %2684 = vmatpush1.bf16.msra.mxu0 %v1950
    %2685 = vmatprep.subr.bf16.mxu0 0
    %2686 = vmatpush1.bf16.msra.mxu0 %v1951
    %2687 = vmatprep.subr.bf16.mxu0 0
    %2688 = vmatpush1.bf16.msra.mxu0 %v1952
    %2689 = vmatprep.subr.bf16.mxu0 0
    %2690 = vmatpush1.bf16.msra.mxu0 %v1953
    %2691 = vmatprep.subr.bf16.mxu0 0
    %2692 = vmatpush1.bf16.msra.mxu0 %v1954
    %2693 = vmatprep.subr.bf16.mxu0 0
    %2694 = vmatpush1.bf16.msra.mxu0 %v1955
    %2695 = vmatprep.subr.bf16.mxu0 0
    %2696 = vmatpush1.bf16.msra.mxu0 %v1956
    %2697 = vmatprep.subr.bf16.mxu0 0
    %2698 = vmatpush1.bf16.msra.mxu0 %v1957
    %2699 = vmatprep.subr.bf16.mxu0 0
    %2700 = vmatpush1.bf16.msra.mxu0 %v1958
    %2701 = vmatprep.subr.bf16.mxu0 0
    %2702 = vmatpush1.bf16.msra.mxu0 %v1959
    %2703 = vmatprep.subr.bf16.mxu0 0
    %2704 = vmatpush1.bf16.msra.mxu0 %v1960
    %2705 = vmatprep.mubr.bf16.mxu0 %v694
    %2706 = vmatmul.mubr.bf16.gmra.mrb[0].mxu0 %v692
    %v2707 = vpop.f32.mrb[0].mxu0
    %v2708 = vadd.f32 %v2668, %v2707
    %v2709 = vpop.f32.mrb[0].mxu0
    %v2710 = vpop.f32.mrb[0].mxu0
    %v2711 = vpop.f32.mrb[0].mxu0
    %2712 = vdwg.mxu0
    %2713 = vmatprep.subr.bf16.mxu0 0
    %2714 = vmatpush1.bf16.msra.mxu0 %v1961
    %2715 = vmatprep.subr.bf16.mxu0 0
    %2716 = vmatpush1.bf16.msra.mxu0 %v1962
    %2717 = vmatprep.subr.bf16.mxu0 0
    %2718 = vmatpush1.bf16.msra.mxu0 %v1963
    %2719 = vmatprep.subr.bf16.mxu0 0
    %2720 = vmatpush1.bf16.msra.mxu0 %v1964
    %2721 = vmatprep.subr.bf16.mxu0 0
    %2722 = vmatpush1.bf16.msra.mxu0 %v1965
    %2723 = vmatprep.subr.bf16.mxu0 0
    %2724 = vmatpush1.bf16.msra.mxu0 %v1966
    %2725 = vmatprep.subr.bf16.mxu0 0
    %2726 = vmatpush1.bf16.msra.mxu0 %v1967
    %2727 = vmatprep.subr.bf16.mxu0 0
    %2728 = vmatpush1.bf16.msra.mxu0 %v1968
    %2729 = vmatprep.subr.bf16.mxu0 0
    %2730 = vmatpush1.bf16.msra.mxu0 %v1969
    %2731 = vmatprep.subr.bf16.mxu0 0
    %2732 = vmatpush1.bf16.msra.mxu0 %v1970
    %2733 = vmatprep.subr.bf16.mxu0 0
    %2734 = vmatpush1.bf16.msra.mxu0 %v1971
    %2735 = vmatprep.subr.bf16.mxu0 0
    %2736 = vmatpush1.bf16.msra.mxu0 %v1972
    %2737 = vmatprep.subr.bf16.mxu0 0
    %2738 = vmatpush1.bf16.msra.mxu0 %v1973
    %2739 = vmatprep.subr.bf16.mxu0 0
    %2740 = vmatpush1.bf16.msra.mxu0 %v1974
    %2741 = vmatprep.subr.bf16.mxu0 0
    %2742 = vmatpush1.bf16.msra.mxu0 %v1975
    %2743 = vmatprep.subr.bf16.mxu0 0
    %2744 = vmatpush1.bf16.msra.mxu0 %v1976
    %2745 = vmatprep.mubr.bf16.mxu0 %v691
    %2746 = vmatmul.mubr.bf16.gmra.mrb[0].mxu0 %v677
    %v2747 = vpop.f32.mrb[0].mxu0
    %v2748 = vadd.f32 %v2708, %v2747
    %v2749 = vpop.f32.mrb[0].mxu0
    %v2750 = vpop.f32.mrb[0].mxu0
    %v2751 = vpop.f32.mrb[0].mxu0
    %2752 = vdwg.mxu0
    %2753 = vmatprep.subr.bf16.mxu0 0
    %2754 = vmatpush1.bf16.msra.mxu0 %v1977
    %2755 = vmatprep.subr.bf16.mxu0 0
    %2756 = vmatpush1.bf16.msra.mxu0 %v1978
    %2757 = vmatprep.subr.bf16.mxu0 0
    %2758 = vmatpush1.bf16.msra.mxu0 %v1979
    %2759 = vmatprep.subr.bf16.mxu0 0
    %2760 = vmatpush1.bf16.msra.mxu0 %v1980
    %2761 = vmatprep.subr.bf16.mxu0 0
    %2762 = vmatpush1.bf16.msra.mxu0 %v1981
    %2763 = vmatprep.subr.bf16.mxu0 0
    %2764 = vmatpush1.bf16.msra.mxu0 %v1982
    %2765 = vmatprep.subr.bf16.mxu0 0
    %2766 = vmatpush1.bf16.msra.mxu0 %v1983
    %2767 = vmatprep.subr.bf16.mxu0 0
    %2768 = vmatpush1.bf16.msra.mxu0 %v1984
    %2769 = vmatprep.subr.bf16.mxu0 0
    %2770 = vmatpush1.bf16.msra.mxu0 %v1985
    %2771 = vmatprep.subr.bf16.mxu0 0
    %2772 = vmatpush1.bf16.msra.mxu0 %v1986
    %2773 = vmatprep.subr.bf16.mxu0 0
    %2774 = vmatpush1.bf16.msra.mxu0 %v1987
    %2775 = vmatprep.subr.bf16.mxu0 0
    %2776 = vmatpush1.bf16.msra.mxu0 %v1988
    %2777 = vmatprep.subr.bf16.mxu0 0
    %2778 = vmatpush1.bf16.msra.mxu0 %v1989
    %2779 = vmatprep.subr.bf16.mxu0 0
    %2780 = vmatpush1.bf16.msra.mxu0 %v1990
    %2781 = vmatprep.subr.bf16.mxu0 0
    %2782 = vmatpush1.bf16.msra.mxu0 %v1991
    %2783 = vmatprep.subr.bf16.mxu0 0
    %2784 = vmatpush1.bf16.msra.mxu0 %v1992
    %2785 = vmatprep.mubr.bf16.mxu0 %v695
    %2786 = vmatmul.mubr.bf16.gmra.mrb[0].mxu0 %v693
    %v2787 = vpop.f32.mrb[0].mxu0
    %v2788 = vadd.f32 %v2748, %v2787
    %v2789 = vpop.f32.mrb[0].mxu0
    %v2790 = vpop.f32.mrb[0].mxu0
    %v2791 = vpop.f32.mrb[0].mxu0
    %2792 = vdwg.mxu0
    %2793 = vmatprep.subr.bf16.mxu0 0
    %2794 = vmatpush1.bf16.msra.mxu0 %v1993
    %2795 = vmatprep.subr.bf16.mxu0 0
    %2796 = vmatpush1.bf16.msra.mxu0 %v1994
    %2797 = vmatprep.subr.bf16.mxu0 0
    %2798 = vmatpush1.bf16.msra.mxu0 %v1995
    %2799 = vmatprep.subr.bf16.mxu0 0
    %2800 = vmatpush1.bf16.msra.mxu0 %v1996
    %2801 = vmatprep.subr.bf16.mxu0 0
    %2802 = vmatpush1.bf16.msra.mxu0 %v1997
    %2803 = vmatprep.subr.bf16.mxu0 0
    %2804 = vmatpush1.bf16.msra.mxu0 %v1998
    %2805 = vmatprep.subr.bf16.mxu0 0
    %2806 = vmatpush1.bf16.msra.mxu0 %v1999
    %2807 = vmatprep.subr.bf16.mxu0 0
    %2808 = vmatpush1.bf16.msra.mxu0 %v2000
    %2809 = vmatprep.subr.bf16.mxu0 0
    %2810 = vmatpush1.bf16.msra.mxu0 %v2001
    %2811 = vmatprep.subr.bf16.mxu0 0
    %2812 = vmatpush1.bf16.msra.mxu0 %v2002
    %2813 = vmatprep.subr.bf16.mxu0 0
    %2814 = vmatpush1.bf16.msra.mxu0 %v2003
    %2815 = vmatprep.subr.bf16.mxu0 0
    %2816 = vmatpush1.bf16.msra.mxu0 %v2004
    %2817 = vmatprep.subr.bf16.mxu0 0
    %2818 = vmatpush1.bf16.msra.mxu0 %v2005
    %2819 = vmatprep.subr.bf16.mxu0 0
    %2820 = vmatpush1.bf16.msra.mxu0 %v2006
    %2821 = vmatprep.subr.bf16.mxu0 0
    %2822 = vmatpush1.bf16.msra.mxu0 %v2007
    %2823 = vmatprep.subr.bf16.mxu0 0
    %2824 = vmatpush1.bf16.msra.mxu0 %v2008
    %2825 = vmatprep.mubr.bf16.mxu0 %v733
    %2826 = vmatmul.mubr.bf16.gmra.mrb[0].mxu0 %v719
    %v2827 = vpop.f32.mrb[0].mxu0
    %v2828 = vadd.f32 %v2788, %v2827
    %v2829 = vpop.f32.mrb[0].mxu0
    %v2830 = vpop.f32.mrb[0].mxu0
    %v2831 = vpop.f32.mrb[0].mxu0
    %2832 = vdwg.mxu0
    %2833 = vmatprep.subr.bf16.mxu0 0
    %2834 = vmatpush1.bf16.msra.mxu0 %v2009
    %2835 = vmatprep.subr.bf16.mxu0 0
    %2836 = vmatpush1.bf16.msra.mxu0 %v2010
    %2837 = vmatprep.subr.bf16.mxu0 0
    %2838 = vmatpush1.bf16.msra.mxu0 %v2011
    %2839 = vmatprep.subr.bf16.mxu0 0
    %2840 = vmatpush1.bf16.msra.mxu0 %v2012
    %2841 = vmatprep.subr.bf16.mxu0 0
    %2842 = vmatpush1.bf16.msra.mxu0 %v2013
    %2843 = vmatprep.subr.bf16.mxu0 0
    %2844 = vmatpush1.bf16.msra.mxu0 %v2014
    %2845 = vmatprep.subr.bf16.mxu0 0
    %2846 = vmatpush1.bf16.msra.mxu0 %v2015
    %2847 = vmatprep.subr.bf16.mxu0 0
    %2848 = vmatpush1.bf16.msra.mxu0 %v2016
    %2849 = vmatprep.subr.bf16.mxu0 0
    %2850 = vmatpush1.bf16.msra.mxu0 %v2017
    %2851 = vmatprep.subr.bf16.mxu0 0
    %2852 = vmatpush1.bf16.msra.mxu0 %v2018
    %2853 = vmatprep.subr.bf16.mxu0 0
    %2854 = vmatpush1.bf16.msra.mxu0 %v2019
    %2855 = vmatprep.subr.bf16.mxu0 0
    %2856 = vmatpush1.bf16.msra.mxu0 %v2020
    %2857 = vmatprep.subr.bf16.mxu0 0
    %2858 = vmatpush1.bf16.msra.mxu0 %v2021
    %2859 = vmatprep.subr.bf16.mxu0 0
    %2860 = vmatpush1.bf16.msra.mxu0 %v2022
    %2861 = vmatprep.subr.bf16.mxu0 0
    %2862 = vmatpush1.bf16.msra.mxu0 %v2023
    %2863 = vmatprep.subr.bf16.mxu0 0
    %2864 = vmatpush1.bf16.msra.mxu0 %v2024
    %2865 = vmatprep.mubr.bf16.mxu0 %v743
    %2866 = vmatmul.mubr.bf16.gmra.mrb[0].mxu0 %v741
    %v2867 = vpop.f32.mrb[0].mxu0
    %v2868 = vadd.f32 %v2828, %v2867
    %v2869 = vpop.f32.mrb[0].mxu0
    %v2870 = vpop.f32.mrb[0].mxu0
    %v2871 = vpop.f32.mrb[0].mxu0
    %2872 = vdwg.mxu0
    %2873 = vmatprep.subr.bf16.mxu0 0
    %2874 = vmatpush1.bf16.msra.mxu0 %v2025
    %2875 = vmatprep.subr.bf16.mxu0 0
    %2876 = vmatpush1.bf16.msra.mxu0 %v2026
    %2877 = vmatprep.subr.bf16.mxu0 0
    %2878 = vmatpush1.bf16.msra.mxu0 %v2027
    %2879 = vmatprep.subr.bf16.mxu0 0
    %2880 = vmatpush1.bf16.msra.mxu0 %v2028
    %2881 = vmatprep.subr.bf16.mxu0 0
    %2882 = vmatpush1.bf16.msra.mxu0 %v2029
    %2883 = vmatprep.subr.bf16.mxu0 0
    %2884 = vmatpush1.bf16.msra.mxu0 %v2030
    %2885 = vmatprep.subr.bf16.mxu0 0
    %2886 = vmatpush1.bf16.msra.mxu0 %v2031
    %2887 = vmatprep.subr.bf16.mxu0 0
    %2888 = vmatpush1.bf16.msra.mxu0 %v2032
    %2889 = vmatprep.subr.bf16.mxu0 0
    %2890 = vmatpush1.bf16.msra.mxu0 %v2033
    %2891 = vmatprep.subr.bf16.mxu0 0
    %2892 = vmatpush1.bf16.msra.mxu0 %v2034
    %2893 = vmatprep.subr.bf16.mxu0 0
    %2894 = vmatpush1.bf16.msra.mxu0 %v2035
    %2895 = vmatprep.subr.bf16.mxu0 0
    %2896 = vmatpush1.bf16.msra.mxu0 %v2036
    %2897 = vmatprep.subr.bf16.mxu0 0
    %2898 = vmatpush1.bf16.msra.mxu0 %v2037
    %2899 = vmatprep.subr.bf16.mxu0 0
    %2900 = vmatpush1.bf16.msra.mxu0 %v2038
    %2901 = vmatprep.subr.bf16.mxu0 0
    %2902 = vmatpush1.bf16.msra.mxu0 %v2039
    %2903 = vmatprep.subr.bf16.mxu0 0
    %2904 = vmatpush1.bf16.msra.mxu0 %v2040
    %2905 = vmatprep.mubr.bf16.mxu0 %v740
    %2906 = vmatmul.mubr.bf16.gmra.mrb[0].mxu0 %v726
    %v2907 = vpop.f32.mrb[0].mxu0
    %v2908 = vadd.f32 %v2868, %v2907
    %v2909 = vpop.f32.mrb[0].mxu0
    %v2910 = vpop.f32.mrb[0].mxu0
    %v2911 = vpop.f32.mrb[0].mxu0
    %2912 = vdwg.mxu0
    %2913 = vmatprep.subr.bf16.mxu0 0
    %2914 = vmatpush1.bf16.msra.mxu0 %v2041
    %2915 = vmatprep.subr.bf16.mxu0 0
    %2916 = vmatpush1.bf16.msra.mxu0 %v2042
    %2917 = vmatprep.subr.bf16.mxu0 0
    %2918 = vmatpush1.bf16.msra.mxu0 %v2043
    %2919 = vmatprep.subr.bf16.mxu0 0
    %2920 = vmatpush1.bf16.msra.mxu0 %v2044
    %2921 = vmatprep.subr.bf16.mxu0 0
    %2922 = vmatpush1.bf16.msra.mxu0 %v2045
    %2923 = vmatprep.subr.bf16.mxu0 0
    %2924 = vmatpush1.bf16.msra.mxu0 %v2046
    %2925 = vmatprep.subr.bf16.mxu0 0
    %2926 = vmatpush1.bf16.msra.mxu0 %v2047
    %2927 = vmatprep.subr.bf16.mxu0 0
    %2928 = vmatpush1.bf16.msra.mxu0 %v2048
    %2929 = vmatprep.subr.bf16.mxu0 0
    %2930 = vmatpush1.bf16.msra.mxu0 %v2049
    %2931 = vmatprep.subr.bf16.mxu0 0
    %2932 = vmatpush1.bf16.msra.mxu0 %v2050
    %2933 = vmatprep.subr.bf16.mxu0 0
    %2934 = vmatpush1.bf16.msra.mxu0 %v2051
    %2935 = vmatprep.subr.bf16.mxu0 0
    %2936 = vmatpush1.bf16.msra.mxu0 %v2052
    %2937 = vmatprep.subr.bf16.mxu0 0
    %2938 = vmatpush1.bf16.msra.mxu0 %v2053
    %2939 = vmatprep.subr.bf16.mxu0 0
    %2940 = vmatpush1.bf16.msra.mxu0 %v2054
    %2941 = vmatprep.subr.bf16.mxu0 0
    %2942 = vmatpush1.bf16.msra.mxu0 %v2055
    %2943 = vmatprep.subr.bf16.mxu0 0
    %2944 = vmatpush1.bf16.msra.mxu0 %v2056
    %2945 = vmatprep.mubr.bf16.mxu0 %v744
    %2946 = vmatmul.mubr.bf16.gmra.mrb[0].mxu0 %v742
    %v2947 = vpop.f32.mrb[0].mxu0
    %v2948 = vadd.f32 %v2908, %v2947
    %v2949 = vpop.f32.mrb[0].mxu0
    %v2950 = vpop.f32.mrb[0].mxu0
    %v2951 = vpop.f32.mrb[0].mxu0
    %2952 = vdwg.mxu0
    %v2953 = vmax.f32 %v2948, 0.0
    %v2954 = vpack.c.bf16 %v2953, %v2953
    %v2955 = vld [vmem:[%s3] sm:$0xf]
    %v2956 = vld [vmem:[%s3 + $0x4] sm:$0xf]
    %v2957 = vld [vmem:[%s3 + $0x8] sm:$0xf]
    %v2958 = vld [vmem:[%s3 + $0xc] sm:$0xf]
    %v2959 = vld [vmem:[%s3 + $0x10] sm:$0xf]
    %v2960 = vld [vmem:[%s3 + $0x14] sm:$0xf]
    %v2961 = vld [vmem:[%s3 + $0x18] sm:$0xf]
    %v2962 = vld [vmem:[%s3 + $0x1c] sm:$0xf]
    %v2963 = vld [vmem:[%s3 + $0x20] sm:$0xf]
    %v2964 = vld [vmem:[%s3 + $0x24] sm:$0xf]
    %v2965 = vld [vmem:[%s3 + $0x28] sm:$0xf]
    %v2966 = vld [vmem:[%s3 + $0x2c] sm:$0xf]
    %v2967 = vld [vmem:[%s3 + $0x30] sm:$0xf]
    %v2968 = vld [vmem:[%s3 + $0x34] sm:$0xf]
    %v2969 = vld [vmem:[%s3 + $0x38] sm:$0xf]
    %v2970 = vld [vmem:[%s3 + $0x3c] sm:$0xf]
    %v2971 = vld [vmem:[%s4] sm:$0x1]
    %v2973 = vlaneseq
    %v2974 = vshrl.u32 %v2973, 7
    %v2975 = vsub.s32 0, %v2974
    %v2976 = vrot.slane %v2971, %v2975
    %v2994 = vunpack.c.l.b16 %v2955
    %v2995 = vunpack.c.l.b16 %v2956
    %v2996 = vunpack.c.l.b16 %v2957
    %v2997 = vunpack.c.l.b16 %v2958
    %v2998 = vunpack.c.l.b16 %v2959
    %v2999 = vunpack.c.l.b16 %v2960
    %v3000 = vunpack.c.l.b16 %v2961
    %v3001 = vunpack.c.l.b16 %v2962
    %v3002 = vunpack.c.l.b16 %v2963
    %v3003 = vunpack.c.l.b16 %v2964
    %v3004 = vunpack.c.l.b16 %v2965
    %v3005 = vunpack.c.l.b16 %v2966
    %v3006 = vunpack.c.l.b16 %v2967
    %v3007 = vunpack.c.l.b16 %v2968
    %v3008 = vunpack.c.l.b16 %v2969
    %v3009 = vunpack.c.l.b16 %v2970
    %v3010 = vpack.c.b16 %v2995, %v2994
    %v3011 = vpack.c.b16 %v2997, %v2996
    %v3012 = vpack.c.b16 %v2999, %v2998
    %v3013 = vpack.c.b16 %v3001, %v3000
    %v3014 = vpack.c.b16 %v3003, %v3002
    %v3015 = vpack.c.b16 %v3005, %v3004
    %v3016 = vpack.c.b16 %v3007, %v3006
    %v3017 = vpack.c.b16 %v3009, %v3008
    %3026 = vmatprep.subr.bf16.mxu0 0
    %3027 = vmatpush1.bf16.msra.mxu0 %v3010
    %3028 = vmatprep.subr.bf16.mxu0 0
    %3029 = vmatpush1.bf16.msra.mxu0 %v3011
    %3030 = vmatprep.subr.bf16.mxu0 0
    %3031 = vmatpush1.bf16.msra.mxu0 %v3012
    %3032 = vmatprep.subr.bf16.mxu0 0
    %3033 = vmatpush1.bf16.msra.mxu0 %v3013
    %3034 = vmatprep.subr.bf16.mxu0 0
    %3035 = vmatpush1.bf16.msra.mxu0 %v3014
    %3036 = vmatprep.subr.bf16.mxu0 0
    %3037 = vmatpush1.bf16.msra.mxu0 %v3015
    %3038 = vmatprep.subr.bf16.mxu0 0
    %3039 = vmatpush1.bf16.msra.mxu0 %v3016
    %3040 = vmatprep.subr.bf16.mxu0 0
    %3041 = vmatpush1.bf16.msra.mxu0 %v3017
    %3042 = vmatprep.subr.bf16.mxu0 0
    %3043 = vmatpush1.bf16.msra.mxu0 0
    %3044 = vmatprep.subr.bf16.mxu0 0
    %3045 = vmatpush1.bf16.msra.mxu0 0
    %3046 = vmatprep.subr.bf16.mxu0 0
    %3047 = vmatpush1.bf16.msra.mxu0 0
    %3048 = vmatprep.subr.bf16.mxu0 0
    %3049 = vmatpush1.bf16.msra.mxu0 0
    %3050 = vmatprep.subr.bf16.mxu0 0
    %3051 = vmatpush1.bf16.msra.mxu0 0
    %3052 = vmatprep.subr.bf16.mxu0 0
    %3053 = vmatpush1.bf16.msra.mxu0 0
    %3054 = vmatprep.subr.bf16.mxu0 0
    %3055 = vmatpush1.bf16.msra.mxu0 0
    %3056 = vmatprep.subr.bf16.mxu0 0
    %3057 = vmatpush1.bf16.msra.mxu0 0
    %3058 = vmatprep.mubr.bf16.mxu0 0
    %3059 = vmatmul.mubr.bf16.gmra.mrb[0].mxu0 %v2954
    %v3060 = vpop.f32.mrb[0].mxu0
    %v3061 = vadd.f32 %v2976, %v3060
    %v3062 = vpop.f32.mrb[0].mxu0
    %v3063 = vpop.f32.mrb[0].mxu0
    %v3064 = vpop.f32.mrb[0].mxu0
    %3065 = vdwg.mxu0
    %3066 = vst [vmem:[#allocation2] sm:$0x3] %v3061
    // Predicated region
    $region22: #{network_forward.3} parent=1 // pred_check
      _
    $region23: #{network_forward.3} parent=1 // pred_check_branch
      %3068 = sbr.rel (0) target = $region25
    $region24: #{network_forward.3} parent=1 // pred_region
      %s3070 = ssub.s32 32, 32
      %3071 = vsyncadd [#allocation3], %s3070
      %s3073 = sshll.u32 [#allocation2], 4
      %s3074 = int_to_ptr.vmem [resolvable:$true] %s3073
      %3076 = dma.vmem_to_hbm [thread:$0]  %s3074, 32, %s5, [#allocation3]
    $region25: #{network_forward.3} parent=1 // pred_fallthru
      _
    // Predicated region
    $region26: #{network_forward.3} parent=1 // pred_check
      _
    $region27: #{network_forward.3} parent=1 // pred_check_branch
      %3078 = sbr.rel (0) target = $region29
    $region28: #{network_forward.3} parent=1 // pred_region
      %3079 = dma.done [#allocation3], 32
    $region29: #{network_forward.3} parent=1 // pred_fallthru
      _
    %3080 = vsyncpa [#allocation3], 1

</llo_original>
